<compile_context>
chip_gen: v6e
topology: v6e:2x2x1
jax: 0.10.0
libtpu: 0.0.40
codegen_flags: <defaults>
</compile_context>

<pallas_src>
import functools

import jax
import jax.numpy as jnp
from jax import lax
from jax.experimental import pallas as pl
from jax.experimental.pallas import tpu as pltpu

LN_EPS = 1e-5  # nn.LayerNorm default


# ----------------------------- in-kernel helpers -----------------------------

def _normalize(x, axis):
    """LayerNorm without affine (affine is folded into the next projection)."""
    mu = jnp.mean(x, axis=axis, keepdims=True)
    var = jnp.mean(jnp.square(x - mu), axis=axis, keepdims=True)
    return (x - mu) * lax.rsqrt(var + LN_EPS)


def _gelu_tanh(x):
    # TODO(synk): reference nn.GELU() is exact erf-GELU; kernel uses the tanh
    # approximation (max abs deviation ~3e-4) to keep the transcendental on EUP.
    return 0.5 * x * (1.0 + jnp.tanh(0.7978845608028654 * (x + 0.044715 * x * x * x)))


def _mlp_cp(x, w1, w2, b):
    """Pre-LN MLP (+residual) in channels-x-lanes layout.

    x: (C, P2) f32; w1: (4C, C) bf16 (LN affine folded); w2: (C, 4C) bf16;
    b: (5C, 1) f32 packed as [b1_eff (4C); b2 (C)].
    """
    f32, bf16 = jnp.float32, jnp.bfloat16
    hdim = w1.shape[0]
    z = _normalize(x, axis=0).astype(bf16)
    h = jnp.dot(w1, z, preferred_element_type=f32) + b[0:hdim, :]
    h = _gelu_tanh(h)
    y = jnp.dot(w2, h.astype(bf16), preferred_element_type=f32) + b[hdim:, :]
    return x + y


# ------------------------------ fused Pallas kernel --------------------------

def _fused_block_kernel(x_ref, mask_ref,
                        ws_ref, bs_ref,              # spatial attention (packed)
                        wm1_ref, wm2_ref, bm_ref,    # mlp
                        wt_ref, wto_ref, bt_ref,     # temporal attention (packed)
                        wn1_ref, wn2_ref, bn_ref,    # mlp2
                        o_ref, *, C, P2, T, D, num_heads, masked):
    f32, bf16 = jnp.float32, jnp.bfloat16
    H = num_heads
    Dh = C // H          # spatial head dim
    Dt = D // H          # temporal head dim
    TH = T * H

    x0 = x_ref[0].astype(f32)      # (C, P2): original input == block residual
    x = x0

    # ---------------- spatial self-attention (+ residual) ----------------
    # ws rows: [0:3C] in_proj (LN + 1/sqrt(Dh) scale folded), [3C:4C] out_proj.
    ws = ws_ref[...]               # (4C, C) bf16
    bs = bs_ref[...]               # (4C, 1) f32
    z = _normalize(x, axis=0).astype(bf16)                               # (C, P2)
    qkv = (jnp.dot(ws[0:3 * C, :], z, preferred_element_type=f32)
           + bs[0:3 * C, :]).astype(bf16)                                # (3C, P2) bf16 resident
    x = x + bs[3 * C:4 * C, :]     # fold out_proj bias into the residual add
    # Static head loop (H=4); heads accumulate into the out-projection (no
    # lane-axis concat).  Scores keep keys on sublanes / queries on lanes so
    # softmax stats broadcast straight onto the PV result.
    for h in range(H):
        qh = qkv[h * Dh:(h + 1) * Dh, :]                                 # (Dh, P2)
        kh = qkv[C + h * Dh:C + (h + 1) * Dh, :]                         # (Dh, P2)
        vh = qkv[2 * C + h * Dh:2 * C + (h + 1) * Dh, :]                 # (Dh, P2)
        # (P2_k, P2_q): contract dim 0 of K with dim 0 of Q (MXU absorbs transpose)
        s = lax.dot_general(kh, qh, (((0,), (0,)), ((), ())),
                            preferred_element_type=f32)
        if masked:                 # block-diagonal image mask (0 / -1e30)
            s = s + mask_ref[...]
        s = s - jnp.max(s, axis=0, keepdims=True)                        # (1, P2_q)
        e = jnp.exp(s)
        r = pl.reciprocal(jnp.sum(e, axis=0, keepdims=True), approx=True)  # (1, P2_q)
        oh = jnp.dot(vh, e.astype(bf16), preferred_element_type=f32)     # (Dh, P2_q)
        oh = oh * r                # normalize the small PV result, not the prob matrix
        woh = ws[3 * C:4 * C, h * Dh:(h + 1) * Dh]                       # (C, Dh) bf16
        x = x + jnp.dot(woh, oh.astype(bf16), preferred_element_type=f32)

    # ---------------- MLP 1 (+ residual) ----------------
    x = _mlp_cp(x, wm1_ref[...], wm2_ref[...], bm_ref[...])

    # ---------------- temporal self-attention (+ residual) ----------------
    # Per-pixel sequences of length T, embed dim D; channel c = t*D + d.
    # wt rows ordered (s, dt, t, h) (block-diag over t, LN + 1/sqrt(Dt) folded);
    # wto columns ordered (t, dt, h).
    wt = wt_ref[...]               # (3C, C) bf16
    bt = bt_ref[...]               # (4C, 1) f32
    xg = x.reshape(T, D, P2)
    mu = jnp.mean(xg, axis=1, keepdims=True)
    var = jnp.mean(jnp.square(xg - mu), axis=1, keepdims=True)
    zt = ((xg - mu) * lax.rsqrt(var + LN_EPS)).reshape(C, P2).astype(bf16)
    qkvt = jnp.dot(wt, zt, preferred_element_type=f32) + bt[0:3 * C, :]  # (3C, P2)

    # Loop over query time step: all intermediates are dense (T*H, P2) = (16, 128)
    # slabs (old version kept ~(T,T,H,P) tensors at 1/8 vreg occupancy).
    att_parts = []
    for tq in range(T):
        s = None
        for d in range(Dt):
            k_d = qkvt[C + d * TH:C + (d + 1) * TH, :]                   # (TH, P2) rows (tk, h)
            q_s = qkvt[d * TH + tq * H:d * TH + (tq + 1) * H, :]         # (H, P2)
            term = jnp.concatenate([q_s] * T, axis=0) * k_d              # (TH, P2)
            s = term if s is None else s + term
        s3 = s.reshape(T, H, P2)
        m = jnp.max(s3, axis=0, keepdims=True)
        e = jnp.exp(s3 - m)                                              # (T, H, P2)
        r = pl.reciprocal(jnp.sum(e, axis=0), approx=True)               # (H, P2)
        e = e.reshape(TH, P2)
        for d in range(Dt):
            v_d = qkvt[2 * C + d * TH:2 * C + (d + 1) * TH, :]           # (TH, P2)
            od = jnp.sum((e * v_d).reshape(T, H, P2), axis=0) * r        # (H, P2)
            att_parts.append(od)                                         # rows (tq, dt, h)
    att = jnp.concatenate(att_parts, axis=0)                             # (C, P2)
    y = jnp.dot(wto_ref[...], att.astype(bf16),
                preferred_element_type=f32) + bt[3 * C:4 * C, :]
    x = x + y

    # ---------------- MLP 2 (+ residual) ----------------
    x = _mlp_cp(x, wn1_ref[...], wn2_ref[...], bn_ref[...])

    # block residual + store (full 128-lane unmasked store)
    o_ref[0] = (x + x0).astype(o_ref.dtype)


# ------------------------------ weight packing --------------------------------

def _prep_params(params, *, C, T, D, num_heads):
    """Fold LN affine + attention scales into projections, block-diagonalize the
    temporal weights, cast MXU operands to bf16."""
    f32, bf16 = jnp.float32, jnp.bfloat16
    Hh = num_heads
    Dh = C // Hh
    Dt = D // Hh

    def fold_ln(w, g, b, bias):
        # LN(x) @ w.T + bias  ==  normalize(x) @ (w*g).T + (w@b + bias)
        return w * g[None, :], w @ b + bias

    # --- spatial attention: [in_proj (LN + scale folded); out_proj] ---
    sp = params['spatial']
    wq, bq = fold_ln(sp['wqkv'], sp['ln_g'], sp['ln_b'], sp['bqkv'])
    scale_s = jnp.concatenate([jnp.full((C,), 1.0 / (Dh ** 0.5), dtype=f32),
                               jnp.ones((2 * C,), dtype=f32)])
    wq = wq * scale_s[:, None]
    bq = bq * scale_s
    ws = jnp.concatenate([wq, sp['wo']], axis=0).astype(bf16)            # (4C, C)
    bs = jnp.concatenate([bq, sp['bo']])[:, None].astype(f32)            # (4C, 1)

    # --- MLPs ---
    def pack_mlp(mp):
        w1, b1 = fold_ln(mp['w1'], mp['ln_g'], mp['ln_b'], mp['b1'])
        return (w1.astype(bf16), mp['w2'].astype(bf16),
                jnp.concatenate([b1, mp['b2']])[:, None].astype(f32))
    wm1, wm2, bm = pack_mlp(params['mlp'])
    wn1, wn2, bn = pack_mlp(params['mlp2'])

    # --- temporal attention: block-diagonal over time ---
    tp = params['temporal']
    wq_t, bq_t = fold_ln(tp['wqkv'], tp['ln_g'], tp['ln_b'], tp['bqkv'])  # (3D, D), (3D,)
    scale_t = jnp.concatenate([jnp.full((D,), 1.0 / (Dt ** 0.5), dtype=f32),
                               jnp.ones((2 * D,), dtype=f32)])
    wq_t = wq_t * scale_t[:, None]
    bq_t = bq_t * scale_t
    eye_t = jnp.eye(T, dtype=f32)
    wq4 = wq_t.reshape(3, Hh, Dt, D)                                      # [s, h, dt, e_in]
    # rows ordered (s, dt, t, h), columns (t', e_in)
    wt = jnp.einsum('shdk,tu->sdthuk', wq4, eye_t).reshape(3 * C, C).astype(bf16)
    bq4 = jnp.transpose(bq_t.reshape(3, Hh, Dt), (0, 2, 1))               # [s, dt, h]
    bt_qkv = jnp.broadcast_to(bq4[:, :, None, :], (3, Dt, T, Hh)).reshape(3 * C, 1)
    wo4 = tp['wo'].reshape(D, Hh, Dt)                                     # [e_out, h, dt]
    # rows (t, e_out), columns ordered (t', dt, h) -- matches kernel att row order
    wto = jnp.einsum('ehd,tu->teudh', wo4, eye_t).reshape(C, C).astype(bf16)
    bto = jnp.broadcast_to(tp['bo'][None, :], (T, D)).reshape(C, 1)
    bt = jnp.concatenate([bt_qkv, bto], axis=0).astype(f32)               # (4C, 1)

    return dict(ws=ws, bs=bs, wm1=wm1, wm2=wm2, bm=bm,
                wt=wt, wto=wto, bt=bt, wn1=wn1, wn2=wn2, bn=bn)


# ------------------------------ Pallas wrapper --------------------------------

def _full_spec(a):
    nd = a.ndim
    return pl.BlockSpec(a.shape, lambda i, _n=nd: (0,) * _n)


def pallas_forward(x, params, T, num_heads):
    """x: (B, C, H, W) f32 -> (B, C, H, W). One fused pallas_call over the block."""
    B, C, Himg, Wimg = x.shape
    D = C // T
    P = Himg * Wimg
    # Lane-density: pack 2 images per grid step (lane width 2P) -- but only when
    # at least 2 grid steps remain, so the 2nd TensorCore on v7x still gets work.
    G = 2 if (B % 2 == 0 and B >= 4) else 1
    NB = B // G
    P2 = G * P

    packed = _prep_params(params, C=C, T=T, D=D, num_heads=num_heads)
    order = ('ws', 'bs', 'wm1', 'wm2', 'bm', 'wt', 'wto', 'bt', 'wn1', 'wn2', 'bn')
    weights = tuple(packed[k] for k in order)

    # Additive block-diagonal image mask for the spatial attention scores.
    if G > 1:
        img_id = jnp.arange(P2, dtype=jnp.int32) // P
        mask = jnp.where(img_id[:, None] == img_id[None, :], 0.0, -1e30).astype(jnp.float32)
    else:
        mask = jnp.zeros((P2, P2), jnp.float32)   # unused when masked=False

    kernel = functools.partial(_fused_block_kernel, C=C, P2=P2, T=T, D=D,
                               num_heads=num_heads, masked=(G > 1))

    # Pack G images side by side along the lane (pixel) axis.
    x_packed = x.reshape(NB, G, C, P).transpose(0, 2, 1, 3).reshape(NB, C, P2)

    out = pl.pallas_call(
        kernel,
        out_shape=jax.ShapeDtypeStruct((NB, C, P2), x.dtype),
        grid=(NB,),
        in_specs=[pl.BlockSpec((1, C, P2), lambda i: (i, 0, 0)),
                  _full_spec(mask)]
                 + [_full_spec(w) for w in weights],
        out_specs=pl.BlockSpec((1, C, P2), lambda i: (i, 0, 0)),
        compiler_params=pltpu.CompilerParams(
            dimension_semantics=("parallel",)),
    )(x_packed, mask, *weights)

    out = out.reshape(NB, C, G, P).transpose(0, 2, 1, 3).reshape(B, C, Himg, Wimg)
    return out


# ------------------------------ pure-JAX reference -----------------------------

def _ln_ref(x, g, b):
    mu = jnp.mean(x, axis=-1, keepdims=True)
    var = jnp.mean(jnp.square(x - mu), axis=-1, keepdims=True)
    return (x - mu) * lax.rsqrt(var + LN_EPS) * g + b


def _ref_mha(x, p, num_heads):
    NB, S, E = x.shape
    Dh = E // num_heads
    xn = _ln_ref(x, p['ln_g'], p['ln_b'])
    qkv = xn @ p['wqkv'].T + p['bqkv']
    q, k, v = jnp.split(qkv, 3, axis=-1)

    def sh(t):
        return t.reshape(NB, S, num_heads, Dh).transpose(0, 2, 1, 3)

    q, k, v = sh(q), sh(k), sh(v)
    s = jnp.einsum('bhqd,bhkd->bhqk', q, k) / jnp.sqrt(jnp.float32(Dh))
    a = jax.nn.softmax(s, axis=-1)
    o = jnp.einsum('bhqk,bhkd->bhqd', a, v).transpose(0, 2, 1, 3).reshape(NB, S, E)
    return x + o @ p['wo'].T + p['bo']


def _ref_mlp(x, p):
    xn = _ln_ref(x, p['ln_g'], p['ln_b'])
    h = xn @ p['w1'].T + p['b1']
    h = 0.5 * h * (1.0 + jax.scipy.special.erf(h / jnp.sqrt(jnp.float32(2.0))))  # exact GELU
    return x + (h @ p['w2'].T + p['b2'])


def ref_forward(x, params, T, num_heads):
    B, C, H, W = x.shape
    D = C // T
    residual = x
    tok = jnp.transpose(x.reshape(B, C, H * W), (0, 2, 1))
    tok = _ref_mha(tok, params['spatial'], num_heads)
    tok = _ref_mlp(tok, params['mlp'])
    x = jnp.transpose(tok, (0, 2, 1)).reshape(B, C, H, W)
    xt = x.reshape(B, T, D, H, W).transpose(0, 3, 4, 1, 2).reshape(B * H * W, T, D)
    xt = _ref_mha(xt, params['temporal'], num_heads)
    x = xt.reshape(B, H, W, T, D).transpose(0, 3, 4, 1, 2).reshape(B, C, H, W)
    tok = jnp.transpose(x.reshape(B, C, H * W), (0, 2, 1))
    tok = _ref_mlp(tok, params['mlp2'])
    x = jnp.transpose(tok, (0, 2, 1)).reshape(B, C, H, W)
    return x + residual


# ------------------------------ deterministic init -----------------------------

def init_params(key, C, T, num_heads):
    D = C // T
    keys = iter(jax.random.split(key, 40))

    def w(shape, scale=0.08):
        return (scale * jax.random.normal(next(keys), shape)).astype(jnp.float32)

    def ln(n):
        return dict(
            ln_g=(1.0 + 0.1 * jax.random.normal(next(keys), (n,))).astype(jnp.float32),
            ln_b=(0.05 * jax.random.normal(next(keys), (n,))).astype(jnp.float32))

    def attn(e):
        d = ln(e)
        d.update(wqkv=w((3 * e, e)), bqkv=w((3 * e,), 0.02),
                 wo=w((e, e)), bo=w((e,), 0.02))
        return d

    def mlp(c):
        d = ln(c)
        d.update(w1=w((4 * c, c)), b1=w((4 * c,), 0.02),
                 w2=w((c, 4 * c)), b2=w((c,), 0.02))
        return d

    return dict(spatial=attn(C), temporal=attn(D), mlp=mlp(C), mlp2=mlp(C))


# ----------------------------------- main --------------------------------------

if __name__ == "__main__":
    # B=4 so two images pack per grid step (lane width 128) AND the grid keeps
    # 2 steps for the two v7x TensorCores.  D = C // T = 8, temporal head_dim = 2.
    B, C, H, W = 4, 32, 8, 8
    T, num_heads = 4, 4

    key = jax.random.PRNGKey(0)
    kx, kp = jax.random.split(key)
    x = jax.random.normal(kx, (B, C, H, W), dtype=jnp.float32)
    params = init_params(kp, C, T, num_heads)

    fwd = jax.jit(functools.partial(pallas_forward, T=T, num_heads=num_heads))
    out = jax.block_until_ready(fwd(x, params))

    ref = jax.block_until_ready(ref_forward(x, params, T, num_heads))
    assert out.shape == (B, C, H, W)
    max_err = float(jnp.max(jnp.abs(out - ref)))
    # bf16 MXU operands, bf16-quantized LN/scale-folded weights, tanh-GELU and
    # approx-reciprocal softmax vs an all-f32 exact-erf reference.
    assert max_err < 4e-2, f"mismatch vs reference: {max_err}"

    print("KERNEL_OK")
</pallas_src>

<mosaic_0001>
module attributes {stable_mosaic.version = 11 : i64} {
  func.func @_fused_block_kernel(%arg0: i32, %arg1: memref<1x32x128xf32, #tpu.memory_space<vmem>>, %arg2: memref<128x128xf32, #tpu.memory_space<vmem>>, %arg3: memref<128x32xbf16, #tpu.memory_space<vmem>>, %arg4: memref<128x1xf32, #tpu.memory_space<vmem>>, %arg5: memref<128x32xbf16, #tpu.memory_space<vmem>>, %arg6: memref<32x128xbf16, #tpu.memory_space<vmem>>, %arg7: memref<160x1xf32, #tpu.memory_space<vmem>>, %arg8: memref<96x32xbf16, #tpu.memory_space<vmem>>, %arg9: memref<32x32xbf16, #tpu.memory_space<vmem>>, %arg10: memref<128x1xf32, #tpu.memory_space<vmem>>, %arg11: memref<128x32xbf16, #tpu.memory_space<vmem>>, %arg12: memref<32x128xbf16, #tpu.memory_space<vmem>>, %arg13: memref<160x1xf32, #tpu.memory_space<vmem>>, %arg14: memref<1x32x128xf32, #tpu.memory_space<vmem>>) attributes {dimension_semantics = [#tpu.dimension_semantics<parallel>], iteration_bounds = array<i64: 2>, scalar_prefetch = 0 : i64, scratch_operands = 0 : i64, tpu.core_type = #tpu.core_type<tc>, window_params = [{transform_indices = @transform_0, window_bounds = array<i64: 1, 32, 128>}, {pipeline_mode = #tpu.pipeline_mode<synchronous>, transform_indices = @transform_1, window_bounds = array<i64: 128, 128>}, {pipeline_mode = #tpu.pipeline_mode<synchronous>, transform_indices = @transform_2, window_bounds = array<i64: 128, 32>}, {pipeline_mode = #tpu.pipeline_mode<synchronous>, transform_indices = @transform_3, window_bounds = array<i64: 128, 1>}, {pipeline_mode = #tpu.pipeline_mode<synchronous>, transform_indices = @transform_4, window_bounds = array<i64: 128, 32>}, {pipeline_mode = #tpu.pipeline_mode<synchronous>, transform_indices = @transform_5, window_bounds = array<i64: 32, 128>}, {pipeline_mode = #tpu.pipeline_mode<synchronous>, transform_indices = @transform_6, window_bounds = array<i64: 160, 1>}, {pipeline_mode = #tpu.pipeline_mode<synchronous>, transform_indices = @transform_7, window_bounds = array<i64: 96, 32>}, {pipeline_mode = #tpu.pipeline_mode<synchronous>, transform_indices = @transform_8, window_bounds = array<i64: 32, 32>}, {pipeline_mode = #tpu.pipeline_mode<synchronous>, transform_indices = @transform_9, window_bounds = array<i64: 128, 1>}, {pipeline_mode = #tpu.pipeline_mode<synchronous>, transform_indices = @transform_10, window_bounds = array<i64: 128, 32>}, {pipeline_mode = #tpu.pipeline_mode<synchronous>, transform_indices = @transform_11, window_bounds = array<i64: 32, 128>}, {pipeline_mode = #tpu.pipeline_mode<synchronous>, transform_indices = @transform_12, window_bounds = array<i64: 160, 1>}, {transform_indices = @transform_13, window_bounds = array<i64: 1, 32, 128>}]} {
    %c0 = arith.constant 0 : index
    %c0_0 = arith.constant 0 : index
    %c0_1 = arith.constant 0 : index
    %0 = vector.load %arg1[%c0, %c0_0, %c0_1] : memref<1x32x128xf32, #tpu.memory_space<vmem>>, vector<1x32x128xf32>
    %1 = vector.shape_cast %0 : vector<1x32x128xf32> to vector<32x128xf32>
    %c0_2 = arith.constant 0 : index
    %c0_3 = arith.constant 0 : index
    %2 = vector.load %arg3[%c0_2, %c0_3] : memref<128x32xbf16, #tpu.memory_space<vmem>>, vector<128x32xbf16>
    %c0_4 = arith.constant 0 : index
    %c0_5 = arith.constant 0 : index
    %3 = vector.load %arg4[%c0_4, %c0_5] : memref<128x1xf32, #tpu.memory_space<vmem>>, vector<128x1xf32>
    %cst = arith.constant dense<0.000000e+00> : vector<128xf32>
    %4 = vector.multi_reduction <add>, %1, %cst [0] : vector<32x128xf32> to vector<128xf32>
    %5 = vector.shape_cast %4 : vector<128xf32> to vector<1x128xf32>
    %cst_6 = arith.constant 3.200000e+01 : f32
    %6 = vector.broadcast %cst_6 : f32 to vector<1x128xf32>
    %7 = arith.divf %5, %6 : vector<1x128xf32>
    %8 = vector.broadcast %7 : vector<1x128xf32> to vector<32x128xf32>
    %9 = arith.subf %1, %8 : vector<32x128xf32>
    %10 = arith.mulf %9, %9 : vector<32x128xf32>
    %cst_7 = arith.constant dense<0.000000e+00> : vector<128xf32>
    %11 = vector.multi_reduction <add>, %10, %cst_7 [0] : vector<32x128xf32> to vector<128xf32>
    %12 = vector.shape_cast %11 : vector<128xf32> to vector<1x128xf32>
    %cst_8 = arith.constant 3.200000e+01 : f32
    %13 = vector.broadcast %cst_8 : f32 to vector<1x128xf32>
    %14 = arith.divf %12, %13 : vector<1x128xf32>
    %15 = vector.broadcast %7 : vector<1x128xf32> to vector<32x128xf32>
    %16 = arith.subf %1, %15 : vector<32x128xf32>
    %cst_9 = arith.constant 9.99999974E-6 : f32
    %17 = vector.broadcast %cst_9 : f32 to vector<1x128xf32>
    %18 = arith.addf %14, %17 : vector<1x128xf32>
    %19 = math.rsqrt %18 : vector<1x128xf32>
    %20 = vector.broadcast %19 : vector<1x128xf32> to vector<32x128xf32>
    %21 = arith.mulf %16, %20 : vector<32x128xf32>
    %22 = arith.truncf %21 : vector<32x128xf32> to vector<32x128xbf16>
    %23 = vector.extract_strided_slice %2 {offsets = [0, 0], sizes = [96, 32], strides = [1, 1]} : vector<128x32xbf16> to vector<96x32xbf16>
    %cst_10 = arith.constant dense<0.000000e+00> : vector<96x128xf32>
    %24 = tpu.matmul %23, %22, %cst_10 {dimension_numbers = #tpu.dot_dimension_numbers<[1], [0], [0], [1], [0, 0, 1, 1], [], []>} : vector<96x32xbf16>, vector<32x128xbf16>, vector<96x128xf32> -> vector<96x128xf32>
    %25 = vector.extract_strided_slice %3 {offsets = [0, 0], sizes = [96, 1], strides = [1, 1]} : vector<128x1xf32> to vector<96x1xf32>
    %26 = vector.broadcast %25 : vector<96x1xf32> to vector<96x128xf32>
    %27 = arith.addf %24, %26 : vector<96x128xf32>
    %28 = arith.truncf %27 : vector<96x128xf32> to vector<96x128xbf16>
    %29 = vector.extract_strided_slice %3 {offsets = [96, 0], sizes = [32, 1], strides = [1, 1]} : vector<128x1xf32> to vector<32x1xf32>
    %30 = vector.broadcast %29 : vector<32x1xf32> to vector<32x128xf32>
    %31 = arith.addf %1, %30 : vector<32x128xf32>
    %32 = vector.extract_strided_slice %28 {offsets = [0, 0], sizes = [8, 128], strides = [1, 1]} : vector<96x128xbf16> to vector<8x128xbf16>
    %33 = vector.extract_strided_slice %28 {offsets = [32, 0], sizes = [8, 128], strides = [1, 1]} : vector<96x128xbf16> to vector<8x128xbf16>
    %34 = vector.extract_strided_slice %28 {offsets = [64, 0], sizes = [8, 128], strides = [1, 1]} : vector<96x128xbf16> to vector<8x128xbf16>
    %cst_11 = arith.constant dense<0.000000e+00> : vector<128x128xf32>
    %35 = tpu.matmul %33, %32, %cst_11 {dimension_numbers = #tpu.dot_dimension_numbers<[0], [0], [1], [1], [0, 1, 1, 1], [], []>} : vector<8x128xbf16>, vector<8x128xbf16>, vector<128x128xf32> -> vector<128x128xf32>
    %c0_12 = arith.constant 0 : index
    %c0_13 = arith.constant 0 : index
    %36 = vector.load %arg2[%c0_12, %c0_13] : memref<128x128xf32, #tpu.memory_space<vmem>>, vector<128x128xf32>
    %37 = arith.addf %35, %36 : vector<128x128xf32>
    %cst_14 = arith.constant dense<0xFF800000> : vector<128xf32>
    %38 = vector.multi_reduction <maximumf>, %37, %cst_14 [0] : vector<128x128xf32> to vector<128xf32>
    %39 = vector.shape_cast %38 : vector<128xf32> to vector<1x128xf32>
    %40 = vector.broadcast %39 : vector<1x128xf32> to vector<128x128xf32>
    %41 = arith.subf %37, %40 : vector<128x128xf32>
    %42 = math.exp %41 : vector<128x128xf32>
    %cst_15 = arith.constant dense<0.000000e+00> : vector<128xf32>
    %43 = vector.multi_reduction <add>, %42, %cst_15 [0] : vector<128x128xf32> to vector<128xf32>
    %44 = vector.shape_cast %43 : vector<128xf32> to vector<1x128xf32>
    %45 = tpu.reciprocal %44 {approx = true} : vector<1x128xf32> -> vector<1x128xf32>
    %46 = arith.truncf %42 : vector<128x128xf32> to vector<128x128xbf16>
    %cst_16 = arith.constant dense<0.000000e+00> : vector<8x128xf32>
    %47 = tpu.matmul %34, %46, %cst_16 {dimension_numbers = #tpu.dot_dimension_numbers<[1], [0], [0], [1], [0, 0, 1, 1], [], []>} : vector<8x128xbf16>, vector<128x128xbf16>, vector<8x128xf32> -> vector<8x128xf32>
    %48 = vector.broadcast %45 : vector<1x128xf32> to vector<8x128xf32>
    %49 = arith.mulf %47, %48 : vector<8x128xf32>
    %50 = vector.extract_strided_slice %2 {offsets = [96, 0], sizes = [32, 8], strides = [1, 1]} : vector<128x32xbf16> to vector<32x8xbf16>
    %51 = arith.truncf %49 : vector<8x128xf32> to vector<8x128xbf16>
    %cst_17 = arith.constant dense<0.000000e+00> : vector<32x128xf32>
    %52 = tpu.matmul %50, %51, %cst_17 {dimension_numbers = #tpu.dot_dimension_numbers<[1], [0], [0], [1], [0, 0, 1, 1], [], []>} : vector<32x8xbf16>, vector<8x128xbf16>, vector<32x128xf32> -> vector<32x128xf32>
    %53 = arith.addf %31, %52 : vector<32x128xf32>
    %54 = vector.extract_strided_slice %28 {offsets = [8, 0], sizes = [8, 128], strides = [1, 1]} : vector<96x128xbf16> to vector<8x128xbf16>
    %55 = vector.extract_strided_slice %28 {offsets = [40, 0], sizes = [8, 128], strides = [1, 1]} : vector<96x128xbf16> to vector<8x128xbf16>
    %56 = vector.extract_strided_slice %28 {offsets = [72, 0], sizes = [8, 128], strides = [1, 1]} : vector<96x128xbf16> to vector<8x128xbf16>
    %cst_18 = arith.constant dense<0.000000e+00> : vector<128x128xf32>
    %57 = tpu.matmul %55, %54, %cst_18 {dimension_numbers = #tpu.dot_dimension_numbers<[0], [0], [1], [1], [0, 1, 1, 1], [], []>} : vector<8x128xbf16>, vector<8x128xbf16>, vector<128x128xf32> -> vector<128x128xf32>
    %c0_19 = arith.constant 0 : index
    %c0_20 = arith.constant 0 : index
    %58 = vector.load %arg2[%c0_19, %c0_20] : memref<128x128xf32, #tpu.memory_space<vmem>>, vector<128x128xf32>
    %59 = arith.addf %57, %58 : vector<128x128xf32>
    %cst_21 = arith.constant dense<0xFF800000> : vector<128xf32>
    %60 = vector.multi_reduction <maximumf>, %59, %cst_21 [0] : vector<128x128xf32> to vector<128xf32>
    %61 = vector.shape_cast %60 : vector<128xf32> to vector<1x128xf32>
    %62 = vector.broadcast %61 : vector<1x128xf32> to vector<128x128xf32>
    %63 = arith.subf %59, %62 : vector<128x128xf32>
    %64 = math.exp %63 : vector<128x128xf32>
    %cst_22 = arith.constant dense<0.000000e+00> : vector<128xf32>
    %65 = vector.multi_reduction <add>, %64, %cst_22 [0] : vector<128x128xf32> to vector<128xf32>
    %66 = vector.shape_cast %65 : vector<128xf32> to vector<1x128xf32>
    %67 = tpu.reciprocal %66 {approx = true} : vector<1x128xf32> -> vector<1x128xf32>
    %68 = arith.truncf %64 : vector<128x128xf32> to vector<128x128xbf16>
    %cst_23 = arith.constant dense<0.000000e+00> : vector<8x128xf32>
    %69 = tpu.matmul %56, %68, %cst_23 {dimension_numbers = #tpu.dot_dimension_numbers<[1], [0], [0], [1], [0, 0, 1, 1], [], []>} : vector<8x128xbf16>, vector<128x128xbf16>, vector<8x128xf32> -> vector<8x128xf32>
    %70 = vector.broadcast %67 : vector<1x128xf32> to vector<8x128xf32>
    %71 = arith.mulf %69, %70 : vector<8x128xf32>
    %72 = vector.extract_strided_slice %2 {offsets = [96, 8], sizes = [32, 8], strides = [1, 1]} : vector<128x32xbf16> to vector<32x8xbf16>
    %73 = arith.truncf %71 : vector<8x128xf32> to vector<8x128xbf16>
    %cst_24 = arith.constant dense<0.000000e+00> : vector<32x128xf32>
    %74 = tpu.matmul %72, %73, %cst_24 {dimension_numbers = #tpu.dot_dimension_numbers<[1], [0], [0], [1], [0, 0, 1, 1], [], []>} : vector<32x8xbf16>, vector<8x128xbf16>, vector<32x128xf32> -> vector<32x128xf32>
    %75 = arith.addf %53, %74 : vector<32x128xf32>
    %76 = vector.extract_strided_slice %28 {offsets = [16, 0], sizes = [8, 128], strides = [1, 1]} : vector<96x128xbf16> to vector<8x128xbf16>
    %77 = vector.extract_strided_slice %28 {offsets = [48, 0], sizes = [8, 128], strides = [1, 1]} : vector<96x128xbf16> to vector<8x128xbf16>
    %78 = vector.extract_strided_slice %28 {offsets = [80, 0], sizes = [8, 128], strides = [1, 1]} : vector<96x128xbf16> to vector<8x128xbf16>
    %cst_25 = arith.constant dense<0.000000e+00> : vector<128x128xf32>
    %79 = tpu.matmul %77, %76, %cst_25 {dimension_numbers = #tpu.dot_dimension_numbers<[0], [0], [1], [1], [0, 1, 1, 1], [], []>} : vector<8x128xbf16>, vector<8x128xbf16>, vector<128x128xf32> -> vector<128x128xf32>
    %c0_26 = arith.constant 0 : index
    %c0_27 = arith.constant 0 : index
    %80 = vector.load %arg2[%c0_26, %c0_27] : memref<128x128xf32, #tpu.memory_space<vmem>>, vector<128x128xf32>
    %81 = arith.addf %79, %80 : vector<128x128xf32>
    %cst_28 = arith.constant dense<0xFF800000> : vector<128xf32>
    %82 = vector.multi_reduction <maximumf>, %81, %cst_28 [0] : vector<128x128xf32> to vector<128xf32>
    %83 = vector.shape_cast %82 : vector<128xf32> to vector<1x128xf32>
    %84 = vector.broadcast %83 : vector<1x128xf32> to vector<128x128xf32>
    %85 = arith.subf %81, %84 : vector<128x128xf32>
    %86 = math.exp %85 : vector<128x128xf32>
    %cst_29 = arith.constant dense<0.000000e+00> : vector<128xf32>
    %87 = vector.multi_reduction <add>, %86, %cst_29 [0] : vector<128x128xf32> to vector<128xf32>
    %88 = vector.shape_cast %87 : vector<128xf32> to vector<1x128xf32>
    %89 = tpu.reciprocal %88 {approx = true} : vector<1x128xf32> -> vector<1x128xf32>
    %90 = arith.truncf %86 : vector<128x128xf32> to vector<128x128xbf16>
    %cst_30 = arith.constant dense<0.000000e+00> : vector<8x128xf32>
    %91 = tpu.matmul %78, %90, %cst_30 {dimension_numbers = #tpu.dot_dimension_numbers<[1], [0], [0], [1], [0, 0, 1, 1], [], []>} : vector<8x128xbf16>, vector<128x128xbf16>, vector<8x128xf32> -> vector<8x128xf32>
    %92 = vector.broadcast %89 : vector<1x128xf32> to vector<8x128xf32>
    %93 = arith.mulf %91, %92 : vector<8x128xf32>
    %94 = vector.extract_strided_slice %2 {offsets = [96, 16], sizes = [32, 8], strides = [1, 1]} : vector<128x32xbf16> to vector<32x8xbf16>
    %95 = arith.truncf %93 : vector<8x128xf32> to vector<8x128xbf16>
    %cst_31 = arith.constant dense<0.000000e+00> : vector<32x128xf32>
    %96 = tpu.matmul %94, %95, %cst_31 {dimension_numbers = #tpu.dot_dimension_numbers<[1], [0], [0], [1], [0, 0, 1, 1], [], []>} : vector<32x8xbf16>, vector<8x128xbf16>, vector<32x128xf32> -> vector<32x128xf32>
    %97 = arith.addf %75, %96 : vector<32x128xf32>
    %98 = vector.extract_strided_slice %28 {offsets = [24, 0], sizes = [8, 128], strides = [1, 1]} : vector<96x128xbf16> to vector<8x128xbf16>
    %99 = vector.extract_strided_slice %28 {offsets = [56, 0], sizes = [8, 128], strides = [1, 1]} : vector<96x128xbf16> to vector<8x128xbf16>
    %100 = vector.extract_strided_slice %28 {offsets = [88, 0], sizes = [8, 128], strides = [1, 1]} : vector<96x128xbf16> to vector<8x128xbf16>
    %cst_32 = arith.constant dense<0.000000e+00> : vector<128x128xf32>
    %101 = tpu.matmul %99, %98, %cst_32 {dimension_numbers = #tpu.dot_dimension_numbers<[0], [0], [1], [1], [0, 1, 1, 1], [], []>} : vector<8x128xbf16>, vector<8x128xbf16>, vector<128x128xf32> -> vector<128x128xf32>
    %c0_33 = arith.constant 0 : index
    %c0_34 = arith.constant 0 : index
    %102 = vector.load %arg2[%c0_33, %c0_34] : memref<128x128xf32, #tpu.memory_space<vmem>>, vector<128x128xf32>
    %103 = arith.addf %101, %102 : vector<128x128xf32>
    %cst_35 = arith.constant dense<0xFF800000> : vector<128xf32>
    %104 = vector.multi_reduction <maximumf>, %103, %cst_35 [0] : vector<128x128xf32> to vector<128xf32>
    %105 = vector.shape_cast %104 : vector<128xf32> to vector<1x128xf32>
    %106 = vector.broadcast %105 : vector<1x128xf32> to vector<128x128xf32>
    %107 = arith.subf %103, %106 : vector<128x128xf32>
    %108 = math.exp %107 : vector<128x128xf32>
    %cst_36 = arith.constant dense<0.000000e+00> : vector<128xf32>
    %109 = vector.multi_reduction <add>, %108, %cst_36 [0] : vector<128x128xf32> to vector<128xf32>
    %110 = vector.shape_cast %109 : vector<128xf32> to vector<1x128xf32>
    %111 = tpu.reciprocal %110 {approx = true} : vector<1x128xf32> -> vector<1x128xf32>
    %112 = arith.truncf %108 : vector<128x128xf32> to vector<128x128xbf16>
    %cst_37 = arith.constant dense<0.000000e+00> : vector<8x128xf32>
    %113 = tpu.matmul %100, %112, %cst_37 {dimension_numbers = #tpu.dot_dimension_numbers<[1], [0], [0], [1], [0, 0, 1, 1], [], []>} : vector<8x128xbf16>, vector<128x128xbf16>, vector<8x128xf32> -> vector<8x128xf32>
    %114 = vector.broadcast %111 : vector<1x128xf32> to vector<8x128xf32>
    %115 = arith.mulf %113, %114 : vector<8x128xf32>
    %116 = vector.extract_strided_slice %2 {offsets = [96, 24], sizes = [32, 8], strides = [1, 1]} : vector<128x32xbf16> to vector<32x8xbf16>
    %117 = arith.truncf %115 : vector<8x128xf32> to vector<8x128xbf16>
    %cst_38 = arith.constant dense<0.000000e+00> : vector<32x128xf32>
    %118 = tpu.matmul %116, %117, %cst_38 {dimension_numbers = #tpu.dot_dimension_numbers<[1], [0], [0], [1], [0, 0, 1, 1], [], []>} : vector<32x8xbf16>, vector<8x128xbf16>, vector<32x128xf32> -> vector<32x128xf32>
    %119 = arith.addf %97, %118 : vector<32x128xf32>
    %c0_39 = arith.constant 0 : index
    %c0_40 = arith.constant 0 : index
    %120 = vector.load %arg5[%c0_39, %c0_40] : memref<128x32xbf16, #tpu.memory_space<vmem>>, vector<128x32xbf16>
    %c0_41 = arith.constant 0 : index
    %c0_42 = arith.constant 0 : index
    %121 = vector.load %arg6[%c0_41, %c0_42] : memref<32x128xbf16, #tpu.memory_space<vmem>>, vector<32x128xbf16>
    %c0_43 = arith.constant 0 : index
    %c0_44 = arith.constant 0 : index
    %122 = vector.load %arg7[%c0_43, %c0_44] : memref<160x1xf32, #tpu.memory_space<vmem>>, vector<160x1xf32>
    %cst_45 = arith.constant dense<0.000000e+00> : vector<128xf32>
    %123 = vector.multi_reduction <add>, %119, %cst_45 [0] : vector<32x128xf32> to vector<128xf32>
    %124 = vector.shape_cast %123 : vector<128xf32> to vector<1x128xf32>
    %cst_46 = arith.constant 3.200000e+01 : f32
    %125 = vector.broadcast %cst_46 : f32 to vector<1x128xf32>
    %126 = arith.divf %124, %125 : vector<1x128xf32>
    %127 = vector.broadcast %126 : vector<1x128xf32> to vector<32x128xf32>
    %128 = arith.subf %119, %127 : vector<32x128xf32>
    %129 = arith.mulf %128, %128 : vector<32x128xf32>
    %cst_47 = arith.constant dense<0.000000e+00> : vector<128xf32>
    %130 = vector.multi_reduction <add>, %129, %cst_47 [0] : vector<32x128xf32> to vector<128xf32>
    %131 = vector.shape_cast %130 : vector<128xf32> to vector<1x128xf32>
    %cst_48 = arith.constant 3.200000e+01 : f32
    %132 = vector.broadcast %cst_48 : f32 to vector<1x128xf32>
    %133 = arith.divf %131, %132 : vector<1x128xf32>
    %134 = vector.broadcast %126 : vector<1x128xf32> to vector<32x128xf32>
    %135 = arith.subf %119, %134 : vector<32x128xf32>
    %cst_49 = arith.constant 9.99999974E-6 : f32
    %136 = vector.broadcast %cst_49 : f32 to vector<1x128xf32>
    %137 = arith.addf %133, %136 : vector<1x128xf32>
    %138 = math.rsqrt %137 : vector<1x128xf32>
    %139 = vector.broadcast %138 : vector<1x128xf32> to vector<32x128xf32>
    %140 = arith.mulf %135, %139 : vector<32x128xf32>
    %141 = arith.truncf %140 : vector<32x128xf32> to vector<32x128xbf16>
    %cst_50 = arith.constant dense<0.000000e+00> : vector<128x128xf32>
    %142 = tpu.matmul %120, %141, %cst_50 {dimension_numbers = #tpu.dot_dimension_numbers<[1], [0], [0], [1], [0, 0, 1, 1], [], []>} : vector<128x32xbf16>, vector<32x128xbf16>, vector<128x128xf32> -> vector<128x128xf32>
    %143 = vector.extract_strided_slice %122 {offsets = [0, 0], sizes = [128, 1], strides = [1, 1]} : vector<160x1xf32> to vector<128x1xf32>
    %144 = vector.broadcast %143 : vector<128x1xf32> to vector<128x128xf32>
    %145 = arith.addf %142, %144 : vector<128x128xf32>
    %cst_51 = arith.constant 5.000000e-01 : f32
    %146 = vector.broadcast %cst_51 : f32 to vector<128x128xf32>
    %147 = arith.mulf %146, %145 : vector<128x128xf32>
    %cst_52 = arith.constant 4.471500e-02 : f32
    %148 = vector.broadcast %cst_52 : f32 to vector<128x128xf32>
    %149 = arith.mulf %148, %145 : vector<128x128xf32>
    %150 = arith.mulf %149, %145 : vector<128x128xf32>
    %151 = arith.mulf %150, %145 : vector<128x128xf32>
    %152 = arith.addf %145, %151 : vector<128x128xf32>
    %cst_53 = arith.constant 0.797884583 : f32
    %153 = vector.broadcast %cst_53 : f32 to vector<128x128xf32>
    %154 = arith.mulf %153, %152 : vector<128x128xf32>
    %155 = math.tanh %154 : vector<128x128xf32>
    %cst_54 = arith.constant 1.000000e+00 : f32
    %156 = vector.broadcast %cst_54 : f32 to vector<128x128xf32>
    %157 = arith.addf %156, %155 : vector<128x128xf32>
    %158 = arith.mulf %147, %157 : vector<128x128xf32>
    %159 = arith.truncf %158 : vector<128x128xf32> to vector<128x128xbf16>
    %cst_55 = arith.constant dense<0.000000e+00> : vector<32x128xf32>
    %160 = tpu.matmul %121, %159, %cst_55 {dimension_numbers = #tpu.dot_dimension_numbers<[1], [0], [0], [1], [0, 0, 1, 1], [], []>} : vector<32x128xbf16>, vector<128x128xbf16>, vector<32x128xf32> -> vector<32x128xf32>
    %161 = vector.extract_strided_slice %122 {offsets = [128, 0], sizes = [32, 1], strides = [1, 1]} : vector<160x1xf32> to vector<32x1xf32>
    %162 = vector.broadcast %161 : vector<32x1xf32> to vector<32x128xf32>
    %163 = arith.addf %160, %162 : vector<32x128xf32>
    %164 = arith.addf %119, %163 : vector<32x128xf32>
    %c0_56 = arith.constant 0 : index
    %c0_57 = arith.constant 0 : index
    %165 = vector.load %arg8[%c0_56, %c0_57] : memref<96x32xbf16, #tpu.memory_space<vmem>>, vector<96x32xbf16>
    %c0_58 = arith.constant 0 : index
    %c0_59 = arith.constant 0 : index
    %166 = vector.load %arg10[%c0_58, %c0_59] : memref<128x1xf32, #tpu.memory_space<vmem>>, vector<128x1xf32>
    %167 = vector.shape_cast %164 : vector<32x128xf32> to vector<4x8x128xf32>
    %cst_60 = arith.constant dense<0.000000e+00> : vector<4x128xf32>
    %168 = vector.multi_reduction <add>, %167, %cst_60 [1] : vector<4x8x128xf32> to vector<4x128xf32>
    %169 = vector.shape_cast %168 : vector<4x128xf32> to vector<4x1x128xf32>
    %cst_61 = arith.constant 8.000000e+00 : f32
    %170 = vector.broadcast %cst_61 : f32 to vector<4x1x128xf32>
    %171 = arith.divf %169, %170 : vector<4x1x128xf32>
    %172 = vector.broadcast %171 : vector<4x1x128xf32> to vector<4x8x128xf32>
    %173 = arith.subf %167, %172 : vector<4x8x128xf32>
    %174 = arith.mulf %173, %173 : vector<4x8x128xf32>
    %cst_62 = arith.constant dense<0.000000e+00> : vector<4x128xf32>
    %175 = vector.multi_reduction <add>, %174, %cst_62 [1] : vector<4x8x128xf32> to vector<4x128xf32>
    %176 = vector.shape_cast %175 : vector<4x128xf32> to vector<4x1x128xf32>
    %cst_63 = arith.constant 8.000000e+00 : f32
    %177 = vector.broadcast %cst_63 : f32 to vector<4x1x128xf32>
    %178 = arith.divf %176, %177 : vector<4x1x128xf32>
    %179 = vector.broadcast %171 : vector<4x1x128xf32> to vector<4x8x128xf32>
    %180 = arith.subf %167, %179 : vector<4x8x128xf32>
    %cst_64 = arith.constant 9.99999974E-6 : f32
    %181 = vector.broadcast %cst_64 : f32 to vector<4x1x128xf32>
    %182 = arith.addf %178, %181 : vector<4x1x128xf32>
    %183 = math.rsqrt %182 : vector<4x1x128xf32>
    %184 = vector.broadcast %183 : vector<4x1x128xf32> to vector<4x8x128xf32>
    %185 = arith.mulf %180, %184 : vector<4x8x128xf32>
    %186 = vector.shape_cast %185 : vector<4x8x128xf32> to vector<32x128xf32>
    %187 = arith.truncf %186 : vector<32x128xf32> to vector<32x128xbf16>
    %cst_65 = arith.constant dense<0.000000e+00> : vector<96x128xf32>
    %188 = tpu.matmul %165, %187, %cst_65 {dimension_numbers = #tpu.dot_dimension_numbers<[1], [0], [0], [1], [0, 0, 1, 1], [], []>} : vector<96x32xbf16>, vector<32x128xbf16>, vector<96x128xf32> -> vector<96x128xf32>
    %189 = vector.extract_strided_slice %166 {offsets = [0, 0], sizes = [96, 1], strides = [1, 1]} : vector<128x1xf32> to vector<96x1xf32>
    %190 = vector.broadcast %189 : vector<96x1xf32> to vector<96x128xf32>
    %191 = arith.addf %188, %190 : vector<96x128xf32>
    %192 = vector.extract_strided_slice %191 {offsets = [32, 0], sizes = [16, 128], strides = [1, 1]} : vector<96x128xf32> to vector<16x128xf32>
    %193 = vector.extract_strided_slice %191 {offsets = [0, 0], sizes = [4, 128], strides = [1, 1]} : vector<96x128xf32> to vector<4x128xf32>
    %194 = tpu.concatenate %193, %193, %193, %193 in 0 : vector<4x128xf32>, vector<4x128xf32>, vector<4x128xf32>, vector<4x128xf32> -> vector<16x128xf32>
    %195 = arith.mulf %194, %192 : vector<16x128xf32>
    %196 = vector.extract_strided_slice %191 {offsets = [48, 0], sizes = [16, 128], strides = [1, 1]} : vector<96x128xf32> to vector<16x128xf32>
    %197 = vector.extract_strided_slice %191 {offsets = [16, 0], sizes = [4, 128], strides = [1, 1]} : vector<96x128xf32> to vector<4x128xf32>
    %198 = tpu.concatenate %197, %197, %197, %197 in 0 : vector<4x128xf32>, vector<4x128xf32>, vector<4x128xf32>, vector<4x128xf32> -> vector<16x128xf32>
    %199 = arith.mulf %198, %196 : vector<16x128xf32>
    %200 = arith.addf %195, %199 : vector<16x128xf32>
    %201 = vector.shape_cast %200 : vector<16x128xf32> to vector<4x4x128xf32>
    %cst_66 = arith.constant dense<0xFF800000> : vector<4x128xf32>
    %202 = vector.multi_reduction <maximumf>, %201, %cst_66 [0] : vector<4x4x128xf32> to vector<4x128xf32>
    %203 = vector.shape_cast %202 : vector<4x128xf32> to vector<1x4x128xf32>
    %204 = vector.broadcast %203 : vector<1x4x128xf32> to vector<4x4x128xf32>
    %205 = arith.subf %201, %204 : vector<4x4x128xf32>
    %206 = math.exp %205 : vector<4x4x128xf32>
    %cst_67 = arith.constant dense<0.000000e+00> : vector<4x128xf32>
    %207 = vector.multi_reduction <add>, %206, %cst_67 [0] : vector<4x4x128xf32> to vector<4x128xf32>
    %208 = tpu.reciprocal %207 {approx = true} : vector<4x128xf32> -> vector<4x128xf32>
    %209 = vector.shape_cast %206 : vector<4x4x128xf32> to vector<16x128xf32>
    %210 = vector.extract_strided_slice %191 {offsets = [64, 0], sizes = [16, 128], strides = [1, 1]} : vector<96x128xf32> to vector<16x128xf32>
    %211 = arith.mulf %209, %210 : vector<16x128xf32>
    %212 = vector.shape_cast %211 : vector<16x128xf32> to vector<4x4x128xf32>
    %cst_68 = arith.constant dense<0.000000e+00> : vector<4x128xf32>
    %213 = vector.multi_reduction <add>, %212, %cst_68 [0] : vector<4x4x128xf32> to vector<4x128xf32>
    %214 = arith.mulf %213, %208 : vector<4x128xf32>
    %215 = vector.extract_strided_slice %191 {offsets = [80, 0], sizes = [16, 128], strides = [1, 1]} : vector<96x128xf32> to vector<16x128xf32>
    %216 = arith.mulf %209, %215 : vector<16x128xf32>
    %217 = vector.shape_cast %216 : vector<16x128xf32> to vector<4x4x128xf32>
    %cst_69 = arith.constant dense<0.000000e+00> : vector<4x128xf32>
    %218 = vector.multi_reduction <add>, %217, %cst_69 [0] : vector<4x4x128xf32> to vector<4x128xf32>
    %219 = arith.mulf %218, %208 : vector<4x128xf32>
    %220 = vector.extract_strided_slice %191 {offsets = [32, 0], sizes = [16, 128], strides = [1, 1]} : vector<96x128xf32> to vector<16x128xf32>
    %221 = vector.extract_strided_slice %191 {offsets = [4, 0], sizes = [4, 128], strides = [1, 1]} : vector<96x128xf32> to vector<4x128xf32>
    %222 = tpu.concatenate %221, %221, %221, %221 in 0 : vector<4x128xf32>, vector<4x128xf32>, vector<4x128xf32>, vector<4x128xf32> -> vector<16x128xf32>
    %223 = arith.mulf %222, %220 : vector<16x128xf32>
    %224 = vector.extract_strided_slice %191 {offsets = [48, 0], sizes = [16, 128], strides = [1, 1]} : vector<96x128xf32> to vector<16x128xf32>
    %225 = vector.extract_strided_slice %191 {offsets = [20, 0], sizes = [4, 128], strides = [1, 1]} : vector<96x128xf32> to vector<4x128xf32>
    %226 = tpu.concatenate %225, %225, %225, %225 in 0 : vector<4x128xf32>, vector<4x128xf32>, vector<4x128xf32>, vector<4x128xf32> -> vector<16x128xf32>
    %227 = arith.mulf %226, %224 : vector<16x128xf32>
    %228 = arith.addf %223, %227 : vector<16x128xf32>
    %229 = vector.shape_cast %228 : vector<16x128xf32> to vector<4x4x128xf32>
    %cst_70 = arith.constant dense<0xFF800000> : vector<4x128xf32>
    %230 = vector.multi_reduction <maximumf>, %229, %cst_70 [0] : vector<4x4x128xf32> to vector<4x128xf32>
    %231 = vector.shape_cast %230 : vector<4x128xf32> to vector<1x4x128xf32>
    %232 = vector.broadcast %231 : vector<1x4x128xf32> to vector<4x4x128xf32>
    %233 = arith.subf %229, %232 : vector<4x4x128xf32>
    %234 = math.exp %233 : vector<4x4x128xf32>
    %cst_71 = arith.constant dense<0.000000e+00> : vector<4x128xf32>
    %235 = vector.multi_reduction <add>, %234, %cst_71 [0] : vector<4x4x128xf32> to vector<4x128xf32>
    %236 = tpu.reciprocal %235 {approx = true} : vector<4x128xf32> -> vector<4x128xf32>
    %237 = vector.shape_cast %234 : vector<4x4x128xf32> to vector<16x128xf32>
    %238 = vector.extract_strided_slice %191 {offsets = [64, 0], sizes = [16, 128], strides = [1, 1]} : vector<96x128xf32> to vector<16x128xf32>
    %239 = arith.mulf %237, %238 : vector<16x128xf32>
    %240 = vector.shape_cast %239 : vector<16x128xf32> to vector<4x4x128xf32>
    %cst_72 = arith.constant dense<0.000000e+00> : vector<4x128xf32>
    %241 = vector.multi_reduction <add>, %240, %cst_72 [0] : vector<4x4x128xf32> to vector<4x128xf32>
    %242 = arith.mulf %241, %236 : vector<4x128xf32>
    %243 = vector.extract_strided_slice %191 {offsets = [80, 0], sizes = [16, 128], strides = [1, 1]} : vector<96x128xf32> to vector<16x128xf32>
    %244 = arith.mulf %237, %243 : vector<16x128xf32>
    %245 = vector.shape_cast %244 : vector<16x128xf32> to vector<4x4x128xf32>
    %cst_73 = arith.constant dense<0.000000e+00> : vector<4x128xf32>
    %246 = vector.multi_reduction <add>, %245, %cst_73 [0] : vector<4x4x128xf32> to vector<4x128xf32>
    %247 = arith.mulf %246, %236 : vector<4x128xf32>
    %248 = vector.extract_strided_slice %191 {offsets = [32, 0], sizes = [16, 128], strides = [1, 1]} : vector<96x128xf32> to vector<16x128xf32>
    %249 = vector.extract_strided_slice %191 {offsets = [8, 0], sizes = [4, 128], strides = [1, 1]} : vector<96x128xf32> to vector<4x128xf32>
    %250 = tpu.concatenate %249, %249, %249, %249 in 0 : vector<4x128xf32>, vector<4x128xf32>, vector<4x128xf32>, vector<4x128xf32> -> vector<16x128xf32>
    %251 = arith.mulf %250, %248 : vector<16x128xf32>
    %252 = vector.extract_strided_slice %191 {offsets = [48, 0], sizes = [16, 128], strides = [1, 1]} : vector<96x128xf32> to vector<16x128xf32>
    %253 = vector.extract_strided_slice %191 {offsets = [24, 0], sizes = [4, 128], strides = [1, 1]} : vector<96x128xf32> to vector<4x128xf32>
    %254 = tpu.concatenate %253, %253, %253, %253 in 0 : vector<4x128xf32>, vector<4x128xf32>, vector<4x128xf32>, vector<4x128xf32> -> vector<16x128xf32>
    %255 = arith.mulf %254, %252 : vector<16x128xf32>
    %256 = arith.addf %251, %255 : vector<16x128xf32>
    %257 = vector.shape_cast %256 : vector<16x128xf32> to vector<4x4x128xf32>
    %cst_74 = arith.constant dense<0xFF800000> : vector<4x128xf32>
    %258 = vector.multi_reduction <maximumf>, %257, %cst_74 [0] : vector<4x4x128xf32> to vector<4x128xf32>
    %259 = vector.shape_cast %258 : vector<4x128xf32> to vector<1x4x128xf32>
    %260 = vector.broadcast %259 : vector<1x4x128xf32> to vector<4x4x128xf32>
    %261 = arith.subf %257, %260 : vector<4x4x128xf32>
    %262 = math.exp %261 : vector<4x4x128xf32>
    %cst_75 = arith.constant dense<0.000000e+00> : vector<4x128xf32>
    %263 = vector.multi_reduction <add>, %262, %cst_75 [0] : vector<4x4x128xf32> to vector<4x128xf32>
    %264 = tpu.reciprocal %263 {approx = true} : vector<4x128xf32> -> vector<4x128xf32>
    %265 = vector.shape_cast %262 : vector<4x4x128xf32> to vector<16x128xf32>
    %266 = vector.extract_strided_slice %191 {offsets = [64, 0], sizes = [16, 128], strides = [1, 1]} : vector<96x128xf32> to vector<16x128xf32>
    %267 = arith.mulf %265, %266 : vector<16x128xf32>
    %268 = vector.shape_cast %267 : vector<16x128xf32> to vector<4x4x128xf32>
    %cst_76 = arith.constant dense<0.000000e+00> : vector<4x128xf32>
    %269 = vector.multi_reduction <add>, %268, %cst_76 [0] : vector<4x4x128xf32> to vector<4x128xf32>
    %270 = arith.mulf %269, %264 : vector<4x128xf32>
    %271 = vector.extract_strided_slice %191 {offsets = [80, 0], sizes = [16, 128], strides = [1, 1]} : vector<96x128xf32> to vector<16x128xf32>
    %272 = arith.mulf %265, %271 : vector<16x128xf32>
    %273 = vector.shape_cast %272 : vector<16x128xf32> to vector<4x4x128xf32>
    %cst_77 = arith.constant dense<0.000000e+00> : vector<4x128xf32>
    %274 = vector.multi_reduction <add>, %273, %cst_77 [0] : vector<4x4x128xf32> to vector<4x128xf32>
    %275 = arith.mulf %274, %264 : vector<4x128xf32>
    %276 = vector.extract_strided_slice %191 {offsets = [32, 0], sizes = [16, 128], strides = [1, 1]} : vector<96x128xf32> to vector<16x128xf32>
    %277 = vector.extract_strided_slice %191 {offsets = [12, 0], sizes = [4, 128], strides = [1, 1]} : vector<96x128xf32> to vector<4x128xf32>
    %278 = tpu.concatenate %277, %277, %277, %277 in 0 : vector<4x128xf32>, vector<4x128xf32>, vector<4x128xf32>, vector<4x128xf32> -> vector<16x128xf32>
    %279 = arith.mulf %278, %276 : vector<16x128xf32>
    %280 = vector.extract_strided_slice %191 {offsets = [48, 0], sizes = [16, 128], strides = [1, 1]} : vector<96x128xf32> to vector<16x128xf32>
    %281 = vector.extract_strided_slice %191 {offsets = [28, 0], sizes = [4, 128], strides = [1, 1]} : vector<96x128xf32> to vector<4x128xf32>
    %282 = tpu.concatenate %281, %281, %281, %281 in 0 : vector<4x128xf32>, vector<4x128xf32>, vector<4x128xf32>, vector<4x128xf32> -> vector<16x128xf32>
    %283 = arith.mulf %282, %280 : vector<16x128xf32>
    %284 = arith.addf %279, %283 : vector<16x128xf32>
    %285 = vector.shape_cast %284 : vector<16x128xf32> to vector<4x4x128xf32>
    %cst_78 = arith.constant dense<0xFF800000> : vector<4x128xf32>
    %286 = vector.multi_reduction <maximumf>, %285, %cst_78 [0] : vector<4x4x128xf32> to vector<4x128xf32>
    %287 = vector.shape_cast %286 : vector<4x128xf32> to vector<1x4x128xf32>
    %288 = vector.broadcast %287 : vector<1x4x128xf32> to vector<4x4x128xf32>
    %289 = arith.subf %285, %288 : vector<4x4x128xf32>
    %290 = math.exp %289 : vector<4x4x128xf32>
    %cst_79 = arith.constant dense<0.000000e+00> : vector<4x128xf32>
    %291 = vector.multi_reduction <add>, %290, %cst_79 [0] : vector<4x4x128xf32> to vector<4x128xf32>
    %292 = tpu.reciprocal %291 {approx = true} : vector<4x128xf32> -> vector<4x128xf32>
    %293 = vector.shape_cast %290 : vector<4x4x128xf32> to vector<16x128xf32>
    %294 = vector.extract_strided_slice %191 {offsets = [64, 0], sizes = [16, 128], strides = [1, 1]} : vector<96x128xf32> to vector<16x128xf32>
    %295 = arith.mulf %293, %294 : vector<16x128xf32>
    %296 = vector.shape_cast %295 : vector<16x128xf32> to vector<4x4x128xf32>
    %cst_80 = arith.constant dense<0.000000e+00> : vector<4x128xf32>
    %297 = vector.multi_reduction <add>, %296, %cst_80 [0] : vector<4x4x128xf32> to vector<4x128xf32>
    %298 = arith.mulf %297, %292 : vector<4x128xf32>
    %299 = vector.extract_strided_slice %191 {offsets = [80, 0], sizes = [16, 128], strides = [1, 1]} : vector<96x128xf32> to vector<16x128xf32>
    %300 = arith.mulf %293, %299 : vector<16x128xf32>
    %301 = vector.shape_cast %300 : vector<16x128xf32> to vector<4x4x128xf32>
    %cst_81 = arith.constant dense<0.000000e+00> : vector<4x128xf32>
    %302 = vector.multi_reduction <add>, %301, %cst_81 [0] : vector<4x4x128xf32> to vector<4x128xf32>
    %303 = arith.mulf %302, %292 : vector<4x128xf32>
    %304 = tpu.concatenate %214, %219, %242, %247, %270, %275, %298, %303 in 0 : vector<4x128xf32>, vector<4x128xf32>, vector<4x128xf32>, vector<4x128xf32>, vector<4x128xf32>, vector<4x128xf32>, vector<4x128xf32>, vector<4x128xf32> -> vector<32x128xf32>
    %c0_82 = arith.constant 0 : index
    %c0_83 = arith.constant 0 : index
    %305 = vector.load %arg9[%c0_82, %c0_83] : memref<32x32xbf16, #tpu.memory_space<vmem>>, vector<32x32xbf16>
    %306 = arith.truncf %304 : vector<32x128xf32> to vector<32x128xbf16>
    %cst_84 = arith.constant dense<0.000000e+00> : vector<32x128xf32>
    %307 = tpu.matmul %305, %306, %cst_84 {dimension_numbers = #tpu.dot_dimension_numbers<[1], [0], [0], [1], [0, 0, 1, 1], [], []>} : vector<32x32xbf16>, vector<32x128xbf16>, vector<32x128xf32> -> vector<32x128xf32>
    %308 = vector.extract_strided_slice %166 {offsets = [96, 0], sizes = [32, 1], strides = [1, 1]} : vector<128x1xf32> to vector<32x1xf32>
    %309 = vector.broadcast %308 : vector<32x1xf32> to vector<32x128xf32>
    %310 = arith.addf %307, %309 : vector<32x128xf32>
    %311 = arith.addf %164, %310 : vector<32x128xf32>
    %c0_85 = arith.constant 0 : index
    %c0_86 = arith.constant 0 : index
    %312 = vector.load %arg11[%c0_85, %c0_86] : memref<128x32xbf16, #tpu.memory_space<vmem>>, vector<128x32xbf16>
    %c0_87 = arith.constant 0 : index
    %c0_88 = arith.constant 0 : index
    %313 = vector.load %arg12[%c0_87, %c0_88] : memref<32x128xbf16, #tpu.memory_space<vmem>>, vector<32x128xbf16>
    %c0_89 = arith.constant 0 : index
    %c0_90 = arith.constant 0 : index
    %314 = vector.load %arg13[%c0_89, %c0_90] : memref<160x1xf32, #tpu.memory_space<vmem>>, vector<160x1xf32>
    %cst_91 = arith.constant dense<0.000000e+00> : vector<128xf32>
    %315 = vector.multi_reduction <add>, %311, %cst_91 [0] : vector<32x128xf32> to vector<128xf32>
    %316 = vector.shape_cast %315 : vector<128xf32> to vector<1x128xf32>
    %cst_92 = arith.constant 3.200000e+01 : f32
    %317 = vector.broadcast %cst_92 : f32 to vector<1x128xf32>
    %318 = arith.divf %316, %317 : vector<1x128xf32>
    %319 = vector.broadcast %318 : vector<1x128xf32> to vector<32x128xf32>
    %320 = arith.subf %311, %319 : vector<32x128xf32>
    %321 = arith.mulf %320, %320 : vector<32x128xf32>
    %cst_93 = arith.constant dense<0.000000e+00> : vector<128xf32>
    %322 = vector.multi_reduction <add>, %321, %cst_93 [0] : vector<32x128xf32> to vector<128xf32>
    %323 = vector.shape_cast %322 : vector<128xf32> to vector<1x128xf32>
    %cst_94 = arith.constant 3.200000e+01 : f32
    %324 = vector.broadcast %cst_94 : f32 to vector<1x128xf32>
    %325 = arith.divf %323, %324 : vector<1x128xf32>
    %326 = vector.broadcast %318 : vector<1x128xf32> to vector<32x128xf32>
    %327 = arith.subf %311, %326 : vector<32x128xf32>
    %cst_95 = arith.constant 9.99999974E-6 : f32
    %328 = vector.broadcast %cst_95 : f32 to vector<1x128xf32>
    %329 = arith.addf %325, %328 : vector<1x128xf32>
    %330 = math.rsqrt %329 : vector<1x128xf32>
    %331 = vector.broadcast %330 : vector<1x128xf32> to vector<32x128xf32>
    %332 = arith.mulf %327, %331 : vector<32x128xf32>
    %333 = arith.truncf %332 : vector<32x128xf32> to vector<32x128xbf16>
    %cst_96 = arith.constant dense<0.000000e+00> : vector<128x128xf32>
    %334 = tpu.matmul %312, %333, %cst_96 {dimension_numbers = #tpu.dot_dimension_numbers<[1], [0], [0], [1], [0, 0, 1, 1], [], []>} : vector<128x32xbf16>, vector<32x128xbf16>, vector<128x128xf32> -> vector<128x128xf32>
    %335 = vector.extract_strided_slice %314 {offsets = [0, 0], sizes = [128, 1], strides = [1, 1]} : vector<160x1xf32> to vector<128x1xf32>
    %336 = vector.broadcast %335 : vector<128x1xf32> to vector<128x128xf32>
    %337 = arith.addf %334, %336 : vector<128x128xf32>
    %cst_97 = arith.constant 5.000000e-01 : f32
    %338 = vector.broadcast %cst_97 : f32 to vector<128x128xf32>
    %339 = arith.mulf %338, %337 : vector<128x128xf32>
    %cst_98 = arith.constant 4.471500e-02 : f32
    %340 = vector.broadcast %cst_98 : f32 to vector<128x128xf32>
    %341 = arith.mulf %340, %337 : vector<128x128xf32>
    %342 = arith.mulf %341, %337 : vector<128x128xf32>
    %343 = arith.mulf %342, %337 : vector<128x128xf32>
    %344 = arith.addf %337, %343 : vector<128x128xf32>
    %cst_99 = arith.constant 0.797884583 : f32
    %345 = vector.broadcast %cst_99 : f32 to vector<128x128xf32>
    %346 = arith.mulf %345, %344 : vector<128x128xf32>
    %347 = math.tanh %346 : vector<128x128xf32>
    %cst_100 = arith.constant 1.000000e+00 : f32
    %348 = vector.broadcast %cst_100 : f32 to vector<128x128xf32>
    %349 = arith.addf %348, %347 : vector<128x128xf32>
    %350 = arith.mulf %339, %349 : vector<128x128xf32>
    %351 = arith.truncf %350 : vector<128x128xf32> to vector<128x128xbf16>
    %cst_101 = arith.constant dense<0.000000e+00> : vector<32x128xf32>
    %352 = tpu.matmul %313, %351, %cst_101 {dimension_numbers = #tpu.dot_dimension_numbers<[1], [0], [0], [1], [0, 0, 1, 1], [], []>} : vector<32x128xbf16>, vector<128x128xbf16>, vector<32x128xf32> -> vector<32x128xf32>
    %353 = vector.extract_strided_slice %314 {offsets = [128, 0], sizes = [32, 1], strides = [1, 1]} : vector<160x1xf32> to vector<32x1xf32>
    %354 = vector.broadcast %353 : vector<32x1xf32> to vector<32x128xf32>
    %355 = arith.addf %352, %354 : vector<32x128xf32>
    %356 = arith.addf %311, %355 : vector<32x128xf32>
    %357 = arith.addf %356, %1 : vector<32x128xf32>
    %c0_102 = arith.constant 0 : index
    %c0_103 = arith.constant 0 : index
    %c0_104 = arith.constant 0 : index
    %358 = vector.load %arg14[%c0_102, %c0_103, %c0_104] : memref<1x32x128xf32, #tpu.memory_space<vmem>>, vector<1x32x128xf32>
    %359 = vector.shape_cast %358 : vector<1x32x128xf32> to vector<32x128xf32>
    %360 = vector.shape_cast %357 : vector<32x128xf32> to vector<1x32x128xf32>
    tpu.vector_store %arg14[%c0_102, %c0_103, %c0_104], %360 {strides = array<i32>} : memref<1x32x128xf32, #tpu.memory_space<vmem>>, vector<1x32x128xf32>,
    return
  }
  func.func @transform_0(%arg0: i32) -> (i32, i32, i32) {
    %c0_i32 = arith.constant 0 : i32
    %c0_i32_0 = arith.constant 0 : i32
    %c0_i32_1 = arith.constant 0 : i32
    return %arg0, %c0_i32, %c0_i32_0 : i32, i32, i32
  }
  func.func @transform_1(%arg0: i32) -> (i32, i32) {
    %c0_i32 = arith.constant 0 : i32
    %c0_i32_0 = arith.constant 0 : i32
    %c0_i32_1 = arith.constant 0 : i32
    return %c0_i32, %c0_i32_0 : i32, i32
  }
  func.func @transform_2(%arg0: i32) -> (i32, i32) {
    %c0_i32 = arith.constant 0 : i32
    %c0_i32_0 = arith.constant 0 : i32
    %c0_i32_1 = arith.constant 0 : i32
    return %c0_i32, %c0_i32_0 : i32, i32
  }
  func.func @transform_3(%arg0: i32) -> (i32, i32) {
    %c0_i32 = arith.constant 0 : i32
    %c0_i32_0 = arith.constant 0 : i32
    %c0_i32_1 = arith.constant 0 : i32
    return %c0_i32, %c0_i32_0 : i32, i32
  }
  func.func @transform_4(%arg0: i32) -> (i32, i32) {
    %c0_i32 = arith.constant 0 : i32
    %c0_i32_0 = arith.constant 0 : i32
    %c0_i32_1 = arith.constant 0 : i32
    return %c0_i32, %c0_i32_0 : i32, i32
  }
  func.func @transform_5(%arg0: i32) -> (i32, i32) {
    %c0_i32 = arith.constant 0 : i32
    %c0_i32_0 = arith.constant 0 : i32
    %c0_i32_1 = arith.constant 0 : i32
    return %c0_i32, %c0_i32_0 : i32, i32
  }
  func.func @transform_6(%arg0: i32) -> (i32, i32) {
    %c0_i32 = arith.constant 0 : i32
    %c0_i32_0 = arith.constant 0 : i32
    %c0_i32_1 = arith.constant 0 : i32
    return %c0_i32, %c0_i32_0 : i32, i32
  }
  func.func @transform_7(%arg0: i32) -> (i32, i32) {
    %c0_i32 = arith.constant 0 : i32
    %c0_i32_0 = arith.constant 0 : i32
    %c0_i32_1 = arith.constant 0 : i32
    return %c0_i32, %c0_i32_0 : i32, i32
  }
  func.func @transform_8(%arg0: i32) -> (i32, i32) {
    %c0_i32 = arith.constant 0 : i32
    %c0_i32_0 = arith.constant 0 : i32
    %c0_i32_1 = arith.constant 0 : i32
    return %c0_i32, %c0_i32_0 : i32, i32
  }
  func.func @transform_9(%arg0: i32) -> (i32, i32) {
    %c0_i32 = arith.constant 0 : i32
    %c0_i32_0 = arith.constant 0 : i32
    %c0_i32_1 = arith.constant 0 : i32
    return %c0_i32, %c0_i32_0 : i32, i32
  }
  func.func @transform_10(%arg0: i32) -> (i32, i32) {
    %c0_i32 = arith.constant 0 : i32
    %c0_i32_0 = arith.constant 0 : i32
    %c0_i32_1 = arith.constant 0 : i32
    return %c0_i32, %c0_i32_0 : i32, i32
  }
  func.func @transform_11(%arg0: i32) -> (i32, i32) {
    %c0_i32 = arith.constant 0 : i32
    %c0_i32_0 = arith.constant 0 : i32
    %c0_i32_1 = arith.constant 0 : i32
    return %c0_i32, %c0_i32_0 : i32, i32
  }
  func.func @transform_12(%arg0: i32) -> (i32, i32) {
    %c0_i32 = arith.constant 0 : i32
    %c0_i32_0 = arith.constant 0 : i32
    %c0_i32_1 = arith.constant 0 : i32
    return %c0_i32, %c0_i32_0 : i32, i32
  }
  func.func @transform_13(%arg0: i32) -> (i32, i32, i32) {
    %c0_i32 = arith.constant 0 : i32
    %c0_i32_0 = arith.constant 0 : i32
    %c0_i32_1 = arith.constant 0 : i32
    return %arg0, %c0_i32, %c0_i32_0 : i32, i32, i32
  }
}

</mosaic_0001>

<llo_original>
// kernel: pallas_forward.1
$region0: #{pallas_forward.1}
  #allocation0 [shape = 'u32[]', space=smem, size = 0x4, offset = 0x4, fixed_abs, tag = 'smem constant byte address 0x4 - core index']
  #allocation1 [shape = 'u32[144,128]{1,0:T(1,128)}', space=vmem, size = 0x12000, scoped, tag = 'internal scratch']
  %s0 = inlined_call_operand.vmem [shape: f32[2,32,128], index: 0, kind: input, shape index: {}]
  %s1 = inlined_call_operand.vmem [shape: f32[128,128], index: 1, kind: input, shape index: {}]
  %s2 = inlined_call_operand.vmem [shape: bf16[128,32], index: 2, kind: input, shape index: {}]
  %s3 = inlined_call_operand.vmem [shape: f32[128,1], index: 3, kind: input, shape index: {}]
  %s4 = inlined_call_operand.vmem [shape: bf16[128,32], index: 4, kind: input, shape index: {}]
  %s5 = inlined_call_operand.vmem [shape: bf16[32,128], index: 5, kind: input, shape index: {}]
  %s6 = inlined_call_operand.vmem [shape: f32[160,1], index: 6, kind: input, shape index: {}]
  %s7 = inlined_call_operand.vmem [shape: bf16[96,32], index: 7, kind: input, shape index: {}]
  %s8 = inlined_call_operand.vmem [shape: bf16[32,32], index: 8, kind: input, shape index: {}]
  %s9 = inlined_call_operand.vmem [shape: f32[128,1], index: 9, kind: input, shape index: {}]
  %s10 = inlined_call_operand.vmem [shape: bf16[128,32], index: 10, kind: input, shape index: {}]
  %s11 = inlined_call_operand.vmem [shape: bf16[32,128], index: 11, kind: input, shape index: {}]
  %s12 = inlined_call_operand.vmem [shape: f32[160,1], index: 12, kind: input, shape index: {}]
  %s13 = inlined_call_operand.vmem [shape: f32[2,32,128], index: 13, kind: output, shape index: {}]
  %s14 = sld [smem:[#allocation0]]
  $region85: #{pallas_forward.1} parent=0
    _
  %s16 = ssub.s32 1, %s14
  %s17 = scalar_select 0, %s16, %s14
  loop: start=0, step=1, limit=4
  $region2: #{pallas_forward.1} parent=0 // loop_pre_header
    _
  $region3: #{pallas_forward.1} parent=0 // loop_header
    %s19 = sphi 0, %s23
    %p20 = scmp.ge.s32.totalorder %s19, 4
    %s29 = sphi 0, %s31
    %s32 = sphi 0, %s29
    %s33 = sphi 0, %s32
    %s49 = sphi 0, %s33
    %s53 = sphi 0, %s53
    %s55 = sphi 0, %s53
    %s56 = sphi 0, %s55
    %s70 = sphi 0, %s56
    %s74 = sphi 0, %s74
    %s76 = sphi 0, %s74
    %s77 = sphi 0, %s76
    %s91 = sphi 0, %s77
    %s95 = sphi 0, %s95
    %s97 = sphi 0, %s95
    %s98 = sphi 0, %s97
    %s112 = sphi 0, %s98
    %s116 = sphi 0, %s116
    %s118 = sphi 0, %s116
    %s119 = sphi 0, %s118
    %s133 = sphi 0, %s119
    %s137 = sphi 0, %s137
    %s139 = sphi 0, %s137
    %s140 = sphi 0, %s139
    %s154 = sphi 0, %s140
    %s158 = sphi 0, %s158
    %s160 = sphi 0, %s158
    %s161 = sphi 0, %s160
    %s175 = sphi 0, %s161
    %s179 = sphi 0, %s179
    %s181 = sphi 0, %s179
    %s182 = sphi 0, %s181
    %s196 = sphi 0, %s182
    %s200 = sphi 0, %s200
    %s202 = sphi 0, %s200
    %s203 = sphi 0, %s202
    %s217 = sphi 0, %s203
    %s221 = sphi 0, %s221
    %s223 = sphi 0, %s221
    %s224 = sphi 0, %s223
    %s238 = sphi 0, %s224
    %s242 = sphi 0, %s242
    %s244 = sphi 0, %s242
    %s245 = sphi 0, %s244
    %s259 = sphi 0, %s245
    %s263 = sphi 0, %s263
    %s265 = sphi 0, %s263
    %s266 = sphi 0, %s265
    %s280 = sphi 0, %s266
    %s284 = sphi 0, %s284
    %s286 = sphi 0, %s284
    %s287 = sphi 0, %s286
    %s301 = sphi 0, %s287
    %s307 = sphi 0, %s309
    %s310 = sphi 0, %s307
    %s311 = sphi 0, %s310
    %s327 = sphi 0, %s311
  $region4: #{pallas_forward.1} parent=0 // loop_header_branch
    %22 = sbr.rel (%p20) target = $region8
  $region5: #{pallas_forward.1} parent=0 // loop_body
    %s24 = ssub.s32 %s19, 1
    %s25 = ssub.s32 %s19, 2
    %s26 = sadd.s32 %s19, 1
    %s27 = ssub.s32 %s19, %s26
    %p28 = scmp.eq.s32.totalorder %s27, 0
    %s30 = sadd.s32 %s29, 1
    %s31 = scalar_select %p28, %s29, %s30
    %p34 = pneg %p28
    %p35 = scmp.eq.s32.totalorder %s19, 1
    %p36 = por %p34, %p35
    %p37 = scmp.ne.s32.totalorder %s29, %s32
    %p38 = scmp.eq.s32.totalorder %s19, 0
    %p39 = por %p37, %p38
    %p40 = scmp.ne.s32.totalorder %s29, %s32
    %p41 = scmp.eq.s32.totalorder %s24, 1
    %p42 = por %p40, %p41
    %p43 = scmp.ne.s32.totalorder %s32, %s33
    %p44 = scmp.eq.s32.totalorder %s24, 0
    %p45 = por %p43, %p44
    %p46 = scmp.ne.s32.totalorder %s32, %s33
    %p47 = scmp.eq.s32.totalorder %s25, 1
    %p48 = por %p46, %p47
    %p50 = scmp.ne.s32.totalorder %s33, %s49
    %p51 = scmp.eq.s32.totalorder %s25, 0
    %p52 = por %p50, %p51
    %s54 = sadd.s32 %s53, 1
    %p57 = scmp.eq.s32.totalorder %s19, 1
    %p58 = scmp.ne.s32.totalorder %s53, %s55
    %p59 = scmp.eq.s32.totalorder %s19, 0
    %p60 = por %p58, %p59
    %p61 = scmp.ne.s32.totalorder %s53, %s55
    %p62 = scmp.eq.s32.totalorder %s24, 1
    %p63 = por %p61, %p62
    %p64 = scmp.ne.s32.totalorder %s55, %s56
    %p65 = scmp.eq.s32.totalorder %s24, 0
    %p66 = por %p64, %p65
    %p67 = scmp.ne.s32.totalorder %s55, %s56
    %p68 = scmp.eq.s32.totalorder %s25, 1
    %p69 = por %p67, %p68
    %p71 = scmp.ne.s32.totalorder %s56, %s70
    %p72 = scmp.eq.s32.totalorder %s25, 0
    %p73 = por %p71, %p72
    %s75 = sadd.s32 %s74, 1
    %p78 = scmp.eq.s32.totalorder %s19, 1
    %p79 = scmp.ne.s32.totalorder %s74, %s76
    %p80 = scmp.eq.s32.totalorder %s19, 0
    %p81 = por %p79, %p80
    %p82 = scmp.ne.s32.totalorder %s74, %s76
    %p83 = scmp.eq.s32.totalorder %s24, 1
    %p84 = por %p82, %p83
    %p85 = scmp.ne.s32.totalorder %s76, %s77
    %p86 = scmp.eq.s32.totalorder %s24, 0
    %p87 = por %p85, %p86
    %p88 = scmp.ne.s32.totalorder %s76, %s77
    %p89 = scmp.eq.s32.totalorder %s25, 1
    %p90 = por %p88, %p89
    %p92 = scmp.ne.s32.totalorder %s77, %s91
    %p93 = scmp.eq.s32.totalorder %s25, 0
    %p94 = por %p92, %p93
    %s96 = sadd.s32 %s95, 1
    %p99 = scmp.eq.s32.totalorder %s19, 1
    %p100 = scmp.ne.s32.totalorder %s95, %s97
    %p101 = scmp.eq.s32.totalorder %s19, 0
    %p102 = por %p100, %p101
    %p103 = scmp.ne.s32.totalorder %s95, %s97
    %p104 = scmp.eq.s32.totalorder %s24, 1
    %p105 = por %p103, %p104
    %p106 = scmp.ne.s32.totalorder %s97, %s98
    %p107 = scmp.eq.s32.totalorder %s24, 0
    %p108 = por %p106, %p107
    %p109 = scmp.ne.s32.totalorder %s97, %s98
    %p110 = scmp.eq.s32.totalorder %s25, 1
    %p111 = por %p109, %p110
    %p113 = scmp.ne.s32.totalorder %s98, %s112
    %p114 = scmp.eq.s32.totalorder %s25, 0
    %p115 = por %p113, %p114
    %s117 = sadd.s32 %s116, 1
    %p120 = scmp.eq.s32.totalorder %s19, 1
    %p121 = scmp.ne.s32.totalorder %s116, %s118
    %p122 = scmp.eq.s32.totalorder %s19, 0
    %p123 = por %p121, %p122
    %p124 = scmp.ne.s32.totalorder %s116, %s118
    %p125 = scmp.eq.s32.totalorder %s24, 1
    %p126 = por %p124, %p125
    %p127 = scmp.ne.s32.totalorder %s118, %s119
    %p128 = scmp.eq.s32.totalorder %s24, 0
    %p129 = por %p127, %p128
    %p130 = scmp.ne.s32.totalorder %s118, %s119
    %p131 = scmp.eq.s32.totalorder %s25, 1
    %p132 = por %p130, %p131
    %p134 = scmp.ne.s32.totalorder %s119, %s133
    %p135 = scmp.eq.s32.totalorder %s25, 0
    %p136 = por %p134, %p135
    %s138 = sadd.s32 %s137, 1
    %p141 = scmp.eq.s32.totalorder %s19, 1
    %p142 = scmp.ne.s32.totalorder %s137, %s139
    %p143 = scmp.eq.s32.totalorder %s19, 0
    %p144 = por %p142, %p143
    %p145 = scmp.ne.s32.totalorder %s137, %s139
    %p146 = scmp.eq.s32.totalorder %s24, 1
    %p147 = por %p145, %p146
    %p148 = scmp.ne.s32.totalorder %s139, %s140
    %p149 = scmp.eq.s32.totalorder %s24, 0
    %p150 = por %p148, %p149
    %p151 = scmp.ne.s32.totalorder %s139, %s140
    %p152 = scmp.eq.s32.totalorder %s25, 1
    %p153 = por %p151, %p152
    %p155 = scmp.ne.s32.totalorder %s140, %s154
    %p156 = scmp.eq.s32.totalorder %s25, 0
    %p157 = por %p155, %p156
    %s159 = sadd.s32 %s158, 1
    %p162 = scmp.eq.s32.totalorder %s19, 1
    %p163 = scmp.ne.s32.totalorder %s158, %s160
    %p164 = scmp.eq.s32.totalorder %s19, 0
    %p165 = por %p163, %p164
    %p166 = scmp.ne.s32.totalorder %s158, %s160
    %p167 = scmp.eq.s32.totalorder %s24, 1
    %p168 = por %p166, %p167
    %p169 = scmp.ne.s32.totalorder %s160, %s161
    %p170 = scmp.eq.s32.totalorder %s24, 0
    %p171 = por %p169, %p170
    %p172 = scmp.ne.s32.totalorder %s160, %s161
    %p173 = scmp.eq.s32.totalorder %s25, 1
    %p174 = por %p172, %p173
    %p176 = scmp.ne.s32.totalorder %s161, %s175
    %p177 = scmp.eq.s32.totalorder %s25, 0
    %p178 = por %p176, %p177
    %s180 = sadd.s32 %s179, 1
    %p183 = scmp.eq.s32.totalorder %s19, 1
    %p184 = scmp.ne.s32.totalorder %s179, %s181
    %p185 = scmp.eq.s32.totalorder %s19, 0
    %p186 = por %p184, %p185
    %p187 = scmp.ne.s32.totalorder %s179, %s181
    %p188 = scmp.eq.s32.totalorder %s24, 1
    %p189 = por %p187, %p188
    %p190 = scmp.ne.s32.totalorder %s181, %s182
    %p191 = scmp.eq.s32.totalorder %s24, 0
    %p192 = por %p190, %p191
    %p193 = scmp.ne.s32.totalorder %s181, %s182
    %p194 = scmp.eq.s32.totalorder %s25, 1
    %p195 = por %p193, %p194
    %p197 = scmp.ne.s32.totalorder %s182, %s196
    %p198 = scmp.eq.s32.totalorder %s25, 0
    %p199 = por %p197, %p198
    %s201 = sadd.s32 %s200, 1
    %p204 = scmp.eq.s32.totalorder %s19, 1
    %p205 = scmp.ne.s32.totalorder %s200, %s202
    %p206 = scmp.eq.s32.totalorder %s19, 0
    %p207 = por %p205, %p206
    %p208 = scmp.ne.s32.totalorder %s200, %s202
    %p209 = scmp.eq.s32.totalorder %s24, 1
    %p210 = por %p208, %p209
    %p211 = scmp.ne.s32.totalorder %s202, %s203
    %p212 = scmp.eq.s32.totalorder %s24, 0
    %p213 = por %p211, %p212
    %p214 = scmp.ne.s32.totalorder %s202, %s203
    %p215 = scmp.eq.s32.totalorder %s25, 1
    %p216 = por %p214, %p215
    %p218 = scmp.ne.s32.totalorder %s203, %s217
    %p219 = scmp.eq.s32.totalorder %s25, 0
    %p220 = por %p218, %p219
    %s222 = sadd.s32 %s221, 1
    %p225 = scmp.eq.s32.totalorder %s19, 1
    %p226 = scmp.ne.s32.totalorder %s221, %s223
    %p227 = scmp.eq.s32.totalorder %s19, 0
    %p228 = por %p226, %p227
    %p229 = scmp.ne.s32.totalorder %s221, %s223
    %p230 = scmp.eq.s32.totalorder %s24, 1
    %p231 = por %p229, %p230
    %p232 = scmp.ne.s32.totalorder %s223, %s224
    %p233 = scmp.eq.s32.totalorder %s24, 0
    %p234 = por %p232, %p233
    %p235 = scmp.ne.s32.totalorder %s223, %s224
    %p236 = scmp.eq.s32.totalorder %s25, 1
    %p237 = por %p235, %p236
    %p239 = scmp.ne.s32.totalorder %s224, %s238
    %p240 = scmp.eq.s32.totalorder %s25, 0
    %p241 = por %p239, %p240
    %s243 = sadd.s32 %s242, 1
    %p246 = scmp.eq.s32.totalorder %s19, 1
    %p247 = scmp.ne.s32.totalorder %s242, %s244
    %p248 = scmp.eq.s32.totalorder %s19, 0
    %p249 = por %p247, %p248
    %p250 = scmp.ne.s32.totalorder %s242, %s244
    %p251 = scmp.eq.s32.totalorder %s24, 1
    %p252 = por %p250, %p251
    %p253 = scmp.ne.s32.totalorder %s244, %s245
    %p254 = scmp.eq.s32.totalorder %s24, 0
    %p255 = por %p253, %p254
    %p256 = scmp.ne.s32.totalorder %s244, %s245
    %p257 = scmp.eq.s32.totalorder %s25, 1
    %p258 = por %p256, %p257
    %p260 = scmp.ne.s32.totalorder %s245, %s259
    %p261 = scmp.eq.s32.totalorder %s25, 0
    %p262 = por %p260, %p261
    %s264 = sadd.s32 %s263, 1
    %p267 = scmp.eq.s32.totalorder %s19, 1
    %p268 = scmp.ne.s32.totalorder %s263, %s265
    %p269 = scmp.eq.s32.totalorder %s19, 0
    %p270 = por %p268, %p269
    %p271 = scmp.ne.s32.totalorder %s263, %s265
    %p272 = scmp.eq.s32.totalorder %s24, 1
    %p273 = por %p271, %p272
    %p274 = scmp.ne.s32.totalorder %s265, %s266
    %p275 = scmp.eq.s32.totalorder %s24, 0
    %p276 = por %p274, %p275
    %p277 = scmp.ne.s32.totalorder %s265, %s266
    %p278 = scmp.eq.s32.totalorder %s25, 1
    %p279 = por %p277, %p278
    %p281 = scmp.ne.s32.totalorder %s266, %s280
    %p282 = scmp.eq.s32.totalorder %s25, 0
    %p283 = por %p281, %p282
    %s285 = sadd.s32 %s284, 1
    %p288 = scmp.eq.s32.totalorder %s19, 1
    %p289 = scmp.ne.s32.totalorder %s284, %s286
    %p290 = scmp.eq.s32.totalorder %s19, 0
    %p291 = por %p289, %p290
    %p292 = scmp.ne.s32.totalorder %s284, %s286
    %p293 = scmp.eq.s32.totalorder %s24, 1
    %p294 = por %p292, %p293
    %p295 = scmp.ne.s32.totalorder %s286, %s287
    %p296 = scmp.eq.s32.totalorder %s24, 0
    %p297 = por %p295, %p296
    %p298 = scmp.ne.s32.totalorder %s286, %s287
    %p299 = scmp.eq.s32.totalorder %s25, 1
    %p300 = por %p298, %p299
    %p302 = scmp.ne.s32.totalorder %s287, %s301
    %p303 = scmp.eq.s32.totalorder %s25, 0
    %p304 = por %p302, %p303
    %s305 = ssub.s32 %s19, %s26
    %p306 = scmp.eq.s32.totalorder %s305, 0
    %s308 = sadd.s32 %s307, 1
    %s309 = scalar_select %p306, %s307, %s308
    %p312 = pneg %p306
    %p313 = scmp.eq.s32.totalorder %s19, 1
    %p314 = por %p312, %p313
    %p315 = scmp.ne.s32.totalorder %s307, %s310
    %p316 = scmp.eq.s32.totalorder %s19, 0
    %p317 = por %p315, %p316
    %p318 = scmp.ne.s32.totalorder %s307, %s310
    %p319 = scmp.eq.s32.totalorder %s24, 1
    %p320 = por %p318, %p319
    %p321 = scmp.ne.s32.totalorder %s310, %s311
    %p322 = scmp.eq.s32.totalorder %s24, 0
    %p323 = por %p321, %p322
    %p324 = scmp.ne.s32.totalorder %s310, %s311
    %p325 = scmp.eq.s32.totalorder %s25, 1
    %p326 = por %p324, %p325
    %p328 = scmp.ne.s32.totalorder %s311, %s327
    %p329 = scmp.eq.s32.totalorder %s25, 0
    %p330 = por %p328, %p329
    %p331 = scmp.le.s32.totalorder 1, %s19
    %p332 = scmp.lt.s32.totalorder %s19, 3
    %p333 = pnand %p331, %p332
    %p334 = pneg %p333
    // Predicated region
    $region9: #{pallas_forward.1} parent=5 // pred_check
      _
    $region10: #{pallas_forward.1} parent=5 // pred_check_branch
      %336 = sbr.rel (%p333) target = $region12
    $region11: #{pallas_forward.1} parent=5 // pred_region
      %s337 = ssub.s32 %s19, 1
      // Predicated region
      $region13: #{pallas_forward.1} parent=11 // pred_check
        %p338 = pneg %p66
      $region14: #{pallas_forward.1} parent=11 // pred_check_branch
        %340 = sbr.rel (%p338) target = $region16
      $region15: #{pallas_forward.1} parent=11 // pred_region
        _
      $region16: #{pallas_forward.1} parent=11 // pred_fallthru
        _
      // Predicated region
      $region17: #{pallas_forward.1} parent=11 // pred_check
        %p341 = pneg %p87
      $region18: #{pallas_forward.1} parent=11 // pred_check_branch
        %343 = sbr.rel (%p341) target = $region20
      $region19: #{pallas_forward.1} parent=11 // pred_region
        _
      $region20: #{pallas_forward.1} parent=11 // pred_fallthru
        _
      // Predicated region
      $region21: #{pallas_forward.1} parent=11 // pred_check
        %p344 = pneg %p108
      $region22: #{pallas_forward.1} parent=11 // pred_check_branch
        %346 = sbr.rel (%p344) target = $region24
      $region23: #{pallas_forward.1} parent=11 // pred_region
        _
      $region24: #{pallas_forward.1} parent=11 // pred_fallthru
        _
      // Predicated region
      $region25: #{pallas_forward.1} parent=11 // pred_check
        %p347 = pneg %p129
      $region26: #{pallas_forward.1} parent=11 // pred_check_branch
        %349 = sbr.rel (%p347) target = $region28
      $region27: #{pallas_forward.1} parent=11 // pred_region
        _
      $region28: #{pallas_forward.1} parent=11 // pred_fallthru
        _
      // Predicated region
      $region29: #{pallas_forward.1} parent=11 // pred_check
        %p350 = pneg %p150
      $region30: #{pallas_forward.1} parent=11 // pred_check_branch
        %352 = sbr.rel (%p350) target = $region32
      $region31: #{pallas_forward.1} parent=11 // pred_region
        _
      $region32: #{pallas_forward.1} parent=11 // pred_fallthru
        _
      // Predicated region
      $region33: #{pallas_forward.1} parent=11 // pred_check
        %p353 = pneg %p171
      $region34: #{pallas_forward.1} parent=11 // pred_check_branch
        %355 = sbr.rel (%p353) target = $region36
      $region35: #{pallas_forward.1} parent=11 // pred_region
        _
      $region36: #{pallas_forward.1} parent=11 // pred_fallthru
        _
      // Predicated region
      $region37: #{pallas_forward.1} parent=11 // pred_check
        %p356 = pneg %p192
      $region38: #{pallas_forward.1} parent=11 // pred_check_branch
        %358 = sbr.rel (%p356) target = $region40
      $region39: #{pallas_forward.1} parent=11 // pred_region
        _
      $region40: #{pallas_forward.1} parent=11 // pred_fallthru
        _
      // Predicated region
      $region41: #{pallas_forward.1} parent=11 // pred_check
        %p359 = pneg %p213
      $region42: #{pallas_forward.1} parent=11 // pred_check_branch
        %361 = sbr.rel (%p359) target = $region44
      $region43: #{pallas_forward.1} parent=11 // pred_region
        _
      $region44: #{pallas_forward.1} parent=11 // pred_fallthru
        _
      // Predicated region
      $region45: #{pallas_forward.1} parent=11 // pred_check
        %p362 = pneg %p234
      $region46: #{pallas_forward.1} parent=11 // pred_check_branch
        %364 = sbr.rel (%p362) target = $region48
      $region47: #{pallas_forward.1} parent=11 // pred_region
        _
      $region48: #{pallas_forward.1} parent=11 // pred_fallthru
        _
      // Predicated region
      $region49: #{pallas_forward.1} parent=11 // pred_check
        %p365 = pneg %p255
      $region50: #{pallas_forward.1} parent=11 // pred_check_branch
        %367 = sbr.rel (%p365) target = $region52
      $region51: #{pallas_forward.1} parent=11 // pred_region
        _
      $region52: #{pallas_forward.1} parent=11 // pred_fallthru
        _
      // Predicated region
      $region53: #{pallas_forward.1} parent=11 // pred_check
        %p368 = pneg %p276
      $region54: #{pallas_forward.1} parent=11 // pred_check_branch
        %370 = sbr.rel (%p368) target = $region56
      $region55: #{pallas_forward.1} parent=11 // pred_region
        _
      $region56: #{pallas_forward.1} parent=11 // pred_fallthru
        _
      // Predicated region
      $region57: #{pallas_forward.1} parent=11 // pred_check
        %p371 = pneg %p297
      $region58: #{pallas_forward.1} parent=11 // pred_check_branch
        %373 = sbr.rel (%p371) target = $region60
      $region59: #{pallas_forward.1} parent=11 // pred_region
        _
      $region60: #{pallas_forward.1} parent=11 // pred_fallthru
        _
    $region12: #{pallas_forward.1} parent=5 // pred_fallthru
      _
    %p374 = scmp.lt.s32.totalorder %s19, 2
    // Predicated region
    $region61: #{pallas_forward.1} parent=5 // pred_check
      %p375 = pneg %p374
    $region62: #{pallas_forward.1} parent=5 // pred_check_branch
      %377 = sbr.rel (%p375) target = $region64
    $region63: #{pallas_forward.1} parent=5 // pred_region
      // Predicated region
      $region65: #{pallas_forward.1} parent=63 // pred_check
        %p378 = pneg %p39
      $region66: #{pallas_forward.1} parent=63 // pred_check_branch
        %380 = sbr.rel (%p378) target = $region68
      $region67: #{pallas_forward.1} parent=63 // pred_region
        %p381 = scmp.lt.s32.totalorder %s19, 1
        %s382 = scalar_select %p381, %s19, 1
        %s383 = smul.addr %s382, 4
        %s384 = smul.addr %s383, 8
        %s385 = scalar_lea.vmem %s0, %s384
      $region68: #{pallas_forward.1} parent=63 // pred_fallthru
        _
    $region64: #{pallas_forward.1} parent=5 // pred_fallthru
      _
    %p386 = scmp.le.s32.totalorder 1, %s19
    %p387 = scmp.lt.s32.totalorder %s19, 3
    %p388 = pnand %p386, %p387
    %p389 = pneg %p388
    // Predicated region
    $region69: #{pallas_forward.1} parent=5 // pred_check
      _
    $region70: #{pallas_forward.1} parent=5 // pred_check_branch
      %391 = sbr.rel (%p388) target = $region72
    $region71: #{pallas_forward.1} parent=5 // pred_region
      %s392 = ssub.s32 %s19, 1
      %p393 = scmp.lt.s32.totalorder %s24, 1
      %s394 = scalar_select %p393, %s24, 1
      %s395 = smul.addr %s394, 4
      %s396 = smul.addr %s395, 8
      %s397 = scalar_lea.vmem %s0, %s396
      %p398 = pneg %p45
      %p399 = pneg %p42
      %p400 = pneg %p66
      %p401 = pneg %p63
      %p402 = pneg %p87
      %p403 = pneg %p84
      %p404 = pneg %p108
      %p405 = pneg %p105
      %p406 = pneg %p129
      %p407 = pneg %p126
      %p408 = pneg %p150
      %p409 = pneg %p147
      %p410 = pneg %p171
      %p411 = pneg %p168
      %p412 = pneg %p192
      %p413 = pneg %p189
      %p414 = pneg %p213
      %p415 = pneg %p210
      %p416 = pneg %p234
      %p417 = pneg %p231
      %p418 = pneg %p255
      %p419 = pneg %p252
      %p420 = pneg %p276
      %p421 = pneg %p273
      %p422 = pneg %p297
      %p423 = pneg %p294
      %p424 = pneg %p323
      %p425 = pneg %p320
      %p426 = scmp.lt.s32.totalorder %s24, 1
      %s427 = scalar_select %p426, %s24, 1
      %s428 = smul.addr %s427, 4
      %s429 = smul.addr %s428, 8
      %s430 = scalar_lea.vmem %s13, %s429
      %p431 = scmp.lt.s32.totalorder %s24, 1
      %s432 = scalar_select %p431, %s24, 1
      %s433 = smul.addr %s432, 4
      %s434 = smul.addr %s433, 8
      %s435 = scalar_lea.vmem %s0, %s434
      %p436 = scmp.lt.s32.totalorder %s24, 1
      %s437 = scalar_select %p436, %s24, 1
      %s438 = smul.addr %s437, 4
      %s439 = smul.addr %s438, 8
      %s440 = scalar_lea.vmem %s13, %s439
      %v442 = vld [vmem:[%s435] sm:$0xff]
      %v443 = vld [vmem:[%s435 + $0x8] sm:$0xff]
      %v444 = vld [vmem:[%s435 + $0x10] sm:$0xff]
      %v445 = vld [vmem:[%s435 + $0x18] sm:$0xff]
      %v446 = vld [vmem:[%s2] sm:$0xf]
      %v447 = vld [vmem:[%s2 + $0x4] sm:$0xf]
      %v448 = vld [vmem:[%s2 + $0x8] sm:$0xf]
      %v449 = vld [vmem:[%s2 + $0xc] sm:$0xf]
      %v450 = vld [vmem:[%s2 + $0x10] sm:$0xf]
      %v451 = vld [vmem:[%s2 + $0x14] sm:$0xf]
      %v452 = vld [vmem:[%s2 + $0x18] sm:$0xf]
      %v453 = vld [vmem:[%s2 + $0x1c] sm:$0xf]
      %v454 = vld [vmem:[%s2 + $0x20] sm:$0xf]
      %v455 = vld [vmem:[%s2 + $0x24] sm:$0xf]
      %v456 = vld [vmem:[%s2 + $0x28] sm:$0xf]
      %v457 = vld [vmem:[%s2 + $0x2c] sm:$0xf]
      %v458 = vld [vmem:[%s2 + $0x30] sm:$0xf]
      %v459 = vld [vmem:[%s2 + $0x34] sm:$0xf]
      %v460 = vld [vmem:[%s2 + $0x38] sm:$0xf]
      %v461 = vld [vmem:[%s2 + $0x3c] sm:$0xf]
      %v462 = vld [vmem:[%s3] sm:$0xff]
      %v463 = vld [vmem:[%s3 + $0x8] sm:$0xff]
      %v464 = vld [vmem:[%s3 + $0x10] sm:$0xff]
      %v465 = vld [vmem:[%s3 + $0x18] sm:$0xff]
      %v466 = vld [vmem:[%s3 + $0x20] sm:$0xff]
      %v467 = vld [vmem:[%s3 + $0x28] sm:$0xff]
      %v468 = vld [vmem:[%s3 + $0x30] sm:$0xff]
      %v469 = vld [vmem:[%s3 + $0x38] sm:$0xff]
      %v470 = vld [vmem:[%s3 + $0x40] sm:$0xff]
      %v471 = vld [vmem:[%s3 + $0x48] sm:$0xff]
      %v472 = vld [vmem:[%s3 + $0x50] sm:$0xff]
      %v473 = vld [vmem:[%s3 + $0x58] sm:$0xff]
      %v474 = vld [vmem:[%s3 + $0x60] sm:$0xff]
      %v475 = vld [vmem:[%s3 + $0x68] sm:$0xff]
      %v476 = vld [vmem:[%s3 + $0x70] sm:$0xff]
      %v477 = vld [vmem:[%s3 + $0x78] sm:$0xff]
      %v478 = vadd.f32 %v442, %v443
      %v479 = vadd.f32 %v478, %v444
      %v480 = vadd.f32 %v479, %v445
      %v481 = vrot.slane %v480, 4
      %v482 = vadd.f32 %v480, %v481
      %v483 = vrot.slane %v482, 2
      %v484 = vadd.f32 %v482, %v483
      %v485 = vrot.slane %v484, 1
      %v486 = vadd.f32 %v484, %v485
      %v487 = vrcp.pop 32.0
      %v488 = vmul.f32 %v486, %v487
      %v489 = vsub.f32 %v442, %v488
      %v490 = vsub.f32 %v443, %v488
      %v491 = vsub.f32 %v444, %v488
      %v492 = vsub.f32 %v445, %v488
      %v493 = vmul.f32 %v489, %v489
      %v494 = vmul.f32 %v490, %v490
      %v495 = vmul.f32 %v491, %v491
      %v496 = vmul.f32 %v492, %v492
      %v497 = vadd.f32 %v493, %v494
      %v498 = vadd.f32 %v497, %v495
      %v499 = vadd.f32 %v498, %v496
      %v500 = vrot.slane %v499, 4
      %v501 = vadd.f32 %v499, %v500
      %v502 = vrot.slane %v501, 2
      %v503 = vadd.f32 %v501, %v502
      %v504 = vrot.slane %v503, 1
      %v505 = vadd.f32 %v503, %v504
      %v506 = vmul.f32 %v505, %v487
      %v507 = vadd.f32 %v506, 1e-05
      %v508 = vrsqrt.pop %v507
      %v509 = vmul.f32 %v489, %v508
      %v510 = vmul.f32 %v490, %v508
      %v511 = vmul.f32 %v491, %v508
      %v512 = vmul.f32 %v492, %v508
      %v513 = vpack.c.bf16 %v510, %v509
      %v514 = vpack.c.bf16 %v512, %v511
      %516 = vset.pattern.permute.xlu0 0
      %517 = vperm.xlu0 %516, %v462
      %v518 = vpop.permute.xlu0 %517
      %521 = vset.pattern.permute.xlu0 0
      %522 = vperm.xlu0 %521, %v463
      %v523 = vpop.permute.xlu0 %522
      %526 = vset.pattern.permute.xlu0 0
      %527 = vperm.xlu0 %526, %v464
      %v528 = vpop.permute.xlu0 %527
      %531 = vset.pattern.permute.xlu0 0
      %532 = vperm.xlu0 %531, %v465
      %v533 = vpop.permute.xlu0 %532
      %536 = vset.pattern.permute.xlu0 0
      %537 = vperm.xlu0 %536, %v466
      %v538 = vpop.permute.xlu0 %537
      %541 = vset.pattern.permute.xlu0 0
      %542 = vperm.xlu0 %541, %v467
      %v543 = vpop.permute.xlu0 %542
      %546 = vset.pattern.permute.xlu0 0
      %547 = vperm.xlu0 %546, %v468
      %v548 = vpop.permute.xlu0 %547
      %551 = vset.pattern.permute.xlu0 0
      %552 = vperm.xlu0 %551, %v469
      %v553 = vpop.permute.xlu0 %552
      %556 = vset.pattern.permute.xlu0 0
      %557 = vperm.xlu0 %556, %v470
      %v558 = vpop.permute.xlu0 %557
      %561 = vset.pattern.permute.xlu0 0
      %562 = vperm.xlu0 %561, %v471
      %v563 = vpop.permute.xlu0 %562
      %566 = vset.pattern.permute.xlu0 0
      %567 = vperm.xlu0 %566, %v472
      %v568 = vpop.permute.xlu0 %567
      %571 = vset.pattern.permute.xlu0 0
      %572 = vperm.xlu0 %571, %v473
      %v573 = vpop.permute.xlu0 %572
      %v587 = vunpack.c.l.b16 %v446
      %v588 = vunpack.c.l.b16 %v447
      %v589 = vunpack.c.l.b16 %v448
      %v590 = vunpack.c.l.b16 %v449
      %v591 = vunpack.c.l.b16 %v450
      %v592 = vunpack.c.l.b16 %v451
      %v593 = vunpack.c.l.b16 %v452
      %v594 = vunpack.c.l.b16 %v453
      %v595 = vunpack.c.l.b16 %v454
      %v596 = vunpack.c.l.b16 %v455
      %v597 = vunpack.c.l.b16 %v456
      %v598 = vunpack.c.l.b16 %v457
      %v599 = vpack.c.b16 %v588, %v587
      %v600 = vpack.c.b16 %v590, %v589
      %v601 = vpack.c.b16 %v592, %v591
      %v602 = vpack.c.b16 %v594, %v593
      %v603 = vpack.c.b16 %v596, %v595
      %v604 = vpack.c.b16 %v598, %v597
      %vm605 = vcmask 261120
      %v607 = vsel %vm605, %v599, 0
      %v610 = vsel %vm605, %v600, 0
      %v613 = vsel %vm605, %v601, 0
      %v616 = vsel %vm605, %v602, 0
      %v619 = vsel %vm605, %v603, 0
      %v622 = vsel %vm605, %v604, 0
      %624 = vmatprep.subr.bf16.mxu0 0
      %625 = vmatpush1.bf16.msra.mxu0 0
      %626 = vmatprep.subr.bf16.mxu0 0
      %627 = vmatpush1.bf16.msra.mxu0 0
      %628 = vmatprep.subr.bf16.mxu0 0
      %629 = vmatpush1.bf16.msra.mxu0 0
      %630 = vmatprep.subr.bf16.mxu0 0
      %631 = vmatpush1.bf16.msra.mxu0 0
      %632 = vmatprep.subr.bf16.mxu0 0
      %633 = vmatpush1.bf16.msra.mxu0 0
      %634 = vmatprep.subr.bf16.mxu0 0
      %635 = vmatpush1.bf16.msra.mxu0 0
      %636 = vmatprep.subr.bf16.mxu0 0
      %637 = vmatpush1.bf16.msra.mxu0 %v514
      %638 = vmatprep.subr.bf16.mxu0 0
      %639 = vmatpush1.bf16.msra.mxu0 %v513
      %640 = vmatprep.subr.bf16.mxu0 0
      %641 = vmatpush2.bf16.msra.mxu0 0
      %642 = vmatprep.subr.bf16.mxu0 0
      %643 = vmatpush2.bf16.msra.mxu0 0
      %644 = vmatprep.subr.bf16.mxu0 0
      %645 = vmatpush2.bf16.msra.mxu0 0
      %646 = vmatprep.subr.bf16.mxu0 0
      %647 = vmatpush2.bf16.msra.mxu0 0
      %648 = vmatprep.subr.bf16.mxu0 0
      %649 = vmatpush2.bf16.msra.mxu0 0
      %650 = vmatprep.subr.bf16.mxu0 0
      %651 = vmatpush2.bf16.msra.mxu0 0
      %652 = vmatprep.subr.bf16.mxu0 0
      %653 = vmatpush2.bf16.msra.mxu0 0
      %654 = vmatprep.subr.bf16.mxu0 0
      %655 = vmatpush2.bf16.msra.mxu0 0
      %656 = vmatprep.mubr.bf16.mxu0 0
      %657 = vmatmul.mubr.bf16.gmra.mxu0 %v607
      %v658 = vpop.f32.mrf.mxu0
      %v659 = vadd.f32 %v518, %v658
      %v660 = vpop.f32.mrf.mxu0
      %v661 = vpop.f32.mrf.mxu0
      %v662 = vadd.f32 %v523, %v661
      %v663 = vpop.f32.mrf.mxu0
      %664 = vmatprep.mubr.bf16.mxu0 0
      %665 = vmatmul.mubr.bf16.gmra.mxu0 %v610
      %v666 = vpop.f32.mrf.mxu0
      %v667 = vadd.f32 %v528, %v666
      %v668 = vpop.f32.mrf.mxu0
      %v669 = vpop.f32.mrf.mxu0
      %v670 = vadd.f32 %v533, %v669
      %v671 = vpop.f32.mrf.mxu0
      %672 = vmatprep.mubr.bf16.mxu0 0
      %673 = vmatmul.mubr.bf16.gmra.mxu0 %v613
      %v674 = vpop.f32.mrf.mxu0
      %v675 = vadd.f32 %v538, %v674
      %v676 = vpop.f32.mrf.mxu0
      %v677 = vpop.f32.mrf.mxu0
      %v678 = vadd.f32 %v543, %v677
      %v679 = vpop.f32.mrf.mxu0
      %680 = vmatprep.mubr.bf16.mxu0 0
      %681 = vmatmul.mubr.bf16.gmra.mxu0 %v616
      %v682 = vpop.f32.mrf.mxu0
      %v683 = vadd.f32 %v548, %v682
      %v684 = vpop.f32.mrf.mxu0
      %v685 = vpop.f32.mrf.mxu0
      %v686 = vadd.f32 %v553, %v685
      %v687 = vpop.f32.mrf.mxu0
      %688 = vmatprep.mubr.bf16.mxu0 0
      %689 = vmatmul.mubr.bf16.gmra.mxu0 %v619
      %v690 = vpop.f32.mrf.mxu0
      %v691 = vadd.f32 %v558, %v690
      %v692 = vpop.f32.mrf.mxu0
      %v693 = vpop.f32.mrf.mxu0
      %v694 = vadd.f32 %v563, %v693
      %v695 = vpop.f32.mrf.mxu0
      %696 = vmatprep.mubr.bf16.mxu0 0
      %697 = vmatmul.mubr.bf16.gmra.mxu0 %v622
      %v698 = vpop.f32.mrf.mxu0
      %v699 = vadd.f32 %v568, %v698
      %v700 = vpop.f32.mrf.mxu0
      %v701 = vpop.f32.mrf.mxu0
      %v702 = vadd.f32 %v573, %v701
      %v703 = vpop.f32.mrf.mxu0
      %704 = vdwg.mxu0
      %v705 = vpack.c.bf16 %v662, %v659
      %v706 = vpack.c.bf16 %v670, %v667
      %v707 = vpack.c.bf16 %v678, %v675
      %v708 = vpack.c.bf16 %v686, %v683
      %v709 = vpack.c.bf16 %v694, %v691
      %v710 = vpack.c.bf16 %v702, %v699
      %712 = vset.pattern.permute.xlu0 0
      %713 = vperm.xlu0 %712, %v474
      %v714 = vpop.permute.xlu0 %713
      %717 = vset.pattern.permute.xlu0 0
      %718 = vperm.xlu0 %717, %v475
      %v719 = vpop.permute.xlu0 %718
      %722 = vset.pattern.permute.xlu0 0
      %723 = vperm.xlu0 %722, %v476
      %v724 = vpop.permute.xlu0 %723
      %727 = vset.pattern.permute.xlu0 0
      %728 = vperm.xlu0 %727, %v477
      %v729 = vpop.permute.xlu0 %728
      %v731 = vadd.f32 %v442, %v714
      %v732 = vadd.f32 %v443, %v719
      %v733 = vadd.f32 %v444, %v724
      %v734 = vadd.f32 %v445, %v729
      %v735 = vld [vmem:[%s1] sm:$0xff]
      %v736 = vld [vmem:[%s1 + $0x8] sm:$0xff]
      %v737 = vld [vmem:[%s1 + $0x10] sm:$0xff]
      %v738 = vld [vmem:[%s1 + $0x18] sm:$0xff]
      %v739 = vld [vmem:[%s1 + $0x20] sm:$0xff]
      %v740 = vld [vmem:[%s1 + $0x28] sm:$0xff]
      %v741 = vld [vmem:[%s1 + $0x30] sm:$0xff]
      %v742 = vld [vmem:[%s1 + $0x38] sm:$0xff]
      %v743 = vld [vmem:[%s1 + $0x40] sm:$0xff]
      %v744 = vld [vmem:[%s1 + $0x48] sm:$0xff]
      %v745 = vld [vmem:[%s1 + $0x50] sm:$0xff]
      %v746 = vld [vmem:[%s1 + $0x58] sm:$0xff]
      %v747 = vld [vmem:[%s1 + $0x60] sm:$0xff]
      %v748 = vld [vmem:[%s1 + $0x68] sm:$0xff]
      %v749 = vld [vmem:[%s1 + $0x70] sm:$0xff]
      %v750 = vld [vmem:[%s1 + $0x78] sm:$0xff]
      %751 = vxpose.xlu0.c.b16.start [1/8] %v707, 128
      %752 = vxpose.xlu0.c.b16.cont [2/8] 0, 128
      %753 = vxpose.xlu0.c.b16.cont [3/8] 0, 128
      %754 = vxpose.xlu0.c.b16.cont [4/8] 0, 128
      %755 = vxpose.xlu0.c.b16.cont [5/8] 0, 128
      %756 = vxpose.xlu0.c.b16.cont [6/8] 0, 128
      %757 = vxpose.xlu0.c.b16.cont [7/8] 0, 128
      %758 = vxpose.xlu0.c.b16.end [8/8] 0, 128
      %v759 = vpop.trf.xlu0
      %v760 = vpop.trf.xlu0
      %v761 = vpop.trf.xlu0
      %v762 = vpop.trf.xlu0
      %v763 = vpop.trf.xlu0
      %v764 = vpop.trf.xlu0
      %v765 = vpop.trf.xlu0
      %v766 = vpop.trf.xlu0
      %vm767 = vcmask 64512
      %v769 = vsel %vm767, %v759, 0
      %v772 = vsel %vm767, %v760, 0
      %v775 = vsel %vm767, %v761, 0
      %v778 = vsel %vm767, %v762, 0
      %v781 = vsel %vm767, %v763, 0
      %v784 = vsel %vm767, %v764, 0
      %v787 = vsel %vm767, %v765, 0
      %v790 = vsel %vm767, %v766, 0
      %vm792 = vcmask 1043456
      %v794 = vsel %vm792, %v705, 0
      %796 = vmatprep.subr.bf16.mxu0 0
      %797 = vmatpush1.bf16.msra.mxu0 0
      %798 = vmatprep.subr.bf16.mxu0 0
      %799 = vmatpush1.bf16.msra.mxu0 0
      %800 = vmatprep.subr.bf16.mxu0 0
      %801 = vmatpush1.bf16.msra.mxu0 0
      %802 = vmatprep.subr.bf16.mxu0 0
      %803 = vmatpush1.bf16.msra.mxu0 0
      %804 = vmatprep.subr.bf16.mxu0 0
      %805 = vmatpush1.bf16.msra.mxu0 0
      %806 = vmatprep.subr.bf16.mxu0 0
      %807 = vmatpush1.bf16.msra.mxu0 0
      %808 = vmatprep.subr.bf16.mxu0 0
      %809 = vmatpush1.bf16.msra.mxu0 0
      %810 = vmatprep.subr.bf16.mxu0 0
      %811 = vmatpush1.bf16.msra.mxu0 %v794
      %812 = vmatprep.subr.bf16.mxu0 0
      %813 = vmatpush2.bf16.msra.mxu0 0
      %814 = vmatprep.subr.bf16.mxu0 0
      %815 = vmatpush2.bf16.msra.mxu0 0
      %816 = vmatprep.subr.bf16.mxu0 0
      %817 = vmatpush2.bf16.msra.mxu0 0
      %818 = vmatprep.subr.bf16.mxu0 0
      %819 = vmatpush2.bf16.msra.mxu0 0
      %820 = vmatprep.subr.bf16.mxu0 0
      %821 = vmatpush2.bf16.msra.mxu0 0
      %822 = vmatprep.subr.bf16.mxu0 0
      %823 = vmatpush2.bf16.msra.mxu0 0
      %824 = vmatprep.subr.bf16.mxu0 0
      %825 = vmatpush2.bf16.msra.mxu0 0
      %826 = vmatprep.subr.bf16.mxu0 0
      %827 = vmatpush2.bf16.msra.mxu0 0
      %828 = vmatprep.mubr.bf16.mxu0 0
      %829 = vmatmul.mubr.bf16.gmra.mxu0 %v769
      %v830 = vpop.f32.mrf.mxu0
      %v831 = vadd.f32 %v735, %v830
      %v832 = vpop.f32.mrf.mxu0
      %v833 = vpop.f32.mrf.mxu0
      %v834 = vadd.f32 %v736, %v833
      %v835 = vpop.f32.mrf.mxu0
      %836 = vmatprep.mubr.bf16.mxu0 0
      %837 = vmatmul.mubr.bf16.gmra.mxu0 %v772
      %v838 = vpop.f32.mrf.mxu0
      %v839 = vadd.f32 %v737, %v838
      %v840 = vpop.f32.mrf.mxu0
      %v841 = vpop.f32.mrf.mxu0
      %v842 = vadd.f32 %v738, %v841
      %v843 = vpop.f32.mrf.mxu0
      %844 = vmatprep.mubr.bf16.mxu0 0
      %845 = vmatmul.mubr.bf16.gmra.mxu0 %v775
      %v846 = vpop.f32.mrf.mxu0
      %v847 = vadd.f32 %v739, %v846
      %v848 = vpop.f32.mrf.mxu0
      %v849 = vpop.f32.mrf.mxu0
      %v850 = vadd.f32 %v740, %v849
      %v851 = vpop.f32.mrf.mxu0
      %852 = vmatprep.mubr.bf16.mxu0 0
      %853 = vmatmul.mubr.bf16.gmra.mxu0 %v778
      %v854 = vpop.f32.mrf.mxu0
      %v855 = vadd.f32 %v741, %v854
      %v856 = vpop.f32.mrf.mxu0
      %v857 = vpop.f32.mrf.mxu0
      %v858 = vadd.f32 %v742, %v857
      %v859 = vpop.f32.mrf.mxu0
      %860 = vmatprep.mubr.bf16.mxu0 0
      %861 = vmatmul.mubr.bf16.gmra.mxu0 %v781
      %v862 = vpop.f32.mrf.mxu0
      %v863 = vadd.f32 %v743, %v862
      %v864 = vpop.f32.mrf.mxu0
      %v865 = vpop.f32.mrf.mxu0
      %v866 = vadd.f32 %v744, %v865
      %v867 = vpop.f32.mrf.mxu0
      %868 = vmatprep.mubr.bf16.mxu0 0
      %869 = vmatmul.mubr.bf16.gmra.mxu0 %v784
      %v870 = vpop.f32.mrf.mxu0
      %v871 = vadd.f32 %v745, %v870
      %v872 = vpop.f32.mrf.mxu0
      %v873 = vpop.f32.mrf.mxu0
      %v874 = vadd.f32 %v746, %v873
      %v875 = vpop.f32.mrf.mxu0
      %876 = vmatprep.mubr.bf16.mxu0 0
      %877 = vmatmul.mubr.bf16.gmra.mxu0 %v787
      %v878 = vpop.f32.mrf.mxu0
      %v879 = vadd.f32 %v747, %v878
      %v880 = vpop.f32.mrf.mxu0
      %v881 = vpop.f32.mrf.mxu0
      %v882 = vadd.f32 %v748, %v881
      %v883 = vpop.f32.mrf.mxu0
      %884 = vmatprep.mubr.bf16.mxu0 0
      %885 = vmatmul.mubr.bf16.gmra.mxu0 %v790
      %v886 = vpop.f32.mrf.mxu0
      %v887 = vadd.f32 %v749, %v886
      %v888 = vpop.f32.mrf.mxu0
      %v889 = vpop.f32.mrf.mxu0
      %v890 = vadd.f32 %v750, %v889
      %v891 = vpop.f32.mrf.mxu0
      %892 = vdwg.mxu0
      %v893 = vmax.f32 %v831, %v847
      %v894 = vmax.f32 %v834, %v850
      %v895 = vmax.f32 %v839, %v855
      %v896 = vmax.f32 %v842, %v858
      %v897 = vmax.f32 %v893, %v863
      %v898 = vmax.f32 %v894, %v866
      %v899 = vmax.f32 %v895, %v871
      %v900 = vmax.f32 %v896, %v874
      %v901 = vmax.f32 %v897, %v879
      %v902 = vmax.f32 %v898, %v882
      %v903 = vmax.f32 %v899, %v887
      %v904 = vmax.f32 %v900, %v890
      %v905 = vmax.f32 %v901, %v902
      %v906 = vmax.f32 %v903, %v904
      %v907 = vmax.f32 %v905, %v906
      %v908 = vrot.slane %v907, 4
      %v909 = vmax.f32 %v907, %v908
      %v910 = vrot.slane %v909, 2
      %v911 = vmax.f32 %v909, %v910
      %v912 = vrot.slane %v911, 1
      %v913 = vmax.f32 %v911, %v912
      %v914 = vsub.f32 %v831, %v913
      %v915 = vsub.f32 %v834, %v913
      %v916 = vsub.f32 %v839, %v913
      %v917 = vsub.f32 %v842, %v913
      %v918 = vsub.f32 %v847, %v913
      %v919 = vsub.f32 %v850, %v913
      %v920 = vsub.f32 %v855, %v913
      %v921 = vsub.f32 %v858, %v913
      %v922 = vsub.f32 %v863, %v913
      %v923 = vsub.f32 %v866, %v913
      %v924 = vsub.f32 %v871, %v913
      %v925 = vsub.f32 %v874, %v913
      %v926 = vsub.f32 %v879, %v913
      %v927 = vsub.f32 %v882, %v913
      %v928 = vsub.f32 %v887, %v913
      %v929 = vsub.f32 %v890, %v913
      %v930 = vmul.f32 %v914, 1.442695
      %v931 = vpow.pop %v930
      %v932 = vmul.f32 %v915, 1.442695
      %v933 = vpow.pop %v932
      %v934 = vmul.f32 %v916, 1.442695
      %v935 = vpow.pop %v934
      %v936 = vmul.f32 %v917, 1.442695
      %v937 = vpow.pop %v936
      %v938 = vmul.f32 %v918, 1.442695
      %v939 = vpow.pop %v938
      %v940 = vmul.f32 %v919, 1.442695
      %v941 = vpow.pop %v940
      %v942 = vmul.f32 %v920, 1.442695
      %v943 = vpow.pop %v942
      %v944 = vmul.f32 %v921, 1.442695
      %v945 = vpow.pop %v944
      %v946 = vmul.f32 %v922, 1.442695
      %v947 = vpow.pop %v946
      %v948 = vmul.f32 %v923, 1.442695
      %v949 = vpow.pop %v948
      %v950 = vmul.f32 %v924, 1.442695
      %v951 = vpow.pop %v950
      %v952 = vmul.f32 %v925, 1.442695
      %v953 = vpow.pop %v952
      %v954 = vmul.f32 %v926, 1.442695
      %v955 = vpow.pop %v954
      %v956 = vmul.f32 %v927, 1.442695
      %v957 = vpow.pop %v956
      %v958 = vmul.f32 %v928, 1.442695
      %v959 = vpow.pop %v958
      %v960 = vmul.f32 %v929, 1.442695
      %v961 = vpow.pop %v960
      %v962 = vadd.f32 %v931, %v933
      %v963 = vadd.f32 %v962, %v935
      %v964 = vadd.f32 %v963, %v937
      %v965 = vadd.f32 %v964, %v939
      %v966 = vadd.f32 %v965, %v941
      %v967 = vadd.f32 %v966, %v943
      %v968 = vadd.f32 %v967, %v945
      %v969 = vadd.f32 %v968, %v947
      %v970 = vadd.f32 %v969, %v949
      %v971 = vadd.f32 %v970, %v951
      %v972 = vadd.f32 %v971, %v953
      %v973 = vadd.f32 %v972, %v955
      %v974 = vadd.f32 %v973, %v957
      %v975 = vadd.f32 %v974, %v959
      %v976 = vadd.f32 %v975, %v961
      %v977 = vrot.slane %v976, 4
      %v978 = vadd.f32 %v976, %v977
      %v979 = vrot.slane %v978, 2
      %v980 = vadd.f32 %v978, %v979
      %v981 = vrot.slane %v980, 1
      %v982 = vadd.f32 %v980, %v981
      %v983 = vrcp.pop %v982
      %v984 = vpack.c.bf16 %v933, %v931
      %v985 = vpack.c.bf16 %v937, %v935
      %v986 = vpack.c.bf16 %v941, %v939
      %v987 = vpack.c.bf16 %v945, %v943
      %v988 = vpack.c.bf16 %v949, %v947
      %v989 = vpack.c.bf16 %v953, %v951
      %v990 = vpack.c.bf16 %v957, %v955
      %v991 = vpack.c.bf16 %v961, %v959
      %992 = vmatprep.subr.bf16.mxu0 0
      %993 = vmatpush1.bf16.msra.mxu0 %v991
      %994 = vmatprep.subr.bf16.mxu0 0
      %995 = vmatpush1.bf16.msra.mxu0 %v990
      %996 = vmatprep.subr.bf16.mxu0 0
      %997 = vmatpush1.bf16.msra.mxu0 %v989
      %998 = vmatprep.subr.bf16.mxu0 0
      %999 = vmatpush1.bf16.msra.mxu0 %v988
      %1000 = vmatprep.subr.bf16.mxu0 0
      %1001 = vmatpush1.bf16.msra.mxu0 %v987
      %1002 = vmatprep.subr.bf16.mxu0 0
      %1003 = vmatpush1.bf16.msra.mxu0 %v986
      %1004 = vmatprep.subr.bf16.mxu0 0
      %1005 = vmatpush1.bf16.msra.mxu0 %v985
      %1006 = vmatprep.subr.bf16.mxu0 0
      %1007 = vmatpush1.bf16.msra.mxu0 %v984
      %1008 = vmatprep.subr.bf16.mxu0 0
      %1009 = vmatpush2.bf16.msra.mxu0 0
      %1010 = vmatprep.subr.bf16.mxu0 0
      %1011 = vmatpush2.bf16.msra.mxu0 0
      %1012 = vmatprep.subr.bf16.mxu0 0
      %1013 = vmatpush2.bf16.msra.mxu0 0
      %1014 = vmatprep.subr.bf16.mxu0 0
      %1015 = vmatpush2.bf16.msra.mxu0 0
      %1016 = vmatprep.subr.bf16.mxu0 0
      %1017 = vmatpush2.bf16.msra.mxu0 0
      %1018 = vmatprep.subr.bf16.mxu0 0
      %1019 = vmatpush2.bf16.msra.mxu0 0
      %1020 = vmatprep.subr.bf16.mxu0 0
      %1021 = vmatpush2.bf16.msra.mxu0 0
      %1022 = vmatprep.subr.bf16.mxu0 0
      %1023 = vmatpush2.bf16.msra.mxu0 0
      %1024 = vmatprep.mubr.bf16.mxu0 0
      %1025 = vmatmul.mubr.bf16.gmra.mxu0 %v709
      %v1026 = vpop.f32.mrf.mxu0
      %v1027 = vadd.f32 0.0, %v1026
      %v1028 = vpop.f32.mrf.mxu0
      %v1029 = vpop.f32.mrf.mxu0
      %v1030 = vpop.f32.mrf.mxu0
      %1031 = vdwg.mxu0
      %v1032 = vmul.f32 %v1027, %v983
      %v1033 = vpack.c.bf16 %v1032, %v1032
      %v1038 = vunpack.c.l.b16 %v458
      %v1039 = vunpack.c.l.b16 %v459
      %v1040 = vunpack.c.l.b16 %v460
      %v1041 = vunpack.c.l.b16 %v461
      %v1042 = vpack.c.b16 %v1039, %v1038
      %v1043 = vpack.c.b16 %v1041, %v1040
      %v1045 = vsel %vm767, %v1042, 0
      %v1048 = vsel %vm767, %v1043, 0
      %v1051 = vsel %vm792, %v1033, 0
      %1053 = vmatprep.subr.bf16.mxu0 0
      %1054 = vmatpush1.bf16.msra.mxu0 0
      %1055 = vmatprep.subr.bf16.mxu0 0
      %1056 = vmatpush1.bf16.msra.mxu0 0
      %1057 = vmatprep.subr.bf16.mxu0 0
      %1058 = vmatpush1.bf16.msra.mxu0 0
      %1059 = vmatprep.subr.bf16.mxu0 0
      %1060 = vmatpush1.bf16.msra.mxu0 0
      %1061 = vmatprep.subr.bf16.mxu0 0
      %1062 = vmatpush1.bf16.msra.mxu0 0
      %1063 = vmatprep.subr.bf16.mxu0 0
      %1064 = vmatpush1.bf16.msra.mxu0 0
      %1065 = vmatprep.subr.bf16.mxu0 0
      %1066 = vmatpush1.bf16.msra.mxu0 0
      %1067 = vmatprep.subr.bf16.mxu0 0
      %1068 = vmatpush1.bf16.msra.mxu0 %v1051
      %1069 = vmatprep.subr.bf16.mxu0 0
      %1070 = vmatpush2.bf16.msra.mxu0 0
      %1071 = vmatprep.subr.bf16.mxu0 0
      %1072 = vmatpush2.bf16.msra.mxu0 0
      %1073 = vmatprep.subr.bf16.mxu0 0
      %1074 = vmatpush2.bf16.msra.mxu0 0
      %1075 = vmatprep.subr.bf16.mxu0 0
      %1076 = vmatpush2.bf16.msra.mxu0 0
      %1077 = vmatprep.subr.bf16.mxu0 0
      %1078 = vmatpush2.bf16.msra.mxu0 0
      %1079 = vmatprep.subr.bf16.mxu0 0
      %1080 = vmatpush2.bf16.msra.mxu0 0
      %1081 = vmatprep.subr.bf16.mxu0 0
      %1082 = vmatpush2.bf16.msra.mxu0 0
      %1083 = vmatprep.subr.bf16.mxu0 0
      %1084 = vmatpush2.bf16.msra.mxu0 0
      %1085 = vmatprep.mubr.bf16.mxu0 0
      %1086 = vmatmul.mubr.bf16.gmra.mxu0 %v1045
      %v1087 = vpop.f32.mrf.mxu0
      %v1088 = vadd.f32 0.0, %v1087
      %v1089 = vpop.f32.mrf.mxu0
      %v1090 = vpop.f32.mrf.mxu0
      %v1091 = vadd.f32 0.0, %v1090
      %v1092 = vpop.f32.mrf.mxu0
      %1093 = vmatprep.mubr.bf16.mxu0 0
      %1094 = vmatmul.mubr.bf16.gmra.mxu0 %v1048
      %v1095 = vpop.f32.mrf.mxu0
      %v1096 = vadd.f32 0.0, %v1095
      %v1097 = vpop.f32.mrf.mxu0
      %v1098 = vpop.f32.mrf.mxu0
      %v1099 = vadd.f32 0.0, %v1098
      %v1100 = vpop.f32.mrf.mxu0
      %1101 = vdwg.mxu0
      %v1102 = vadd.f32 %v731, %v1088
      %v1103 = vadd.f32 %v732, %v1091
      %v1104 = vadd.f32 %v733, %v1096
      %v1105 = vadd.f32 %v734, %v1099
      %v1107 = vrot.slane %v707, 4
      %1109 = vxpose.xlu0.c.b16.start [1/8] %v1107, 128
      %1110 = vxpose.xlu0.c.b16.cont [2/8] 0, 128
      %1111 = vxpose.xlu0.c.b16.cont [3/8] 0, 128
      %1112 = vxpose.xlu0.c.b16.cont [4/8] 0, 128
      %1113 = vxpose.xlu0.c.b16.cont [5/8] 0, 128
      %1114 = vxpose.xlu0.c.b16.cont [6/8] 0, 128
      %1115 = vxpose.xlu0.c.b16.cont [7/8] 0, 128
      %1116 = vxpose.xlu0.c.b16.end [8/8] 0, 128
      %v1117 = vpop.trf.xlu0
      %v1118 = vpop.trf.xlu0
      %v1119 = vpop.trf.xlu0
      %v1120 = vpop.trf.xlu0
      %v1121 = vpop.trf.xlu0
      %v1122 = vpop.trf.xlu0
      %v1123 = vpop.trf.xlu0
      %v1124 = vpop.trf.xlu0
      %v1126 = vrot.slane %v705, 4
      %v1128 = vsel %vm767, %v1117, 0
      %v1131 = vsel %vm767, %v1118, 0
      %v1134 = vsel %vm767, %v1119, 0
      %v1137 = vsel %vm767, %v1120, 0
      %v1140 = vsel %vm767, %v1121, 0
      %v1143 = vsel %vm767, %v1122, 0
      %v1146 = vsel %vm767, %v1123, 0
      %v1149 = vsel %vm767, %v1124, 0
      %v1152 = vsel %vm792, %v1126, 0
      %1154 = vmatprep.subr.bf16.mxu0 0
      %1155 = vmatpush1.bf16.msra.mxu0 0
      %1156 = vmatprep.subr.bf16.mxu0 0
      %1157 = vmatpush1.bf16.msra.mxu0 0
      %1158 = vmatprep.subr.bf16.mxu0 0
      %1159 = vmatpush1.bf16.msra.mxu0 0
      %1160 = vmatprep.subr.bf16.mxu0 0
      %1161 = vmatpush1.bf16.msra.mxu0 0
      %1162 = vmatprep.subr.bf16.mxu0 0
      %1163 = vmatpush1.bf16.msra.mxu0 0
      %1164 = vmatprep.subr.bf16.mxu0 0
      %1165 = vmatpush1.bf16.msra.mxu0 0
      %1166 = vmatprep.subr.bf16.mxu0 0
      %1167 = vmatpush1.bf16.msra.mxu0 0
      %1168 = vmatprep.subr.bf16.mxu0 0
      %1169 = vmatpush1.bf16.msra.mxu0 %v1152
      %1170 = vmatprep.subr.bf16.mxu0 0
      %1171 = vmatpush2.bf16.msra.mxu0 0
      %1172 = vmatprep.subr.bf16.mxu0 0
      %1173 = vmatpush2.bf16.msra.mxu0 0
      %1174 = vmatprep.subr.bf16.mxu0 0
      %1175 = vmatpush2.bf16.msra.mxu0 0
      %1176 = vmatprep.subr.bf16.mxu0 0
      %1177 = vmatpush2.bf16.msra.mxu0 0
      %1178 = vmatprep.subr.bf16.mxu0 0
      %1179 = vmatpush2.bf16.msra.mxu0 0
      %1180 = vmatprep.subr.bf16.mxu0 0
      %1181 = vmatpush2.bf16.msra.mxu0 0
      %1182 = vmatprep.subr.bf16.mxu0 0
      %1183 = vmatpush2.bf16.msra.mxu0 0
      %1184 = vmatprep.subr.bf16.mxu0 0
      %1185 = vmatpush2.bf16.msra.mxu0 0
      %1186 = vmatprep.mubr.bf16.mxu0 0
      %1187 = vmatmul.mubr.bf16.gmra.mxu0 %v1128
      %v1188 = vpop.f32.mrf.mxu0
      %v1189 = vadd.f32 %v735, %v1188
      %v1190 = vpop.f32.mrf.mxu0
      %v1191 = vpop.f32.mrf.mxu0
      %v1192 = vadd.f32 %v736, %v1191
      %v1193 = vpop.f32.mrf.mxu0
      %1194 = vmatprep.mubr.bf16.mxu0 0
      %1195 = vmatmul.mubr.bf16.gmra.mxu0 %v1131
      %v1196 = vpop.f32.mrf.mxu0
      %v1197 = vadd.f32 %v737, %v1196
      %v1198 = vpop.f32.mrf.mxu0
      %v1199 = vpop.f32.mrf.mxu0
      %v1200 = vadd.f32 %v738, %v1199
      %v1201 = vpop.f32.mrf.mxu0
      %1202 = vmatprep.mubr.bf16.mxu0 0
      %1203 = vmatmul.mubr.bf16.gmra.mxu0 %v1134
      %v1204 = vpop.f32.mrf.mxu0
      %v1205 = vadd.f32 %v739, %v1204
      %v1206 = vpop.f32.mrf.mxu0
      %v1207 = vpop.f32.mrf.mxu0
      %v1208 = vadd.f32 %v740, %v1207
      %v1209 = vpop.f32.mrf.mxu0
      %1210 = vmatprep.mubr.bf16.mxu0 0
      %1211 = vmatmul.mubr.bf16.gmra.mxu0 %v1137
      %v1212 = vpop.f32.mrf.mxu0
      %v1213 = vadd.f32 %v741, %v1212
      %v1214 = vpop.f32.mrf.mxu0
      %v1215 = vpop.f32.mrf.mxu0
      %v1216 = vadd.f32 %v742, %v1215
      %v1217 = vpop.f32.mrf.mxu0
      %1218 = vmatprep.mubr.bf16.mxu0 0
      %1219 = vmatmul.mubr.bf16.gmra.mxu0 %v1140
      %v1220 = vpop.f32.mrf.mxu0
      %v1221 = vadd.f32 %v743, %v1220
      %v1222 = vpop.f32.mrf.mxu0
      %v1223 = vpop.f32.mrf.mxu0
      %v1224 = vadd.f32 %v744, %v1223
      %v1225 = vpop.f32.mrf.mxu0
      %1226 = vmatprep.mubr.bf16.mxu0 0
      %1227 = vmatmul.mubr.bf16.gmra.mxu0 %v1143
      %v1228 = vpop.f32.mrf.mxu0
      %v1229 = vadd.f32 %v745, %v1228
      %v1230 = vpop.f32.mrf.mxu0
      %v1231 = vpop.f32.mrf.mxu0
      %v1232 = vadd.f32 %v746, %v1231
      %v1233 = vpop.f32.mrf.mxu0
      %1234 = vmatprep.mubr.bf16.mxu0 0
      %1235 = vmatmul.mubr.bf16.gmra.mxu0 %v1146
      %v1236 = vpop.f32.mrf.mxu0
      %v1237 = vadd.f32 %v747, %v1236
      %v1238 = vpop.f32.mrf.mxu0
      %v1239 = vpop.f32.mrf.mxu0
      %v1240 = vadd.f32 %v748, %v1239
      %v1241 = vpop.f32.mrf.mxu0
      %1242 = vmatprep.mubr.bf16.mxu0 0
      %1243 = vmatmul.mubr.bf16.gmra.mxu0 %v1149
      %v1244 = vpop.f32.mrf.mxu0
      %v1245 = vadd.f32 %v749, %v1244
      %v1246 = vpop.f32.mrf.mxu0
      %v1247 = vpop.f32.mrf.mxu0
      %v1248 = vadd.f32 %v750, %v1247
      %v1249 = vpop.f32.mrf.mxu0
      %1250 = vdwg.mxu0
      %v1251 = vmax.f32 %v1189, %v1205
      %v1252 = vmax.f32 %v1192, %v1208
      %v1253 = vmax.f32 %v1197, %v1213
      %v1254 = vmax.f32 %v1200, %v1216
      %v1255 = vmax.f32 %v1251, %v1221
      %v1256 = vmax.f32 %v1252, %v1224
      %v1257 = vmax.f32 %v1253, %v1229
      %v1258 = vmax.f32 %v1254, %v1232
      %v1259 = vmax.f32 %v1255, %v1237
      %v1260 = vmax.f32 %v1256, %v1240
      %v1261 = vmax.f32 %v1257, %v1245
      %v1262 = vmax.f32 %v1258, %v1248
      %v1263 = vmax.f32 %v1259, %v1260
      %v1264 = vmax.f32 %v1261, %v1262
      %v1265 = vmax.f32 %v1263, %v1264
      %v1266 = vrot.slane %v1265, 4
      %v1267 = vmax.f32 %v1265, %v1266
      %v1268 = vrot.slane %v1267, 2
      %v1269 = vmax.f32 %v1267, %v1268
      %v1270 = vrot.slane %v1269, 1
      %v1271 = vmax.f32 %v1269, %v1270
      %v1272 = vsub.f32 %v1189, %v1271
      %v1273 = vsub.f32 %v1192, %v1271
      %v1274 = vsub.f32 %v1197, %v1271
      %v1275 = vsub.f32 %v1200, %v1271
      %v1276 = vsub.f32 %v1205, %v1271
      %v1277 = vsub.f32 %v1208, %v1271
      %v1278 = vsub.f32 %v1213, %v1271
      %v1279 = vsub.f32 %v1216, %v1271
      %v1280 = vsub.f32 %v1221, %v1271
      %v1281 = vsub.f32 %v1224, %v1271
      %v1282 = vsub.f32 %v1229, %v1271
      %v1283 = vsub.f32 %v1232, %v1271
      %v1284 = vsub.f32 %v1237, %v1271
      %v1285 = vsub.f32 %v1240, %v1271
      %v1286 = vsub.f32 %v1245, %v1271
      %v1287 = vsub.f32 %v1248, %v1271
      %v1288 = vmul.f32 %v1272, 1.442695
      %v1289 = vpow.pop %v1288
      %v1290 = vmul.f32 %v1273, 1.442695
      %v1291 = vpow.pop %v1290
      %v1292 = vmul.f32 %v1274, 1.442695
      %v1293 = vpow.pop %v1292
      %v1294 = vmul.f32 %v1275, 1.442695
      %v1295 = vpow.pop %v1294
      %v1296 = vmul.f32 %v1276, 1.442695
      %v1297 = vpow.pop %v1296
      %v1298 = vmul.f32 %v1277, 1.442695
      %v1299 = vpow.pop %v1298
      %v1300 = vmul.f32 %v1278, 1.442695
      %v1301 = vpow.pop %v1300
      %v1302 = vmul.f32 %v1279, 1.442695
      %v1303 = vpow.pop %v1302
      %v1304 = vmul.f32 %v1280, 1.442695
      %v1305 = vpow.pop %v1304
      %v1306 = vmul.f32 %v1281, 1.442695
      %v1307 = vpow.pop %v1306
      %v1308 = vmul.f32 %v1282, 1.442695
      %v1309 = vpow.pop %v1308
      %v1310 = vmul.f32 %v1283, 1.442695
      %v1311 = vpow.pop %v1310
      %v1312 = vmul.f32 %v1284, 1.442695
      %v1313 = vpow.pop %v1312
      %v1314 = vmul.f32 %v1285, 1.442695
      %v1315 = vpow.pop %v1314
      %v1316 = vmul.f32 %v1286, 1.442695
      %v1317 = vpow.pop %v1316
      %v1318 = vmul.f32 %v1287, 1.442695
      %v1319 = vpow.pop %v1318
      %v1320 = vadd.f32 %v1289, %v1291
      %v1321 = vadd.f32 %v1320, %v1293
      %v1322 = vadd.f32 %v1321, %v1295
      %v1323 = vadd.f32 %v1322, %v1297
      %v1324 = vadd.f32 %v1323, %v1299
      %v1325 = vadd.f32 %v1324, %v1301
      %v1326 = vadd.f32 %v1325, %v1303
      %v1327 = vadd.f32 %v1326, %v1305
      %v1328 = vadd.f32 %v1327, %v1307
      %v1329 = vadd.f32 %v1328, %v1309
      %v1330 = vadd.f32 %v1329, %v1311
      %v1331 = vadd.f32 %v1330, %v1313
      %v1332 = vadd.f32 %v1331, %v1315
      %v1333 = vadd.f32 %v1332, %v1317
      %v1334 = vadd.f32 %v1333, %v1319
      %v1335 = vrot.slane %v1334, 4
      %v1336 = vadd.f32 %v1334, %v1335
      %v1337 = vrot.slane %v1336, 2
      %v1338 = vadd.f32 %v1336, %v1337
      %v1339 = vrot.slane %v1338, 1
      %v1340 = vadd.f32 %v1338, %v1339
      %v1341 = vrcp.pop %v1340
      %v1342 = vpack.c.bf16 %v1291, %v1289
      %v1343 = vpack.c.bf16 %v1295, %v1293
      %v1344 = vpack.c.bf16 %v1299, %v1297
      %v1345 = vpack.c.bf16 %v1303, %v1301
      %v1346 = vpack.c.bf16 %v1307, %v1305
      %v1347 = vpack.c.bf16 %v1311, %v1309
      %v1348 = vpack.c.bf16 %v1315, %v1313
      %v1349 = vpack.c.bf16 %v1319, %v1317
      %v1351 = vrot.slane %v709, 4
      %1353 = vmatprep.subr.bf16.mxu0 0
      %1354 = vmatpush1.bf16.msra.mxu0 %v1349
      %1355 = vmatprep.subr.bf16.mxu0 0
      %1356 = vmatpush1.bf16.msra.mxu0 %v1348
      %1357 = vmatprep.subr.bf16.mxu0 0
      %1358 = vmatpush1.bf16.msra.mxu0 %v1347
      %1359 = vmatprep.subr.bf16.mxu0 0
      %1360 = vmatpush1.bf16.msra.mxu0 %v1346
      %1361 = vmatprep.subr.bf16.mxu0 0
      %1362 = vmatpush1.bf16.msra.mxu0 %v1345
      %1363 = vmatprep.subr.bf16.mxu0 0
      %1364 = vmatpush1.bf16.msra.mxu0 %v1344
      %1365 = vmatprep.subr.bf16.mxu0 0
      %1366 = vmatpush1.bf16.msra.mxu0 %v1343
      %1367 = vmatprep.subr.bf16.mxu0 0
      %1368 = vmatpush1.bf16.msra.mxu0 %v1342
      %1369 = vmatprep.subr.bf16.mxu0 0
      %1370 = vmatpush2.bf16.msra.mxu0 0
      %1371 = vmatprep.subr.bf16.mxu0 0
      %1372 = vmatpush2.bf16.msra.mxu0 0
      %1373 = vmatprep.subr.bf16.mxu0 0
      %1374 = vmatpush2.bf16.msra.mxu0 0
      %1375 = vmatprep.subr.bf16.mxu0 0
      %1376 = vmatpush2.bf16.msra.mxu0 0
      %1377 = vmatprep.subr.bf16.mxu0 0
      %1378 = vmatpush2.bf16.msra.mxu0 0
      %1379 = vmatprep.subr.bf16.mxu0 0
      %1380 = vmatpush2.bf16.msra.mxu0 0
      %1381 = vmatprep.subr.bf16.mxu0 0
      %1382 = vmatpush2.bf16.msra.mxu0 0
      %1383 = vmatprep.subr.bf16.mxu0 0
      %1384 = vmatpush2.bf16.msra.mxu0 0
      %1385 = vmatprep.mubr.bf16.mxu0 0
      %1386 = vmatmul.mubr.bf16.gmra.mxu0 %v1351
      %v1387 = vpop.f32.mrf.mxu0
      %v1388 = vadd.f32 0.0, %v1387
      %v1389 = vpop.f32.mrf.mxu0
      %v1390 = vpop.f32.mrf.mxu0
      %v1391 = vpop.f32.mrf.mxu0
      %1392 = vdwg.mxu0
      %v1393 = vmul.f32 %v1388, %v1341
      %v1394 = vpack.c.bf16 %v1393, %v1393
      %1395 = vrot.lane.b32.xlu0 %v1042, 120
      %v1396 = vpop.permute.xlu0 %1395
      %1397 = vrot.lane.b32.xlu0 %v1043, 120
      %v1398 = vpop.permute.xlu0 %1397
      %v1400 = vsel %vm767, %v1396, 0
      %v1403 = vsel %vm767, %v1398, 0
      %v1406 = vsel %vm792, %v1394, 0
      %1408 = vmatprep.subr.bf16.mxu0 0
      %1409 = vmatpush1.bf16.msra.mxu0 0
      %1410 = vmatprep.subr.bf16.mxu0 0
      %1411 = vmatpush1.bf16.msra.mxu0 0
      %1412 = vmatprep.subr.bf16.mxu0 0
      %1413 = vmatpush1.bf16.msra.mxu0 0
      %1414 = vmatprep.subr.bf16.mxu0 0
      %1415 = vmatpush1.bf16.msra.mxu0 0
      %1416 = vmatprep.subr.bf16.mxu0 0
      %1417 = vmatpush1.bf16.msra.mxu0 0
      %1418 = vmatprep.subr.bf16.mxu0 0
      %1419 = vmatpush1.bf16.msra.mxu0 0
      %1420 = vmatprep.subr.bf16.mxu0 0
      %1421 = vmatpush1.bf16.msra.mxu0 0
      %1422 = vmatprep.subr.bf16.mxu0 0
      %1423 = vmatpush1.bf16.msra.mxu0 %v1406
      %1424 = vmatprep.subr.bf16.mxu0 0
      %1425 = vmatpush2.bf16.msra.mxu0 0
      %1426 = vmatprep.subr.bf16.mxu0 0
      %1427 = vmatpush2.bf16.msra.mxu0 0
      %1428 = vmatprep.subr.bf16.mxu0 0
      %1429 = vmatpush2.bf16.msra.mxu0 0
      %1430 = vmatprep.subr.bf16.mxu0 0
      %1431 = vmatpush2.bf16.msra.mxu0 0
      %1432 = vmatprep.subr.bf16.mxu0 0
      %1433 = vmatpush2.bf16.msra.mxu0 0
      %1434 = vmatprep.subr.bf16.mxu0 0
      %1435 = vmatpush2.bf16.msra.mxu0 0
      %1436 = vmatprep.subr.bf16.mxu0 0
      %1437 = vmatpush2.bf16.msra.mxu0 0
      %1438 = vmatprep.subr.bf16.mxu0 0
      %1439 = vmatpush2.bf16.msra.mxu0 0
      %1440 = vmatprep.mubr.bf16.mxu0 0
      %1441 = vmatmul.mubr.bf16.gmra.mxu0 %v1400
      %v1442 = vpop.f32.mrf.mxu0
      %v1443 = vadd.f32 0.0, %v1442
      %v1444 = vpop.f32.mrf.mxu0
      %v1445 = vpop.f32.mrf.mxu0
      %v1446 = vadd.f32 0.0, %v1445
      %v1447 = vpop.f32.mrf.mxu0
      %1448 = vmatprep.mubr.bf16.mxu0 0
      %1449 = vmatmul.mubr.bf16.gmra.mxu0 %v1403
      %v1450 = vpop.f32.mrf.mxu0
      %v1451 = vadd.f32 0.0, %v1450
      %v1452 = vpop.f32.mrf.mxu0
      %v1453 = vpop.f32.mrf.mxu0
      %v1454 = vadd.f32 0.0, %v1453
      %v1455 = vpop.f32.mrf.mxu0
      %1456 = vdwg.mxu0
      %v1457 = vadd.f32 %v1102, %v1443
      %v1458 = vadd.f32 %v1103, %v1446
      %v1459 = vadd.f32 %v1104, %v1451
      %v1460 = vadd.f32 %v1105, %v1454
      %1461 = vxpose.xlu0.c.b16.start [1/8] %v708, 128
      %1462 = vxpose.xlu0.c.b16.cont [2/8] 0, 128
      %1463 = vxpose.xlu0.c.b16.cont [3/8] 0, 128
      %1464 = vxpose.xlu0.c.b16.cont [4/8] 0, 128
      %1465 = vxpose.xlu0.c.b16.cont [5/8] 0, 128
      %1466 = vxpose.xlu0.c.b16.cont [6/8] 0, 128
      %1467 = vxpose.xlu0.c.b16.cont [7/8] 0, 128
      %1468 = vxpose.xlu0.c.b16.end [8/8] 0, 128
      %v1469 = vpop.trf.xlu0
      %v1470 = vpop.trf.xlu0
      %v1471 = vpop.trf.xlu0
      %v1472 = vpop.trf.xlu0
      %v1473 = vpop.trf.xlu0
      %v1474 = vpop.trf.xlu0
      %v1475 = vpop.trf.xlu0
      %v1476 = vpop.trf.xlu0
      %v1478 = vsel %vm767, %v1469, 0
      %v1481 = vsel %vm767, %v1470, 0
      %v1484 = vsel %vm767, %v1471, 0
      %v1487 = vsel %vm767, %v1472, 0
      %v1490 = vsel %vm767, %v1473, 0
      %v1493 = vsel %vm767, %v1474, 0
      %v1496 = vsel %vm767, %v1475, 0
      %v1499 = vsel %vm767, %v1476, 0
      %v1502 = vsel %vm792, %v706, 0
      %1504 = vmatprep.subr.bf16.mxu0 0
      %1505 = vmatpush1.bf16.msra.mxu0 0
      %1506 = vmatprep.subr.bf16.mxu0 0
      %1507 = vmatpush1.bf16.msra.mxu0 0
      %1508 = vmatprep.subr.bf16.mxu0 0
      %1509 = vmatpush1.bf16.msra.mxu0 0
      %1510 = vmatprep.subr.bf16.mxu0 0
      %1511 = vmatpush1.bf16.msra.mxu0 0
      %1512 = vmatprep.subr.bf16.mxu0 0
      %1513 = vmatpush1.bf16.msra.mxu0 0
      %1514 = vmatprep.subr.bf16.mxu0 0
      %1515 = vmatpush1.bf16.msra.mxu0 0
      %1516 = vmatprep.subr.bf16.mxu0 0
      %1517 = vmatpush1.bf16.msra.mxu0 0
      %1518 = vmatprep.subr.bf16.mxu0 0
      %1519 = vmatpush1.bf16.msra.mxu0 %v1502
      %1520 = vmatprep.subr.bf16.mxu0 0
      %1521 = vmatpush2.bf16.msra.mxu0 0
      %1522 = vmatprep.subr.bf16.mxu0 0
      %1523 = vmatpush2.bf16.msra.mxu0 0
      %1524 = vmatprep.subr.bf16.mxu0 0
      %1525 = vmatpush2.bf16.msra.mxu0 0
      %1526 = vmatprep.subr.bf16.mxu0 0
      %1527 = vmatpush2.bf16.msra.mxu0 0
      %1528 = vmatprep.subr.bf16.mxu0 0
      %1529 = vmatpush2.bf16.msra.mxu0 0
      %1530 = vmatprep.subr.bf16.mxu0 0
      %1531 = vmatpush2.bf16.msra.mxu0 0
      %1532 = vmatprep.subr.bf16.mxu0 0
      %1533 = vmatpush2.bf16.msra.mxu0 0
      %1534 = vmatprep.subr.bf16.mxu0 0
      %1535 = vmatpush2.bf16.msra.mxu0 0
      %1536 = vmatprep.mubr.bf16.mxu0 0
      %1537 = vmatmul.mubr.bf16.gmra.mxu0 %v1478
      %v1538 = vpop.f32.mrf.mxu0
      %v1539 = vadd.f32 %v735, %v1538
      %v1540 = vpop.f32.mrf.mxu0
      %v1541 = vpop.f32.mrf.mxu0
      %v1542 = vadd.f32 %v736, %v1541
      %v1543 = vpop.f32.mrf.mxu0
      %1544 = vmatprep.mubr.bf16.mxu0 0
      %1545 = vmatmul.mubr.bf16.gmra.mxu0 %v1481
      %v1546 = vpop.f32.mrf.mxu0
      %v1547 = vadd.f32 %v737, %v1546
      %v1548 = vpop.f32.mrf.mxu0
      %v1549 = vpop.f32.mrf.mxu0
      %v1550 = vadd.f32 %v738, %v1549
      %v1551 = vpop.f32.mrf.mxu0
      %1552 = vmatprep.mubr.bf16.mxu0 0
      %1553 = vmatmul.mubr.bf16.gmra.mxu0 %v1484
      %v1554 = vpop.f32.mrf.mxu0
      %v1555 = vadd.f32 %v739, %v1554
      %v1556 = vpop.f32.mrf.mxu0
      %v1557 = vpop.f32.mrf.mxu0
      %v1558 = vadd.f32 %v740, %v1557
      %v1559 = vpop.f32.mrf.mxu0
      %1560 = vmatprep.mubr.bf16.mxu0 0
      %1561 = vmatmul.mubr.bf16.gmra.mxu0 %v1487
      %v1562 = vpop.f32.mrf.mxu0
      %v1563 = vadd.f32 %v741, %v1562
      %v1564 = vpop.f32.mrf.mxu0
      %v1565 = vpop.f32.mrf.mxu0
      %v1566 = vadd.f32 %v742, %v1565
      %v1567 = vpop.f32.mrf.mxu0
      %1568 = vmatprep.mubr.bf16.mxu0 0
      %1569 = vmatmul.mubr.bf16.gmra.mxu0 %v1490
      %v1570 = vpop.f32.mrf.mxu0
      %v1571 = vadd.f32 %v743, %v1570
      %v1572 = vpop.f32.mrf.mxu0
      %v1573 = vpop.f32.mrf.mxu0
      %v1574 = vadd.f32 %v744, %v1573
      %v1575 = vpop.f32.mrf.mxu0
      %1576 = vmatprep.mubr.bf16.mxu0 0
      %1577 = vmatmul.mubr.bf16.gmra.mxu0 %v1493
      %v1578 = vpop.f32.mrf.mxu0
      %v1579 = vadd.f32 %v745, %v1578
      %v1580 = vpop.f32.mrf.mxu0
      %v1581 = vpop.f32.mrf.mxu0
      %v1582 = vadd.f32 %v746, %v1581
      %v1583 = vpop.f32.mrf.mxu0
      %1584 = vmatprep.mubr.bf16.mxu0 0
      %1585 = vmatmul.mubr.bf16.gmra.mxu0 %v1496
      %v1586 = vpop.f32.mrf.mxu0
      %v1587 = vadd.f32 %v747, %v1586
      %v1588 = vpop.f32.mrf.mxu0
      %v1589 = vpop.f32.mrf.mxu0
      %v1590 = vadd.f32 %v748, %v1589
      %v1591 = vpop.f32.mrf.mxu0
      %1592 = vmatprep.mubr.bf16.mxu0 0
      %1593 = vmatmul.mubr.bf16.gmra.mxu0 %v1499
      %v1594 = vpop.f32.mrf.mxu0
      %v1595 = vadd.f32 %v749, %v1594
      %v1596 = vpop.f32.mrf.mxu0
      %v1597 = vpop.f32.mrf.mxu0
      %v1598 = vadd.f32 %v750, %v1597
      %v1599 = vpop.f32.mrf.mxu0
      %1600 = vdwg.mxu0
      %v1601 = vmax.f32 %v1539, %v1555
      %v1602 = vmax.f32 %v1542, %v1558
      %v1603 = vmax.f32 %v1547, %v1563
      %v1604 = vmax.f32 %v1550, %v1566
      %v1605 = vmax.f32 %v1601, %v1571
      %v1606 = vmax.f32 %v1602, %v1574
      %v1607 = vmax.f32 %v1603, %v1579
      %v1608 = vmax.f32 %v1604, %v1582
      %v1609 = vmax.f32 %v1605, %v1587
      %v1610 = vmax.f32 %v1606, %v1590
      %v1611 = vmax.f32 %v1607, %v1595
      %v1612 = vmax.f32 %v1608, %v1598
      %v1613 = vmax.f32 %v1609, %v1610
      %v1614 = vmax.f32 %v1611, %v1612
      %v1615 = vmax.f32 %v1613, %v1614
      %v1616 = vrot.slane %v1615, 4
      %v1617 = vmax.f32 %v1615, %v1616
      %v1618 = vrot.slane %v1617, 2
      %v1619 = vmax.f32 %v1617, %v1618
      %v1620 = vrot.slane %v1619, 1
      %v1621 = vmax.f32 %v1619, %v1620
      %v1622 = vsub.f32 %v1539, %v1621
      %v1623 = vsub.f32 %v1542, %v1621
      %v1624 = vsub.f32 %v1547, %v1621
      %v1625 = vsub.f32 %v1550, %v1621
      %v1626 = vsub.f32 %v1555, %v1621
      %v1627 = vsub.f32 %v1558, %v1621
      %v1628 = vsub.f32 %v1563, %v1621
      %v1629 = vsub.f32 %v1566, %v1621
      %v1630 = vsub.f32 %v1571, %v1621
      %v1631 = vsub.f32 %v1574, %v1621
      %v1632 = vsub.f32 %v1579, %v1621
      %v1633 = vsub.f32 %v1582, %v1621
      %v1634 = vsub.f32 %v1587, %v1621
      %v1635 = vsub.f32 %v1590, %v1621
      %v1636 = vsub.f32 %v1595, %v1621
      %v1637 = vsub.f32 %v1598, %v1621
      %v1638 = vmul.f32 %v1622, 1.442695
      %v1639 = vpow.pop %v1638
      %v1640 = vmul.f32 %v1623, 1.442695
      %v1641 = vpow.pop %v1640
      %v1642 = vmul.f32 %v1624, 1.442695
      %v1643 = vpow.pop %v1642
      %v1644 = vmul.f32 %v1625, 1.442695
      %v1645 = vpow.pop %v1644
      %v1646 = vmul.f32 %v1626, 1.442695
      %v1647 = vpow.pop %v1646
      %v1648 = vmul.f32 %v1627, 1.442695
      %v1649 = vpow.pop %v1648
      %v1650 = vmul.f32 %v1628, 1.442695
      %v1651 = vpow.pop %v1650
      %v1652 = vmul.f32 %v1629, 1.442695
      %v1653 = vpow.pop %v1652
      %v1654 = vmul.f32 %v1630, 1.442695
      %v1655 = vpow.pop %v1654
      %v1656 = vmul.f32 %v1631, 1.442695
      %v1657 = vpow.pop %v1656
      %v1658 = vmul.f32 %v1632, 1.442695
      %v1659 = vpow.pop %v1658
      %v1660 = vmul.f32 %v1633, 1.442695
      %v1661 = vpow.pop %v1660
      %v1662 = vmul.f32 %v1634, 1.442695
      %v1663 = vpow.pop %v1662
      %v1664 = vmul.f32 %v1635, 1.442695
      %v1665 = vpow.pop %v1664
      %v1666 = vmul.f32 %v1636, 1.442695
      %v1667 = vpow.pop %v1666
      %v1668 = vmul.f32 %v1637, 1.442695
      %v1669 = vpow.pop %v1668
      %v1670 = vadd.f32 %v1639, %v1641
      %v1671 = vadd.f32 %v1670, %v1643
      %v1672 = vadd.f32 %v1671, %v1645
      %v1673 = vadd.f32 %v1672, %v1647
      %v1674 = vadd.f32 %v1673, %v1649
      %v1675 = vadd.f32 %v1674, %v1651
      %v1676 = vadd.f32 %v1675, %v1653
      %v1677 = vadd.f32 %v1676, %v1655
      %v1678 = vadd.f32 %v1677, %v1657
      %v1679 = vadd.f32 %v1678, %v1659
      %v1680 = vadd.f32 %v1679, %v1661
      %v1681 = vadd.f32 %v1680, %v1663
      %v1682 = vadd.f32 %v1681, %v1665
      %v1683 = vadd.f32 %v1682, %v1667
      %v1684 = vadd.f32 %v1683, %v1669
      %v1685 = vrot.slane %v1684, 4
      %v1686 = vadd.f32 %v1684, %v1685
      %v1687 = vrot.slane %v1686, 2
      %v1688 = vadd.f32 %v1686, %v1687
      %v1689 = vrot.slane %v1688, 1
      %v1690 = vadd.f32 %v1688, %v1689
      %v1691 = vrcp.pop %v1690
      %v1692 = vpack.c.bf16 %v1641, %v1639
      %v1693 = vpack.c.bf16 %v1645, %v1643
      %v1694 = vpack.c.bf16 %v1649, %v1647
      %v1695 = vpack.c.bf16 %v1653, %v1651
      %v1696 = vpack.c.bf16 %v1657, %v1655
      %v1697 = vpack.c.bf16 %v1661, %v1659
      %v1698 = vpack.c.bf16 %v1665, %v1663
      %v1699 = vpack.c.bf16 %v1669, %v1667
      %1700 = vmatprep.subr.bf16.mxu0 0
      %1701 = vmatpush1.bf16.msra.mxu0 %v1699
      %1702 = vmatprep.subr.bf16.mxu0 0
      %1703 = vmatpush1.bf16.msra.mxu0 %v1698
      %1704 = vmatprep.subr.bf16.mxu0 0
      %1705 = vmatpush1.bf16.msra.mxu0 %v1697
      %1706 = vmatprep.subr.bf16.mxu0 0
      %1707 = vmatpush1.bf16.msra.mxu0 %v1696
      %1708 = vmatprep.subr.bf16.mxu0 0
      %1709 = vmatpush1.bf16.msra.mxu0 %v1695
      %1710 = vmatprep.subr.bf16.mxu0 0
      %1711 = vmatpush1.bf16.msra.mxu0 %v1694
      %1712 = vmatprep.subr.bf16.mxu0 0
      %1713 = vmatpush1.bf16.msra.mxu0 %v1693
      %1714 = vmatprep.subr.bf16.mxu0 0
      %1715 = vmatpush1.bf16.msra.mxu0 %v1692
      %1716 = vmatprep.subr.bf16.mxu0 0
      %1717 = vmatpush2.bf16.msra.mxu0 0
      %1718 = vmatprep.subr.bf16.mxu0 0
      %1719 = vmatpush2.bf16.msra.mxu0 0
      %1720 = vmatprep.subr.bf16.mxu0 0
      %1721 = vmatpush2.bf16.msra.mxu0 0
      %1722 = vmatprep.subr.bf16.mxu0 0
      %1723 = vmatpush2.bf16.msra.mxu0 0
      %1724 = vmatprep.subr.bf16.mxu0 0
      %1725 = vmatpush2.bf16.msra.mxu0 0
      %1726 = vmatprep.subr.bf16.mxu0 0
      %1727 = vmatpush2.bf16.msra.mxu0 0
      %1728 = vmatprep.subr.bf16.mxu0 0
      %1729 = vmatpush2.bf16.msra.mxu0 0
      %1730 = vmatprep.subr.bf16.mxu0 0
      %1731 = vmatpush2.bf16.msra.mxu0 0
      %1732 = vmatprep.mubr.bf16.mxu0 0
      %1733 = vmatmul.mubr.bf16.gmra.mxu0 %v710
      %v1734 = vpop.f32.mrf.mxu0
      %v1735 = vadd.f32 0.0, %v1734
      %v1736 = vpop.f32.mrf.mxu0
      %v1737 = vpop.f32.mrf.mxu0
      %v1738 = vpop.f32.mrf.mxu0
      %1739 = vdwg.mxu0
      %v1740 = vmul.f32 %v1735, %v1691
      %v1741 = vpack.c.bf16 %v1740, %v1740
      %1742 = vrot.lane.b32.xlu0 %v1042, 112
      %v1743 = vpop.permute.xlu0 %1742
      %1744 = vrot.lane.b32.xlu0 %v1043, 112
      %v1745 = vpop.permute.xlu0 %1744
      %v1747 = vsel %vm767, %v1743, 0
      %v1750 = vsel %vm767, %v1745, 0
      %v1753 = vsel %vm792, %v1741, 0
      %1755 = vmatprep.subr.bf16.mxu0 0
      %1756 = vmatpush1.bf16.msra.mxu0 0
      %1757 = vmatprep.subr.bf16.mxu0 0
      %1758 = vmatpush1.bf16.msra.mxu0 0
      %1759 = vmatprep.subr.bf16.mxu0 0
      %1760 = vmatpush1.bf16.msra.mxu0 0
      %1761 = vmatprep.subr.bf16.mxu0 0
      %1762 = vmatpush1.bf16.msra.mxu0 0
      %1763 = vmatprep.subr.bf16.mxu0 0
      %1764 = vmatpush1.bf16.msra.mxu0 0
      %1765 = vmatprep.subr.bf16.mxu0 0
      %1766 = vmatpush1.bf16.msra.mxu0 0
      %1767 = vmatprep.subr.bf16.mxu0 0
      %1768 = vmatpush1.bf16.msra.mxu0 0
      %1769 = vmatprep.subr.bf16.mxu0 0
      %1770 = vmatpush1.bf16.msra.mxu0 %v1753
      %1771 = vmatprep.subr.bf16.mxu0 0
      %1772 = vmatpush2.bf16.msra.mxu0 0
      %1773 = vmatprep.subr.bf16.mxu0 0
      %1774 = vmatpush2.bf16.msra.mxu0 0
      %1775 = vmatprep.subr.bf16.mxu0 0
      %1776 = vmatpush2.bf16.msra.mxu0 0
      %1777 = vmatprep.subr.bf16.mxu0 0
      %1778 = vmatpush2.bf16.msra.mxu0 0
      %1779 = vmatprep.subr.bf16.mxu0 0
      %1780 = vmatpush2.bf16.msra.mxu0 0
      %1781 = vmatprep.subr.bf16.mxu0 0
      %1782 = vmatpush2.bf16.msra.mxu0 0
      %1783 = vmatprep.subr.bf16.mxu0 0
      %1784 = vmatpush2.bf16.msra.mxu0 0
      %1785 = vmatprep.subr.bf16.mxu0 0
      %1786 = vmatpush2.bf16.msra.mxu0 0
      %1787 = vmatprep.mubr.bf16.mxu0 0
      %1788 = vmatmul.mubr.bf16.gmra.mxu0 %v1747
      %v1789 = vpop.f32.mrf.mxu0
      %v1790 = vadd.f32 0.0, %v1789
      %v1791 = vpop.f32.mrf.mxu0
      %v1792 = vpop.f32.mrf.mxu0
      %v1793 = vadd.f32 0.0, %v1792
      %v1794 = vpop.f32.mrf.mxu0
      %1795 = vmatprep.mubr.bf16.mxu0 0
      %1796 = vmatmul.mubr.bf16.gmra.mxu0 %v1750
      %v1797 = vpop.f32.mrf.mxu0
      %v1798 = vadd.f32 0.0, %v1797
      %v1799 = vpop.f32.mrf.mxu0
      %v1800 = vpop.f32.mrf.mxu0
      %v1801 = vadd.f32 0.0, %v1800
      %v1802 = vpop.f32.mrf.mxu0
      %1803 = vdwg.mxu0
      %v1804 = vadd.f32 %v1457, %v1790
      %v1805 = vadd.f32 %v1458, %v1793
      %v1806 = vadd.f32 %v1459, %v1798
      %v1807 = vadd.f32 %v1460, %v1801
      %v1809 = vrot.slane %v708, 4
      %1811 = vxpose.xlu0.c.b16.start [1/8] %v1809, 128
      %1812 = vxpose.xlu0.c.b16.cont [2/8] 0, 128
      %1813 = vxpose.xlu0.c.b16.cont [3/8] 0, 128
      %1814 = vxpose.xlu0.c.b16.cont [4/8] 0, 128
      %1815 = vxpose.xlu0.c.b16.cont [5/8] 0, 128
      %1816 = vxpose.xlu0.c.b16.cont [6/8] 0, 128
      %1817 = vxpose.xlu0.c.b16.cont [7/8] 0, 128
      %1818 = vxpose.xlu0.c.b16.end [8/8] 0, 128
      %v1819 = vpop.trf.xlu0
      %v1820 = vpop.trf.xlu0
      %v1821 = vpop.trf.xlu0
      %v1822 = vpop.trf.xlu0
      %v1823 = vpop.trf.xlu0
      %v1824 = vpop.trf.xlu0
      %v1825 = vpop.trf.xlu0
      %v1826 = vpop.trf.xlu0
      %v1828 = vrot.slane %v706, 4
      %v1830 = vsel %vm767, %v1819, 0
      %v1833 = vsel %vm767, %v1820, 0
      %v1836 = vsel %vm767, %v1821, 0
      %v1839 = vsel %vm767, %v1822, 0
      %v1842 = vsel %vm767, %v1823, 0
      %v1845 = vsel %vm767, %v1824, 0
      %v1848 = vsel %vm767, %v1825, 0
      %v1851 = vsel %vm767, %v1826, 0
      %v1854 = vsel %vm792, %v1828, 0
      %1856 = vmatprep.subr.bf16.mxu0 0
      %1857 = vmatpush1.bf16.msra.mxu0 0
      %1858 = vmatprep.subr.bf16.mxu0 0
      %1859 = vmatpush1.bf16.msra.mxu0 0
      %1860 = vmatprep.subr.bf16.mxu0 0
      %1861 = vmatpush1.bf16.msra.mxu0 0
      %1862 = vmatprep.subr.bf16.mxu0 0
      %1863 = vmatpush1.bf16.msra.mxu0 0
      %1864 = vmatprep.subr.bf16.mxu0 0
      %1865 = vmatpush1.bf16.msra.mxu0 0
      %1866 = vmatprep.subr.bf16.mxu0 0
      %1867 = vmatpush1.bf16.msra.mxu0 0
      %1868 = vmatprep.subr.bf16.mxu0 0
      %1869 = vmatpush1.bf16.msra.mxu0 0
      %1870 = vmatprep.subr.bf16.mxu0 0
      %1871 = vmatpush1.bf16.msra.mxu0 %v1854
      %1872 = vmatprep.subr.bf16.mxu0 0
      %1873 = vmatpush2.bf16.msra.mxu0 0
      %1874 = vmatprep.subr.bf16.mxu0 0
      %1875 = vmatpush2.bf16.msra.mxu0 0
      %1876 = vmatprep.subr.bf16.mxu0 0
      %1877 = vmatpush2.bf16.msra.mxu0 0
      %1878 = vmatprep.subr.bf16.mxu0 0
      %1879 = vmatpush2.bf16.msra.mxu0 0
      %1880 = vmatprep.subr.bf16.mxu0 0
      %1881 = vmatpush2.bf16.msra.mxu0 0
      %1882 = vmatprep.subr.bf16.mxu0 0
      %1883 = vmatpush2.bf16.msra.mxu0 0
      %1884 = vmatprep.subr.bf16.mxu0 0
      %1885 = vmatpush2.bf16.msra.mxu0 0
      %1886 = vmatprep.subr.bf16.mxu0 0
      %1887 = vmatpush2.bf16.msra.mxu0 0
      %1888 = vmatprep.mubr.bf16.mxu0 0
      %1889 = vmatmul.mubr.bf16.gmra.mxu0 %v1830
      %v1890 = vpop.f32.mrf.mxu0
      %v1891 = vadd.f32 %v735, %v1890
      %v1892 = vpop.f32.mrf.mxu0
      %v1893 = vpop.f32.mrf.mxu0
      %v1894 = vadd.f32 %v736, %v1893
      %v1895 = vpop.f32.mrf.mxu0
      %1896 = vmatprep.mubr.bf16.mxu0 0
      %1897 = vmatmul.mubr.bf16.gmra.mxu0 %v1833
      %v1898 = vpop.f32.mrf.mxu0
      %v1899 = vadd.f32 %v737, %v1898
      %v1900 = vpop.f32.mrf.mxu0
      %v1901 = vpop.f32.mrf.mxu0
      %v1902 = vadd.f32 %v738, %v1901
      %v1903 = vpop.f32.mrf.mxu0
      %1904 = vmatprep.mubr.bf16.mxu0 0
      %1905 = vmatmul.mubr.bf16.gmra.mxu0 %v1836
      %v1906 = vpop.f32.mrf.mxu0
      %v1907 = vadd.f32 %v739, %v1906
      %v1908 = vpop.f32.mrf.mxu0
      %v1909 = vpop.f32.mrf.mxu0
      %v1910 = vadd.f32 %v740, %v1909
      %v1911 = vpop.f32.mrf.mxu0
      %1912 = vmatprep.mubr.bf16.mxu0 0
      %1913 = vmatmul.mubr.bf16.gmra.mxu0 %v1839
      %v1914 = vpop.f32.mrf.mxu0
      %v1915 = vadd.f32 %v741, %v1914
      %v1916 = vpop.f32.mrf.mxu0
      %v1917 = vpop.f32.mrf.mxu0
      %v1918 = vadd.f32 %v742, %v1917
      %v1919 = vpop.f32.mrf.mxu0
      %1920 = vmatprep.mubr.bf16.mxu0 0
      %1921 = vmatmul.mubr.bf16.gmra.mxu0 %v1842
      %v1922 = vpop.f32.mrf.mxu0
      %v1923 = vadd.f32 %v743, %v1922
      %v1924 = vpop.f32.mrf.mxu0
      %v1925 = vpop.f32.mrf.mxu0
      %v1926 = vadd.f32 %v744, %v1925
      %v1927 = vpop.f32.mrf.mxu0
      %1928 = vmatprep.mubr.bf16.mxu0 0
      %1929 = vmatmul.mubr.bf16.gmra.mxu0 %v1845
      %v1930 = vpop.f32.mrf.mxu0
      %v1931 = vadd.f32 %v745, %v1930
      %v1932 = vpop.f32.mrf.mxu0
      %v1933 = vpop.f32.mrf.mxu0
      %v1934 = vadd.f32 %v746, %v1933
      %v1935 = vpop.f32.mrf.mxu0
      %1936 = vmatprep.mubr.bf16.mxu0 0
      %1937 = vmatmul.mubr.bf16.gmra.mxu0 %v1848
      %v1938 = vpop.f32.mrf.mxu0
      %v1939 = vadd.f32 %v747, %v1938
      %v1940 = vpop.f32.mrf.mxu0
      %v1941 = vpop.f32.mrf.mxu0
      %v1942 = vadd.f32 %v748, %v1941
      %v1943 = vpop.f32.mrf.mxu0
      %1944 = vmatprep.mubr.bf16.mxu0 0
      %1945 = vmatmul.mubr.bf16.gmra.mxu0 %v1851
      %v1946 = vpop.f32.mrf.mxu0
      %v1947 = vadd.f32 %v749, %v1946
      %v1948 = vpop.f32.mrf.mxu0
      %v1949 = vpop.f32.mrf.mxu0
      %v1950 = vadd.f32 %v750, %v1949
      %v1951 = vpop.f32.mrf.mxu0
      %1952 = vdwg.mxu0
      %v1953 = vmax.f32 %v1891, %v1907
      %v1954 = vmax.f32 %v1894, %v1910
      %v1955 = vmax.f32 %v1899, %v1915
      %v1956 = vmax.f32 %v1902, %v1918
      %v1957 = vmax.f32 %v1953, %v1923
      %v1958 = vmax.f32 %v1954, %v1926
      %v1959 = vmax.f32 %v1955, %v1931
      %v1960 = vmax.f32 %v1956, %v1934
      %v1961 = vmax.f32 %v1957, %v1939
      %v1962 = vmax.f32 %v1958, %v1942
      %v1963 = vmax.f32 %v1959, %v1947
      %v1964 = vmax.f32 %v1960, %v1950
      %v1965 = vmax.f32 %v1961, %v1962
      %v1966 = vmax.f32 %v1963, %v1964
      %v1967 = vmax.f32 %v1965, %v1966
      %v1968 = vrot.slane %v1967, 4
      %v1969 = vmax.f32 %v1967, %v1968
      %v1970 = vrot.slane %v1969, 2
      %v1971 = vmax.f32 %v1969, %v1970
      %v1972 = vrot.slane %v1971, 1
      %v1973 = vmax.f32 %v1971, %v1972
      %v1974 = vsub.f32 %v1891, %v1973
      %v1975 = vsub.f32 %v1894, %v1973
      %v1976 = vsub.f32 %v1899, %v1973
      %v1977 = vsub.f32 %v1902, %v1973
      %v1978 = vsub.f32 %v1907, %v1973
      %v1979 = vsub.f32 %v1910, %v1973
      %v1980 = vsub.f32 %v1915, %v1973
      %v1981 = vsub.f32 %v1918, %v1973
      %v1982 = vsub.f32 %v1923, %v1973
      %v1983 = vsub.f32 %v1926, %v1973
      %v1984 = vsub.f32 %v1931, %v1973
      %v1985 = vsub.f32 %v1934, %v1973
      %v1986 = vsub.f32 %v1939, %v1973
      %v1987 = vsub.f32 %v1942, %v1973
      %v1988 = vsub.f32 %v1947, %v1973
      %v1989 = vsub.f32 %v1950, %v1973
      %v1990 = vmul.f32 %v1974, 1.442695
      %v1991 = vpow.pop %v1990
      %v1992 = vmul.f32 %v1975, 1.442695
      %v1993 = vpow.pop %v1992
      %v1994 = vmul.f32 %v1976, 1.442695
      %v1995 = vpow.pop %v1994
      %v1996 = vmul.f32 %v1977, 1.442695
      %v1997 = vpow.pop %v1996
      %v1998 = vmul.f32 %v1978, 1.442695
      %v1999 = vpow.pop %v1998
      %v2000 = vmul.f32 %v1979, 1.442695
      %v2001 = vpow.pop %v2000
      %v2002 = vmul.f32 %v1980, 1.442695
      %v2003 = vpow.pop %v2002
      %v2004 = vmul.f32 %v1981, 1.442695
      %v2005 = vpow.pop %v2004
      %v2006 = vmul.f32 %v1982, 1.442695
      %v2007 = vpow.pop %v2006
      %v2008 = vmul.f32 %v1983, 1.442695
      %v2009 = vpow.pop %v2008
      %v2010 = vmul.f32 %v1984, 1.442695
      %v2011 = vpow.pop %v2010
      %v2012 = vmul.f32 %v1985, 1.442695
      %v2013 = vpow.pop %v2012
      %v2014 = vmul.f32 %v1986, 1.442695
      %v2015 = vpow.pop %v2014
      %v2016 = vmul.f32 %v1987, 1.442695
      %v2017 = vpow.pop %v2016
      %v2018 = vmul.f32 %v1988, 1.442695
      %v2019 = vpow.pop %v2018
      %v2020 = vmul.f32 %v1989, 1.442695
      %v2021 = vpow.pop %v2020
      %v2022 = vadd.f32 %v1991, %v1993
      %v2023 = vadd.f32 %v2022, %v1995
      %v2024 = vadd.f32 %v2023, %v1997
      %v2025 = vadd.f32 %v2024, %v1999
      %v2026 = vadd.f32 %v2025, %v2001
      %v2027 = vadd.f32 %v2026, %v2003
      %v2028 = vadd.f32 %v2027, %v2005
      %v2029 = vadd.f32 %v2028, %v2007
      %v2030 = vadd.f32 %v2029, %v2009
      %v2031 = vadd.f32 %v2030, %v2011
      %v2032 = vadd.f32 %v2031, %v2013
      %v2033 = vadd.f32 %v2032, %v2015
      %v2034 = vadd.f32 %v2033, %v2017
      %v2035 = vadd.f32 %v2034, %v2019
      %v2036 = vadd.f32 %v2035, %v2021
      %v2037 = vrot.slane %v2036, 4
      %v2038 = vadd.f32 %v2036, %v2037
      %v2039 = vrot.slane %v2038, 2
      %v2040 = vadd.f32 %v2038, %v2039
      %v2041 = vrot.slane %v2040, 1
      %v2042 = vadd.f32 %v2040, %v2041
      %v2043 = vrcp.pop %v2042
      %v2044 = vpack.c.bf16 %v1993, %v1991
      %v2045 = vpack.c.bf16 %v1997, %v1995
      %v2046 = vpack.c.bf16 %v2001, %v1999
      %v2047 = vpack.c.bf16 %v2005, %v2003
      %v2048 = vpack.c.bf16 %v2009, %v2007
      %v2049 = vpack.c.bf16 %v2013, %v2011
      %v2050 = vpack.c.bf16 %v2017, %v2015
      %v2051 = vpack.c.bf16 %v2021, %v2019
      %v2053 = vrot.slane %v710, 4
      %2055 = vmatprep.subr.bf16.mxu0 0
      %2056 = vmatpush1.bf16.msra.mxu0 %v2051
      %2057 = vmatprep.subr.bf16.mxu0 0
      %2058 = vmatpush1.bf16.msra.mxu0 %v2050
      %2059 = vmatprep.subr.bf16.mxu0 0
      %2060 = vmatpush1.bf16.msra.mxu0 %v2049
      %2061 = vmatprep.subr.bf16.mxu0 0
      %2062 = vmatpush1.bf16.msra.mxu0 %v2048
      %2063 = vmatprep.subr.bf16.mxu0 0
      %2064 = vmatpush1.bf16.msra.mxu0 %v2047
      %2065 = vmatprep.subr.bf16.mxu0 0
      %2066 = vmatpush1.bf16.msra.mxu0 %v2046
      %2067 = vmatprep.subr.bf16.mxu0 0
      %2068 = vmatpush1.bf16.msra.mxu0 %v2045
      %2069 = vmatprep.subr.bf16.mxu0 0
      %2070 = vmatpush1.bf16.msra.mxu0 %v2044
      %2071 = vmatprep.subr.bf16.mxu0 0
      %2072 = vmatpush2.bf16.msra.mxu0 0
      %2073 = vmatprep.subr.bf16.mxu0 0
      %2074 = vmatpush2.bf16.msra.mxu0 0
      %2075 = vmatprep.subr.bf16.mxu0 0
      %2076 = vmatpush2.bf16.msra.mxu0 0
      %2077 = vmatprep.subr.bf16.mxu0 0
      %2078 = vmatpush2.bf16.msra.mxu0 0
      %2079 = vmatprep.subr.bf16.mxu0 0
      %2080 = vmatpush2.bf16.msra.mxu0 0
      %2081 = vmatprep.subr.bf16.mxu0 0
      %2082 = vmatpush2.bf16.msra.mxu0 0
      %2083 = vmatprep.subr.bf16.mxu0 0
      %2084 = vmatpush2.bf16.msra.mxu0 0
      %2085 = vmatprep.subr.bf16.mxu0 0
      %2086 = vmatpush2.bf16.msra.mxu0 0
      %2087 = vmatprep.mubr.bf16.mxu0 0
      %2088 = vmatmul.mubr.bf16.gmra.mxu0 %v2053
      %v2089 = vpop.f32.mrf.mxu0
      %v2090 = vadd.f32 0.0, %v2089
      %v2091 = vpop.f32.mrf.mxu0
      %v2092 = vpop.f32.mrf.mxu0
      %v2093 = vpop.f32.mrf.mxu0
      %2094 = vdwg.mxu0
      %v2095 = vmul.f32 %v2090, %v2043
      %v2096 = vpack.c.bf16 %v2095, %v2095
      %2097 = vrot.lane.b32.xlu0 %v1042, 104
      %v2098 = vpop.permute.xlu0 %2097
      %2099 = vrot.lane.b32.xlu0 %v1043, 104
      %v2100 = vpop.permute.xlu0 %2099
      %v2102 = vsel %vm767, %v2098, 0
      %v2105 = vsel %vm767, %v2100, 0
      %v2108 = vsel %vm792, %v2096, 0
      %2110 = vmatprep.subr.bf16.mxu0 0
      %2111 = vmatpush1.bf16.msra.mxu0 0
      %2112 = vmatprep.subr.bf16.mxu0 0
      %2113 = vmatpush1.bf16.msra.mxu0 0
      %2114 = vmatprep.subr.bf16.mxu0 0
      %2115 = vmatpush1.bf16.msra.mxu0 0
      %2116 = vmatprep.subr.bf16.mxu0 0
      %2117 = vmatpush1.bf16.msra.mxu0 0
      %2118 = vmatprep.subr.bf16.mxu0 0
      %2119 = vmatpush1.bf16.msra.mxu0 0
      %2120 = vmatprep.subr.bf16.mxu0 0
      %2121 = vmatpush1.bf16.msra.mxu0 0
      %2122 = vmatprep.subr.bf16.mxu0 0
      %2123 = vmatpush1.bf16.msra.mxu0 0
      %2124 = vmatprep.subr.bf16.mxu0 0
      %2125 = vmatpush1.bf16.msra.mxu0 %v2108
      %2126 = vmatprep.subr.bf16.mxu0 0
      %2127 = vmatpush2.bf16.msra.mxu0 0
      %2128 = vmatprep.subr.bf16.mxu0 0
      %2129 = vmatpush2.bf16.msra.mxu0 0
      %2130 = vmatprep.subr.bf16.mxu0 0
      %2131 = vmatpush2.bf16.msra.mxu0 0
      %2132 = vmatprep.subr.bf16.mxu0 0
      %2133 = vmatpush2.bf16.msra.mxu0 0
      %2134 = vmatprep.subr.bf16.mxu0 0
      %2135 = vmatpush2.bf16.msra.mxu0 0
      %2136 = vmatprep.subr.bf16.mxu0 0
      %2137 = vmatpush2.bf16.msra.mxu0 0
      %2138 = vmatprep.subr.bf16.mxu0 0
      %2139 = vmatpush2.bf16.msra.mxu0 0
      %2140 = vmatprep.subr.bf16.mxu0 0
      %2141 = vmatpush2.bf16.msra.mxu0 0
      %2142 = vmatprep.mubr.bf16.mxu0 0
      %2143 = vmatmul.mubr.bf16.gmra.mxu0 %v2102
      %v2144 = vpop.f32.mrf.mxu0
      %v2145 = vadd.f32 0.0, %v2144
      %v2146 = vpop.f32.mrf.mxu0
      %v2147 = vpop.f32.mrf.mxu0
      %v2148 = vadd.f32 0.0, %v2147
      %v2149 = vpop.f32.mrf.mxu0
      %2150 = vmatprep.mubr.bf16.mxu0 0
      %2151 = vmatmul.mubr.bf16.gmra.mxu0 %v2105
      %v2152 = vpop.f32.mrf.mxu0
      %v2153 = vadd.f32 0.0, %v2152
      %v2154 = vpop.f32.mrf.mxu0
      %v2155 = vpop.f32.mrf.mxu0
      %v2156 = vadd.f32 0.0, %v2155
      %v2157 = vpop.f32.mrf.mxu0
      %2158 = vdwg.mxu0
      %v2159 = vadd.f32 %v1804, %v2145
      %v2160 = vadd.f32 %v1805, %v2148
      %v2161 = vadd.f32 %v1806, %v2153
      %v2162 = vadd.f32 %v1807, %v2156
      %v2163 = vld [vmem:[%s4] sm:$0xf]
      %v2164 = vld [vmem:[%s4 + $0x4] sm:$0xf]
      %v2165 = vld [vmem:[%s4 + $0x8] sm:$0xf]
      %v2166 = vld [vmem:[%s4 + $0xc] sm:$0xf]
      %v2167 = vld [vmem:[%s4 + $0x10] sm:$0xf]
      %v2168 = vld [vmem:[%s4 + $0x14] sm:$0xf]
      %v2169 = vld [vmem:[%s4 + $0x18] sm:$0xf]
      %v2170 = vld [vmem:[%s4 + $0x1c] sm:$0xf]
      %v2171 = vld [vmem:[%s4 + $0x20] sm:$0xf]
      %v2172 = vld [vmem:[%s4 + $0x24] sm:$0xf]
      %v2173 = vld [vmem:[%s4 + $0x28] sm:$0xf]
      %v2174 = vld [vmem:[%s4 + $0x2c] sm:$0xf]
      %v2175 = vld [vmem:[%s4 + $0x30] sm:$0xf]
      %v2176 = vld [vmem:[%s4 + $0x34] sm:$0xf]
      %v2177 = vld [vmem:[%s4 + $0x38] sm:$0xf]
      %v2178 = vld [vmem:[%s4 + $0x3c] sm:$0xf]
      %v2179 = vld [vmem:[%s5] sm:$0xf]
      %v2180 = vld [vmem:[%s5 + $0x4] sm:$0xf]
      %v2181 = vld [vmem:[%s5 + $0x8] sm:$0xf]
      %v2182 = vld [vmem:[%s5 + $0xc] sm:$0xf]
      %v2183 = vld [vmem:[%s6] sm:$0xff]
      %v2184 = vld [vmem:[%s6 + $0x8] sm:$0xff]
      %v2185 = vld [vmem:[%s6 + $0x10] sm:$0xff]
      %v2186 = vld [vmem:[%s6 + $0x18] sm:$0xff]
      %v2187 = vld [vmem:[%s6 + $0x20] sm:$0xff]
      %v2188 = vld [vmem:[%s6 + $0x28] sm:$0xff]
      %v2189 = vld [vmem:[%s6 + $0x30] sm:$0xff]
      %v2190 = vld [vmem:[%s6 + $0x38] sm:$0xff]
      %v2191 = vld [vmem:[%s6 + $0x40] sm:$0xff]
      %v2192 = vld [vmem:[%s6 + $0x48] sm:$0xff]
      %v2193 = vld [vmem:[%s6 + $0x50] sm:$0xff]
      %v2194 = vld [vmem:[%s6 + $0x58] sm:$0xff]
      %v2195 = vld [vmem:[%s6 + $0x60] sm:$0xff]
      %v2196 = vld [vmem:[%s6 + $0x68] sm:$0xff]
      %v2197 = vld [vmem:[%s6 + $0x70] sm:$0xff]
      %v2198 = vld [vmem:[%s6 + $0x78] sm:$0xff]
      %v2199 = vld [vmem:[%s6 + $0x80] sm:$0xff]
      %v2200 = vld [vmem:[%s6 + $0x88] sm:$0xff]
      %v2201 = vld [vmem:[%s6 + $0x90] sm:$0xff]
      %v2202 = vld [vmem:[%s6 + $0x98] sm:$0xff]
      %v2203 = vadd.f32 %v2159, %v2160
      %v2204 = vadd.f32 %v2203, %v2161
      %v2205 = vadd.f32 %v2204, %v2162
      %v2206 = vrot.slane %v2205, 4
      %v2207 = vadd.f32 %v2205, %v2206
      %v2208 = vrot.slane %v2207, 2
      %v2209 = vadd.f32 %v2207, %v2208
      %v2210 = vrot.slane %v2209, 1
      %v2211 = vadd.f32 %v2209, %v2210
      %v2212 = vmul.f32 %v2211, %v487
      %v2213 = vsub.f32 %v2159, %v2212
      %v2214 = vsub.f32 %v2160, %v2212
      %v2215 = vsub.f32 %v2161, %v2212
      %v2216 = vsub.f32 %v2162, %v2212
      %v2217 = vmul.f32 %v2213, %v2213
      %v2218 = vmul.f32 %v2214, %v2214
      %v2219 = vmul.f32 %v2215, %v2215
      %v2220 = vmul.f32 %v2216, %v2216
      %v2221 = vadd.f32 %v2217, %v2218
      %v2222 = vadd.f32 %v2221, %v2219
      %v2223 = vadd.f32 %v2222, %v2220
      %v2224 = vrot.slane %v2223, 4
      %v2225 = vadd.f32 %v2223, %v2224
      %v2226 = vrot.slane %v2225, 2
      %v2227 = vadd.f32 %v2225, %v2226
      %v2228 = vrot.slane %v2227, 1
      %v2229 = vadd.f32 %v2227, %v2228
      %v2230 = vmul.f32 %v2229, %v487
      %v2231 = vadd.f32 %v2230, 1e-05
      %v2232 = vrsqrt.pop %v2231
      %v2233 = vmul.f32 %v2213, %v2232
      %v2234 = vmul.f32 %v2214, %v2232
      %v2235 = vmul.f32 %v2215, %v2232
      %v2236 = vmul.f32 %v2216, %v2232
      %v2237 = vpack.c.bf16 %v2234, %v2233
      %v2238 = vpack.c.bf16 %v2236, %v2235
      %2240 = vset.pattern.permute.xlu0 0
      %2241 = vperm.xlu0 %2240, %v2183
      %v2242 = vpop.permute.xlu0 %2241
      %2245 = vset.pattern.permute.xlu0 0
      %2246 = vperm.xlu0 %2245, %v2184
      %v2247 = vpop.permute.xlu0 %2246
      %2250 = vset.pattern.permute.xlu0 0
      %2251 = vperm.xlu0 %2250, %v2185
      %v2252 = vpop.permute.xlu0 %2251
      %2255 = vset.pattern.permute.xlu0 0
      %2256 = vperm.xlu0 %2255, %v2186
      %v2257 = vpop.permute.xlu0 %2256
      %2260 = vset.pattern.permute.xlu0 0
      %2261 = vperm.xlu0 %2260, %v2187
      %v2262 = vpop.permute.xlu0 %2261
      %2265 = vset.pattern.permute.xlu0 0
      %2266 = vperm.xlu0 %2265, %v2188
      %v2267 = vpop.permute.xlu0 %2266
      %2270 = vset.pattern.permute.xlu0 0
      %2271 = vperm.xlu0 %2270, %v2189
      %v2272 = vpop.permute.xlu0 %2271
      %2275 = vset.pattern.permute.xlu0 0
      %2276 = vperm.xlu0 %2275, %v2190
      %v2277 = vpop.permute.xlu0 %2276
      %2280 = vset.pattern.permute.xlu0 0
      %2281 = vperm.xlu0 %2280, %v2191
      %v2282 = vpop.permute.xlu0 %2281
      %2285 = vset.pattern.permute.xlu0 0
      %2286 = vperm.xlu0 %2285, %v2192
      %v2287 = vpop.permute.xlu0 %2286
      %2290 = vset.pattern.permute.xlu0 0
      %2291 = vperm.xlu0 %2290, %v2193
      %v2292 = vpop.permute.xlu0 %2291
      %2295 = vset.pattern.permute.xlu0 0
      %2296 = vperm.xlu0 %2295, %v2194
      %v2297 = vpop.permute.xlu0 %2296
      %2300 = vset.pattern.permute.xlu0 0
      %2301 = vperm.xlu0 %2300, %v2195
      %v2302 = vpop.permute.xlu0 %2301
      %2305 = vset.pattern.permute.xlu0 0
      %2306 = vperm.xlu0 %2305, %v2196
      %v2307 = vpop.permute.xlu0 %2306
      %2310 = vset.pattern.permute.xlu0 0
      %2311 = vperm.xlu0 %2310, %v2197
      %v2312 = vpop.permute.xlu0 %2311
      %2315 = vset.pattern.permute.xlu0 0
      %2316 = vperm.xlu0 %2315, %v2198
      %v2317 = vpop.permute.xlu0 %2316
      %v2335 = vunpack.c.l.b16 %v2163
      %v2336 = vunpack.c.l.b16 %v2164
      %v2337 = vunpack.c.l.b16 %v2165
      %v2338 = vunpack.c.l.b16 %v2166
      %v2339 = vunpack.c.l.b16 %v2167
      %v2340 = vunpack.c.l.b16 %v2168
      %v2341 = vunpack.c.l.b16 %v2169
      %v2342 = vunpack.c.l.b16 %v2170
      %v2343 = vunpack.c.l.b16 %v2171
      %v2344 = vunpack.c.l.b16 %v2172
      %v2345 = vunpack.c.l.b16 %v2173
      %v2346 = vunpack.c.l.b16 %v2174
      %v2347 = vunpack.c.l.b16 %v2175
      %v2348 = vunpack.c.l.b16 %v2176
      %v2349 = vunpack.c.l.b16 %v2177
      %v2350 = vunpack.c.l.b16 %v2178
      %v2351 = vpack.c.b16 %v2336, %v2335
      %v2352 = vpack.c.b16 %v2338, %v2337
      %v2353 = vpack.c.b16 %v2340, %v2339
      %v2354 = vpack.c.b16 %v2342, %v2341
      %v2355 = vpack.c.b16 %v2344, %v2343
      %v2356 = vpack.c.b16 %v2346, %v2345
      %v2357 = vpack.c.b16 %v2348, %v2347
      %v2358 = vpack.c.b16 %v2350, %v2349
      %v2360 = vsel %vm605, %v2351, 0
      %v2363 = vsel %vm605, %v2352, 0
      %v2366 = vsel %vm605, %v2353, 0
      %v2369 = vsel %vm605, %v2354, 0
      %v2372 = vsel %vm605, %v2355, 0
      %v2375 = vsel %vm605, %v2356, 0
      %v2378 = vsel %vm605, %v2357, 0
      %v2381 = vsel %vm605, %v2358, 0
      %2383 = vmatprep.subr.bf16.mxu0 0
      %2384 = vmatpush1.bf16.msra.mxu0 0
      %2385 = vmatprep.subr.bf16.mxu0 0
      %2386 = vmatpush1.bf16.msra.mxu0 0
      %2387 = vmatprep.subr.bf16.mxu0 0
      %2388 = vmatpush1.bf16.msra.mxu0 0
      %2389 = vmatprep.subr.bf16.mxu0 0
      %2390 = vmatpush1.bf16.msra.mxu0 0
      %2391 = vmatprep.subr.bf16.mxu0 0
      %2392 = vmatpush1.bf16.msra.mxu0 0
      %2393 = vmatprep.subr.bf16.mxu0 0
      %2394 = vmatpush1.bf16.msra.mxu0 0
      %2395 = vmatprep.subr.bf16.mxu0 0
      %2396 = vmatpush1.bf16.msra.mxu0 %v2238
      %2397 = vmatprep.subr.bf16.mxu0 0
      %2398 = vmatpush1.bf16.msra.mxu0 %v2237
      %2399 = vmatprep.subr.bf16.mxu0 0
      %2400 = vmatpush2.bf16.msra.mxu0 0
      %2401 = vmatprep.subr.bf16.mxu0 0
      %2402 = vmatpush2.bf16.msra.mxu0 0
      %2403 = vmatprep.subr.bf16.mxu0 0
      %2404 = vmatpush2.bf16.msra.mxu0 0
      %2405 = vmatprep.subr.bf16.mxu0 0
      %2406 = vmatpush2.bf16.msra.mxu0 0
      %2407 = vmatprep.subr.bf16.mxu0 0
      %2408 = vmatpush2.bf16.msra.mxu0 0
      %2409 = vmatprep.subr.bf16.mxu0 0
      %2410 = vmatpush2.bf16.msra.mxu0 0
      %2411 = vmatprep.subr.bf16.mxu0 0
      %2412 = vmatpush2.bf16.msra.mxu0 0
      %2413 = vmatprep.subr.bf16.mxu0 0
      %2414 = vmatpush2.bf16.msra.mxu0 0
      %2415 = vmatprep.mubr.bf16.mxu0 0
      %2416 = vmatmul.mubr.bf16.gmra.mxu0 %v2360
      %v2417 = vpop.f32.mrf.mxu0
      %v2418 = vadd.f32 %v2242, %v2417
      %v2419 = vpop.f32.mrf.mxu0
      %v2420 = vpop.f32.mrf.mxu0
      %v2421 = vadd.f32 %v2247, %v2420
      %v2422 = vpop.f32.mrf.mxu0
      %2423 = vmatprep.mubr.bf16.mxu0 0
      %2424 = vmatmul.mubr.bf16.gmra.mxu0 %v2363
      %v2425 = vpop.f32.mrf.mxu0
      %v2426 = vadd.f32 %v2252, %v2425
      %v2427 = vpop.f32.mrf.mxu0
      %v2428 = vpop.f32.mrf.mxu0
      %v2429 = vadd.f32 %v2257, %v2428
      %v2430 = vpop.f32.mrf.mxu0
      %2431 = vmatprep.mubr.bf16.mxu0 0
      %2432 = vmatmul.mubr.bf16.gmra.mxu0 %v2366
      %v2433 = vpop.f32.mrf.mxu0
      %v2434 = vadd.f32 %v2262, %v2433
      %v2435 = vpop.f32.mrf.mxu0
      %v2436 = vpop.f32.mrf.mxu0
      %v2437 = vadd.f32 %v2267, %v2436
      %v2438 = vpop.f32.mrf.mxu0
      %2439 = vmatprep.mubr.bf16.mxu0 0
      %2440 = vmatmul.mubr.bf16.gmra.mxu0 %v2369
      %v2441 = vpop.f32.mrf.mxu0
      %v2442 = vadd.f32 %v2272, %v2441
      %v2443 = vpop.f32.mrf.mxu0
      %v2444 = vpop.f32.mrf.mxu0
      %v2445 = vadd.f32 %v2277, %v2444
      %v2446 = vpop.f32.mrf.mxu0
      %2447 = vmatprep.mubr.bf16.mxu0 0
      %2448 = vmatmul.mubr.bf16.gmra.mxu0 %v2372
      %v2449 = vpop.f32.mrf.mxu0
      %v2450 = vadd.f32 %v2282, %v2449
      %v2451 = vpop.f32.mrf.mxu0
      %v2452 = vpop.f32.mrf.mxu0
      %v2453 = vadd.f32 %v2287, %v2452
      %v2454 = vpop.f32.mrf.mxu0
      %2455 = vmatprep.mubr.bf16.mxu0 0
      %2456 = vmatmul.mubr.bf16.gmra.mxu0 %v2375
      %v2457 = vpop.f32.mrf.mxu0
      %v2458 = vadd.f32 %v2292, %v2457
      %v2459 = vpop.f32.mrf.mxu0
      %v2460 = vpop.f32.mrf.mxu0
      %v2461 = vadd.f32 %v2297, %v2460
      %v2462 = vpop.f32.mrf.mxu0
      %2463 = vmatprep.mubr.bf16.mxu0 0
      %2464 = vmatmul.mubr.bf16.gmra.mxu0 %v2378
      %v2465 = vpop.f32.mrf.mxu0
      %v2466 = vadd.f32 %v2302, %v2465
      %v2467 = vpop.f32.mrf.mxu0
      %v2468 = vpop.f32.mrf.mxu0
      %v2469 = vadd.f32 %v2307, %v2468
      %v2470 = vpop.f32.mrf.mxu0
      %2471 = vmatprep.mubr.bf16.mxu0 0
      %2472 = vmatmul.mubr.bf16.gmra.mxu0 %v2381
      %v2473 = vpop.f32.mrf.mxu0
      %v2474 = vadd.f32 %v2312, %v2473
      %v2475 = vpop.f32.mrf.mxu0
      %v2476 = vpop.f32.mrf.mxu0
      %v2477 = vadd.f32 %v2317, %v2476
      %v2478 = vpop.f32.mrf.mxu0
      %2479 = vdwg.mxu0
      %v2480 = vmul.f32 %v2418, 0.5
      %v2481 = vmul.f32 %v2421, 0.5
      %v2482 = vmul.f32 %v2426, 0.5
      %v2483 = vmul.f32 %v2429, 0.5
      %v2484 = vmul.f32 %v2434, 0.5
      %v2485 = vmul.f32 %v2437, 0.5
      %v2486 = vmul.f32 %v2442, 0.5
      %v2487 = vmul.f32 %v2445, 0.5
      %v2488 = vmul.f32 %v2450, 0.5
      %v2489 = vmul.f32 %v2453, 0.5
      %v2490 = vmul.f32 %v2458, 0.5
      %v2491 = vmul.f32 %v2461, 0.5
      %v2492 = vmul.f32 %v2466, 0.5
      %v2493 = vmul.f32 %v2469, 0.5
      %v2494 = vmul.f32 %v2474, 0.5
      %v2495 = vmul.f32 %v2477, 0.5
      %v2496 = vmul.f32 %v2418, 0.044715
      %v2497 = vmul.f32 %v2421, 0.044715
      %v2498 = vmul.f32 %v2426, 0.044715
      %v2499 = vmul.f32 %v2429, 0.044715
      %v2500 = vmul.f32 %v2434, 0.044715
      %v2501 = vmul.f32 %v2437, 0.044715
      %v2502 = vmul.f32 %v2442, 0.044715
      %v2503 = vmul.f32 %v2445, 0.044715
      %v2504 = vmul.f32 %v2450, 0.044715
      %v2505 = vmul.f32 %v2453, 0.044715
      %v2506 = vmul.f32 %v2458, 0.044715
      %v2507 = vmul.f32 %v2461, 0.044715
      %v2508 = vmul.f32 %v2466, 0.044715
      %v2509 = vmul.f32 %v2469, 0.044715
      %v2510 = vmul.f32 %v2474, 0.044715
      %v2511 = vmul.f32 %v2477, 0.044715
      %v2512 = vmul.f32 %v2496, %v2418
      %v2513 = vmul.f32 %v2497, %v2421
      %v2514 = vmul.f32 %v2498, %v2426
      %v2515 = vmul.f32 %v2499, %v2429
      %v2516 = vmul.f32 %v2500, %v2434
      %v2517 = vmul.f32 %v2501, %v2437
      %v2518 = vmul.f32 %v2502, %v2442
      %v2519 = vmul.f32 %v2503, %v2445
      %v2520 = vmul.f32 %v2504, %v2450
      %v2521 = vmul.f32 %v2505, %v2453
      %v2522 = vmul.f32 %v2506, %v2458
      %v2523 = vmul.f32 %v2507, %v2461
      %v2524 = vmul.f32 %v2508, %v2466
      %v2525 = vmul.f32 %v2509, %v2469
      %v2526 = vmul.f32 %v2510, %v2474
      %v2527 = vmul.f32 %v2511, %v2477
      %v2528 = vmul.f32 %v2512, %v2418
      %v2529 = vmul.f32 %v2513, %v2421
      %v2530 = vmul.f32 %v2514, %v2426
      %v2531 = vmul.f32 %v2515, %v2429
      %v2532 = vmul.f32 %v2516, %v2434
      %v2533 = vmul.f32 %v2517, %v2437
      %v2534 = vmul.f32 %v2518, %v2442
      %v2535 = vmul.f32 %v2519, %v2445
      %v2536 = vmul.f32 %v2520, %v2450
      %v2537 = vmul.f32 %v2521, %v2453
      %v2538 = vmul.f32 %v2522, %v2458
      %v2539 = vmul.f32 %v2523, %v2461
      %v2540 = vmul.f32 %v2524, %v2466
      %v2541 = vmul.f32 %v2525, %v2469
      %v2542 = vmul.f32 %v2526, %v2474
      %v2543 = vmul.f32 %v2527, %v2477
      %v2544 = vadd.f32 %v2418, %v2528
      %v2545 = vadd.f32 %v2421, %v2529
      %v2546 = vadd.f32 %v2426, %v2530
      %v2547 = vadd.f32 %v2429, %v2531
      %v2548 = vadd.f32 %v2434, %v2532
      %v2549 = vadd.f32 %v2437, %v2533
      %v2550 = vadd.f32 %v2442, %v2534
      %v2551 = vadd.f32 %v2445, %v2535
      %v2552 = vadd.f32 %v2450, %v2536
      %v2553 = vadd.f32 %v2453, %v2537
      %v2554 = vadd.f32 %v2458, %v2538
      %v2555 = vadd.f32 %v2461, %v2539
      %v2556 = vadd.f32 %v2466, %v2540
      %v2557 = vadd.f32 %v2469, %v2541
      %v2558 = vadd.f32 %v2474, %v2542
      %v2559 = vadd.f32 %v2477, %v2543
      %v2560 = vmul.f32 %v2544, 0.7978846
      %v2561 = vmul.f32 %v2545, 0.7978846
      %v2562 = vmul.f32 %v2546, 0.7978846
      %v2563 = vmul.f32 %v2547, 0.7978846
      %v2564 = vmul.f32 %v2548, 0.7978846
      %v2565 = vmul.f32 %v2549, 0.7978846
      %v2566 = vmul.f32 %v2550, 0.7978846
      %v2567 = vmul.f32 %v2551, 0.7978846
      %v2568 = vmul.f32 %v2552, 0.7978846
      %v2569 = vmul.f32 %v2553, 0.7978846
      %v2570 = vmul.f32 %v2554, 0.7978846
      %v2571 = vmul.f32 %v2555, 0.7978846
      %v2572 = vmul.f32 %v2556, 0.7978846
      %v2573 = vmul.f32 %v2557, 0.7978846
      %v2574 = vmul.f32 %v2558, 0.7978846
      %v2575 = vmul.f32 %v2559, 0.7978846
      %v2576 = vtanh.pop %v2560
      %v2577 = vtanh.pop %v2561
      %v2578 = vtanh.pop %v2562
      %v2579 = vtanh.pop %v2563
      %v2580 = vtanh.pop %v2564
      %v2581 = vtanh.pop %v2565
      %v2582 = vtanh.pop %v2566
      %v2583 = vtanh.pop %v2567
      %v2584 = vtanh.pop %v2568
      %v2585 = vtanh.pop %v2569
      %v2586 = vtanh.pop %v2570
      %v2587 = vtanh.pop %v2571
      %v2588 = vtanh.pop %v2572
      %v2589 = vtanh.pop %v2573
      %v2590 = vtanh.pop %v2574
      %v2591 = vtanh.pop %v2575
      %v2592 = vadd.f32 %v2576, 1.0
      %v2593 = vadd.f32 %v2577, 1.0
      %v2594 = vadd.f32 %v2578, 1.0
      %v2595 = vadd.f32 %v2579, 1.0
      %v2596 = vadd.f32 %v2580, 1.0
      %v2597 = vadd.f32 %v2581, 1.0
      %v2598 = vadd.f32 %v2582, 1.0
      %v2599 = vadd.f32 %v2583, 1.0
      %v2600 = vadd.f32 %v2584, 1.0
      %v2601 = vadd.f32 %v2585, 1.0
      %v2602 = vadd.f32 %v2586, 1.0
      %v2603 = vadd.f32 %v2587, 1.0
      %v2604 = vadd.f32 %v2588, 1.0
      %v2605 = vadd.f32 %v2589, 1.0
      %v2606 = vadd.f32 %v2590, 1.0
      %v2607 = vadd.f32 %v2591, 1.0
      %v2608 = vmul.f32 %v2480, %v2592
      %v2609 = vmul.f32 %v2481, %v2593
      %v2610 = vmul.f32 %v2482, %v2594
      %v2611 = vmul.f32 %v2483, %v2595
      %v2612 = vmul.f32 %v2484, %v2596
      %v2613 = vmul.f32 %v2485, %v2597
      %v2614 = vmul.f32 %v2486, %v2598
      %v2615 = vmul.f32 %v2487, %v2599
      %v2616 = vmul.f32 %v2488, %v2600
      %v2617 = vmul.f32 %v2489, %v2601
      %v2618 = vmul.f32 %v2490, %v2602
      %v2619 = vmul.f32 %v2491, %v2603
      %v2620 = vmul.f32 %v2492, %v2604
      %v2621 = vmul.f32 %v2493, %v2605
      %v2622 = vmul.f32 %v2494, %v2606
      %v2623 = vmul.f32 %v2495, %v2607
      %v2624 = vpack.c.bf16 %v2609, %v2608
      %v2625 = vpack.c.bf16 %v2611, %v2610
      %v2626 = vpack.c.bf16 %v2613, %v2612
      %v2627 = vpack.c.bf16 %v2615, %v2614
      %v2628 = vpack.c.bf16 %v2617, %v2616
      %v2629 = vpack.c.bf16 %v2619, %v2618
      %v2630 = vpack.c.bf16 %v2621, %v2620
      %v2631 = vpack.c.bf16 %v2623, %v2622
      %2633 = vset.pattern.permute.xlu0 0
      %2634 = vperm.xlu0 %2633, %v2199
      %v2635 = vpop.permute.xlu0 %2634
      %2638 = vset.pattern.permute.xlu0 0
      %2639 = vperm.xlu0 %2638, %v2200
      %v2640 = vpop.permute.xlu0 %2639
      %2643 = vset.pattern.permute.xlu0 0
      %2644 = vperm.xlu0 %2643, %v2201
      %v2645 = vpop.permute.xlu0 %2644
      %2648 = vset.pattern.permute.xlu0 0
      %2649 = vperm.xlu0 %2648, %v2202
      %v2650 = vpop.permute.xlu0 %2649
      %v2656 = vunpack.c.l.b16 %v2179
      %v2657 = vunpack.c.l.b16 %v2180
      %v2658 = vunpack.c.l.b16 %v2181
      %v2659 = vunpack.c.l.b16 %v2182
      %v2660 = vpack.c.b16 %v2657, %v2656
      %v2661 = vpack.c.b16 %v2659, %v2658
      %2664 = vmatprep.subr.bf16.mxu0 0
      %2665 = vmatpush1.bf16.msra.mxu0 %v2631
      %2666 = vmatprep.subr.bf16.mxu0 0
      %2667 = vmatpush1.bf16.msra.mxu0 %v2630
      %2668 = vmatprep.subr.bf16.mxu0 0
      %2669 = vmatpush1.bf16.msra.mxu0 %v2629
      %2670 = vmatprep.subr.bf16.mxu0 0
      %2671 = vmatpush1.bf16.msra.mxu0 %v2628
      %2672 = vmatprep.subr.bf16.mxu0 0
      %2673 = vmatpush1.bf16.msra.mxu0 %v2627
      %2674 = vmatprep.subr.bf16.mxu0 0
      %2675 = vmatpush1.bf16.msra.mxu0 %v2626
      %2676 = vmatprep.subr.bf16.mxu0 0
      %2677 = vmatpush1.bf16.msra.mxu0 %v2625
      %2678 = vmatprep.subr.bf16.mxu0 0
      %2679 = vmatpush1.bf16.msra.mxu0 %v2624
      %2680 = vmatprep.subr.bf16.mxu0 0
      %2681 = vmatpush2.bf16.msra.mxu0 0
      %2682 = vmatprep.subr.bf16.mxu0 0
      %2683 = vmatpush2.bf16.msra.mxu0 0
      %2684 = vmatprep.subr.bf16.mxu0 0
      %2685 = vmatpush2.bf16.msra.mxu0 0
      %2686 = vmatprep.subr.bf16.mxu0 0
      %2687 = vmatpush2.bf16.msra.mxu0 0
      %2688 = vmatprep.subr.bf16.mxu0 0
      %2689 = vmatpush2.bf16.msra.mxu0 0
      %2690 = vmatprep.subr.bf16.mxu0 0
      %2691 = vmatpush2.bf16.msra.mxu0 0
      %2692 = vmatprep.subr.bf16.mxu0 0
      %2693 = vmatpush2.bf16.msra.mxu0 0
      %2694 = vmatprep.subr.bf16.mxu0 0
      %2695 = vmatpush2.bf16.msra.mxu0 0
      %2696 = vmatprep.mubr.bf16.mxu0 0
      %2697 = vmatmul.mubr.bf16.gmra.mxu0 %v2660
      %v2698 = vpop.f32.mrf.mxu0
      %v2699 = vadd.f32 %v2635, %v2698
      %v2700 = vpop.f32.mrf.mxu0
      %v2701 = vpop.f32.mrf.mxu0
      %v2702 = vadd.f32 %v2640, %v2701
      %v2703 = vpop.f32.mrf.mxu0
      %2704 = vmatprep.mubr.bf16.mxu0 0
      %2705 = vmatmul.mubr.bf16.gmra.mxu0 %v2661
      %v2706 = vpop.f32.mrf.mxu0
      %v2707 = vadd.f32 %v2645, %v2706
      %v2708 = vpop.f32.mrf.mxu0
      %v2709 = vpop.f32.mrf.mxu0
      %v2710 = vadd.f32 %v2650, %v2709
      %v2711 = vpop.f32.mrf.mxu0
      %2712 = vdwg.mxu0
      %v2713 = vadd.f32 %v2159, %v2699
      %v2714 = vadd.f32 %v2160, %v2702
      %v2715 = vadd.f32 %v2161, %v2707
      %v2716 = vadd.f32 %v2162, %v2710
      %v2717 = vld [vmem:[%s7] sm:$0xf]
      %v2718 = vld [vmem:[%s7 + $0x4] sm:$0xf]
      %v2719 = vld [vmem:[%s7 + $0x8] sm:$0xf]
      %v2720 = vld [vmem:[%s7 + $0xc] sm:$0xf]
      %v2721 = vld [vmem:[%s7 + $0x10] sm:$0xf]
      %v2722 = vld [vmem:[%s7 + $0x14] sm:$0xf]
      %v2723 = vld [vmem:[%s7 + $0x18] sm:$0xf]
      %v2724 = vld [vmem:[%s7 + $0x1c] sm:$0xf]
      %v2725 = vld [vmem:[%s7 + $0x20] sm:$0xf]
      %v2726 = vld [vmem:[%s7 + $0x24] sm:$0xf]
      %v2727 = vld [vmem:[%s7 + $0x28] sm:$0xf]
      %v2728 = vld [vmem:[%s7 + $0x2c] sm:$0xf]
      %v2729 = vld [vmem:[%s9] sm:$0xff]
      %v2730 = vld [vmem:[%s9 + $0x8] sm:$0xff]
      %v2731 = vld [vmem:[%s9 + $0x10] sm:$0xff]
      %v2732 = vld [vmem:[%s9 + $0x18] sm:$0xff]
      %v2733 = vld [vmem:[%s9 + $0x20] sm:$0xff]
      %v2734 = vld [vmem:[%s9 + $0x28] sm:$0xff]
      %v2735 = vld [vmem:[%s9 + $0x30] sm:$0xff]
      %v2736 = vld [vmem:[%s9 + $0x38] sm:$0xff]
      %v2737 = vld [vmem:[%s9 + $0x40] sm:$0xff]
      %v2738 = vld [vmem:[%s9 + $0x48] sm:$0xff]
      %v2739 = vld [vmem:[%s9 + $0x50] sm:$0xff]
      %v2740 = vld [vmem:[%s9 + $0x58] sm:$0xff]
      %v2741 = vld [vmem:[%s9 + $0x60] sm:$0xff]
      %v2742 = vld [vmem:[%s9 + $0x68] sm:$0xff]
      %v2743 = vld [vmem:[%s9 + $0x70] sm:$0xff]
      %v2744 = vld [vmem:[%s9 + $0x78] sm:$0xff]
      %v2745 = vrot.slane %v2713, 4
      %v2746 = vadd.f32 %v2713, %v2745
      %v2747 = vrot.slane %v2746, 2
      %v2748 = vadd.f32 %v2746, %v2747
      %v2749 = vrot.slane %v2748, 1
      %v2750 = vadd.f32 %v2748, %v2749
      %v2751 = vrot.slane %v2714, 4
      %v2752 = vadd.f32 %v2714, %v2751
      %v2753 = vrot.slane %v2752, 2
      %v2754 = vadd.f32 %v2752, %v2753
      %v2755 = vrot.slane %v2754, 1
      %v2756 = vadd.f32 %v2754, %v2755
      %v2757 = vrot.slane %v2715, 4
      %v2758 = vadd.f32 %v2715, %v2757
      %v2759 = vrot.slane %v2758, 2
      %v2760 = vadd.f32 %v2758, %v2759
      %v2761 = vrot.slane %v2760, 1
      %v2762 = vadd.f32 %v2760, %v2761
      %v2763 = vrot.slane %v2716, 4
      %v2764 = vadd.f32 %v2716, %v2763
      %v2765 = vrot.slane %v2764, 2
      %v2766 = vadd.f32 %v2764, %v2765
      %v2767 = vrot.slane %v2766, 1
      %v2768 = vadd.f32 %v2766, %v2767
      %v2769 = vrcp.pop 8.0
      %v2770 = vmul.f32 %v2750, %v2769
      %v2771 = vmul.f32 %v2756, %v2769
      %v2772 = vmul.f32 %v2762, %v2769
      %v2773 = vmul.f32 %v2768, %v2769
      %v2774 = vsub.f32 %v2713, %v2770
      %v2775 = vsub.f32 %v2714, %v2771
      %v2776 = vsub.f32 %v2715, %v2772
      %v2777 = vsub.f32 %v2716, %v2773
      %v2778 = vmul.f32 %v2774, %v2774
      %v2779 = vmul.f32 %v2775, %v2775
      %v2780 = vmul.f32 %v2776, %v2776
      %v2781 = vmul.f32 %v2777, %v2777
      %v2782 = vrot.slane %v2778, 4
      %v2783 = vadd.f32 %v2778, %v2782
      %v2784 = vrot.slane %v2783, 2
      %v2785 = vadd.f32 %v2783, %v2784
      %v2786 = vrot.slane %v2785, 1
      %v2787 = vadd.f32 %v2785, %v2786
      %v2788 = vrot.slane %v2779, 4
      %v2789 = vadd.f32 %v2779, %v2788
      %v2790 = vrot.slane %v2789, 2
      %v2791 = vadd.f32 %v2789, %v2790
      %v2792 = vrot.slane %v2791, 1
      %v2793 = vadd.f32 %v2791, %v2792
      %v2794 = vrot.slane %v2780, 4
      %v2795 = vadd.f32 %v2780, %v2794
      %v2796 = vrot.slane %v2795, 2
      %v2797 = vadd.f32 %v2795, %v2796
      %v2798 = vrot.slane %v2797, 1
      %v2799 = vadd.f32 %v2797, %v2798
      %v2800 = vrot.slane %v2781, 4
      %v2801 = vadd.f32 %v2781, %v2800
      %v2802 = vrot.slane %v2801, 2
      %v2803 = vadd.f32 %v2801, %v2802
      %v2804 = vrot.slane %v2803, 1
      %v2805 = vadd.f32 %v2803, %v2804
      %v2806 = vmul.f32 %v2787, %v2769
      %v2807 = vmul.f32 %v2793, %v2769
      %v2808 = vmul.f32 %v2799, %v2769
      %v2809 = vmul.f32 %v2805, %v2769
      %v2810 = vadd.f32 %v2806, 1e-05
      %v2811 = vadd.f32 %v2807, 1e-05
      %v2812 = vadd.f32 %v2808, 1e-05
      %v2813 = vadd.f32 %v2809, 1e-05
      %v2814 = vrsqrt.pop %v2810
      %v2815 = vrsqrt.pop %v2811
      %v2816 = vrsqrt.pop %v2812
      %v2817 = vrsqrt.pop %v2813
      %v2818 = vmul.f32 %v2774, %v2814
      %v2819 = vmul.f32 %v2775, %v2815
      %v2820 = vmul.f32 %v2776, %v2816
      %v2821 = vmul.f32 %v2777, %v2817
      %v2822 = vpack.c.bf16 %v2819, %v2818
      %v2823 = vpack.c.bf16 %v2821, %v2820
      %2825 = vset.pattern.permute.xlu0 0
      %2826 = vperm.xlu0 %2825, %v2729
      %v2827 = vpop.permute.xlu0 %2826
      %2830 = vset.pattern.permute.xlu0 0
      %2831 = vperm.xlu0 %2830, %v2730
      %v2832 = vpop.permute.xlu0 %2831
      %2835 = vset.pattern.permute.xlu0 0
      %2836 = vperm.xlu0 %2835, %v2731
      %v2837 = vpop.permute.xlu0 %2836
      %2840 = vset.pattern.permute.xlu0 0
      %2841 = vperm.xlu0 %2840, %v2732
      %v2842 = vpop.permute.xlu0 %2841
      %2845 = vset.pattern.permute.xlu0 0
      %2846 = vperm.xlu0 %2845, %v2733
      %v2847 = vpop.permute.xlu0 %2846
      %2850 = vset.pattern.permute.xlu0 0
      %2851 = vperm.xlu0 %2850, %v2734
      %v2852 = vpop.permute.xlu0 %2851
      %2855 = vset.pattern.permute.xlu0 0
      %2856 = vperm.xlu0 %2855, %v2735
      %v2857 = vpop.permute.xlu0 %2856
      %2860 = vset.pattern.permute.xlu0 0
      %2861 = vperm.xlu0 %2860, %v2736
      %v2862 = vpop.permute.xlu0 %2861
      %2865 = vset.pattern.permute.xlu0 0
      %2866 = vperm.xlu0 %2865, %v2737
      %v2867 = vpop.permute.xlu0 %2866
      %2870 = vset.pattern.permute.xlu0 0
      %2871 = vperm.xlu0 %2870, %v2738
      %v2872 = vpop.permute.xlu0 %2871
      %2875 = vset.pattern.permute.xlu0 0
      %2876 = vperm.xlu0 %2875, %v2739
      %v2877 = vpop.permute.xlu0 %2876
      %2880 = vset.pattern.permute.xlu0 0
      %2881 = vperm.xlu0 %2880, %v2740
      %v2882 = vpop.permute.xlu0 %2881
      %v2896 = vunpack.c.l.b16 %v2717
      %v2897 = vunpack.c.l.b16 %v2718
      %v2898 = vunpack.c.l.b16 %v2719
      %v2899 = vunpack.c.l.b16 %v2720
      %v2900 = vunpack.c.l.b16 %v2721
      %v2901 = vunpack.c.l.b16 %v2722
      %v2902 = vunpack.c.l.b16 %v2723
      %v2903 = vunpack.c.l.b16 %v2724
      %v2904 = vunpack.c.l.b16 %v2725
      %v2905 = vunpack.c.l.b16 %v2726
      %v2906 = vunpack.c.l.b16 %v2727
      %v2907 = vunpack.c.l.b16 %v2728
      %v2908 = vpack.c.b16 %v2897, %v2896
      %v2909 = vpack.c.b16 %v2899, %v2898
      %v2910 = vpack.c.b16 %v2901, %v2900
      %v2911 = vpack.c.b16 %v2903, %v2902
      %v2912 = vpack.c.b16 %v2905, %v2904
      %v2913 = vpack.c.b16 %v2907, %v2906
      %v2915 = vsel %vm605, %v2908, 0
      %v2918 = vsel %vm605, %v2909, 0
      %v2921 = vsel %vm605, %v2910, 0
      %v2924 = vsel %vm605, %v2911, 0
      %v2927 = vsel %vm605, %v2912, 0
      %v2930 = vsel %vm605, %v2913, 0
      %2932 = vmatprep.subr.bf16.mxu0 0
      %2933 = vmatpush1.bf16.msra.mxu0 0
      %2934 = vmatprep.subr.bf16.mxu0 0
      %2935 = vmatpush1.bf16.msra.mxu0 0
      %2936 = vmatprep.subr.bf16.mxu0 0
      %2937 = vmatpush1.bf16.msra.mxu0 0
      %2938 = vmatprep.subr.bf16.mxu0 0
      %2939 = vmatpush1.bf16.msra.mxu0 0
      %2940 = vmatprep.subr.bf16.mxu0 0
      %2941 = vmatpush1.bf16.msra.mxu0 0
      %2942 = vmatprep.subr.bf16.mxu0 0
      %2943 = vmatpush1.bf16.msra.mxu0 0
      %2944 = vmatprep.subr.bf16.mxu0 0
      %2945 = vmatpush1.bf16.msra.mxu0 %v2823
      %2946 = vmatprep.subr.bf16.mxu0 0
      %2947 = vmatpush1.bf16.msra.mxu0 %v2822
      %2948 = vmatprep.subr.bf16.mxu0 0
      %2949 = vmatpush2.bf16.msra.mxu0 0
      %2950 = vmatprep.subr.bf16.mxu0 0
      %2951 = vmatpush2.bf16.msra.mxu0 0
      %2952 = vmatprep.subr.bf16.mxu0 0
      %2953 = vmatpush2.bf16.msra.mxu0 0
      %2954 = vmatprep.subr.bf16.mxu0 0
      %2955 = vmatpush2.bf16.msra.mxu0 0
      %2956 = vmatprep.subr.bf16.mxu0 0
      %2957 = vmatpush2.bf16.msra.mxu0 0
      %2958 = vmatprep.subr.bf16.mxu0 0
      %2959 = vmatpush2.bf16.msra.mxu0 0
      %2960 = vmatprep.subr.bf16.mxu0 0
      %2961 = vmatpush2.bf16.msra.mxu0 0
      %2962 = vmatprep.subr.bf16.mxu0 0
      %2963 = vmatpush2.bf16.msra.mxu0 0
      %2964 = vmatprep.mubr.bf16.mxu0 0
      %2965 = vmatmul.mubr.bf16.gmra.mxu0 %v2915
      %v2966 = vpop.f32.mrf.mxu0
      %v2967 = vadd.f32 %v2827, %v2966
      %v2968 = vpop.f32.mrf.mxu0
      %v2969 = vpop.f32.mrf.mxu0
      %v2970 = vadd.f32 %v2832, %v2969
      %v2971 = vpop.f32.mrf.mxu0
      %2972 = vmatprep.mubr.bf16.mxu0 0
      %2973 = vmatmul.mubr.bf16.gmra.mxu0 %v2918
      %v2974 = vpop.f32.mrf.mxu0
      %v2975 = vadd.f32 %v2837, %v2974
      %v2976 = vpop.f32.mrf.mxu0
      %v2977 = vpop.f32.mrf.mxu0
      %v2978 = vadd.f32 %v2842, %v2977
      %v2979 = vpop.f32.mrf.mxu0
      %2980 = vmatprep.mubr.bf16.mxu0 0
      %2981 = vmatmul.mubr.bf16.gmra.mxu0 %v2921
      %v2982 = vpop.f32.mrf.mxu0
      %v2983 = vadd.f32 %v2847, %v2982
      %v2984 = vpop.f32.mrf.mxu0
      %v2985 = vpop.f32.mrf.mxu0
      %v2986 = vadd.f32 %v2852, %v2985
      %v2987 = vpop.f32.mrf.mxu0
      %2988 = vmatprep.mubr.bf16.mxu0 0
      %2989 = vmatmul.mubr.bf16.gmra.mxu0 %v2924
      %v2990 = vpop.f32.mrf.mxu0
      %v2991 = vadd.f32 %v2857, %v2990
      %v2992 = vpop.f32.mrf.mxu0
      %v2993 = vpop.f32.mrf.mxu0
      %v2994 = vadd.f32 %v2862, %v2993
      %v2995 = vpop.f32.mrf.mxu0
      %2996 = vmatprep.mubr.bf16.mxu0 0
      %2997 = vmatmul.mubr.bf16.gmra.mxu0 %v2927
      %v2998 = vpop.f32.mrf.mxu0
      %v2999 = vadd.f32 %v2867, %v2998
      %v3000 = vpop.f32.mrf.mxu0
      %v3001 = vpop.f32.mrf.mxu0
      %v3002 = vadd.f32 %v2872, %v3001
      %v3003 = vpop.f32.mrf.mxu0
      %3004 = vmatprep.mubr.bf16.mxu0 0
      %3005 = vmatmul.mubr.bf16.gmra.mxu0 %v2930
      %v3006 = vpop.f32.mrf.mxu0
      %v3007 = vadd.f32 %v2877, %v3006
      %v3008 = vpop.f32.mrf.mxu0
      %v3009 = vpop.f32.mrf.mxu0
      %v3010 = vadd.f32 %v2882, %v3009
      %v3011 = vpop.f32.mrf.mxu0
      %3012 = vdwg.mxu0
      %v3014 = vrot.slane %v2967, 4
      %v3016 = vsel %vm792, %v2967, %v3014
      %v3017 = vmul.f32 %v3016, %v2983
      %v3018 = vmul.f32 %v3016, %v2986
      %v3020 = vrot.slane %v2975, 4
      %v3022 = vsel %vm792, %v2975, %v3020
      %v3023 = vmul.f32 %v3022, %v2991
      %v3024 = vmul.f32 %v3022, %v2994
      %v3025 = vadd.f32 %v3017, %v3023
      %v3026 = vadd.f32 %v3018, %v3024
      %v3029 = vcombine.high %v3025, %v3025
      %v3030 = vcombine.high %v3026, %v3026
      %v3033 = vsel %vm792, %v3025, -inf
      %v3034 = vsel %vm792, %v3029, -inf
      %v3035 = vsel %vm792, %v3026, -inf
      %v3036 = vsel %vm792, %v3030, -inf
      %v3037 = vmax.f32 %v3033, %v3034
      %v3038 = vmax.f32 %v3035, %v3036
      %v3039 = vmax.f32 %v3037, %v3038
      %v3040 = vsub.f32 %v3025, %v3039
      %v3041 = vsub.f32 %v3029, %v3039
      %v3042 = vsub.f32 %v3026, %v3039
      %v3043 = vsub.f32 %v3030, %v3039
      %v3044 = vmul.f32 %v3040, 1.442695
      %v3045 = vpow.pop %v3044
      %v3046 = vmul.f32 %v3041, 1.442695
      %v3047 = vpow.pop %v3046
      %v3048 = vmul.f32 %v3042, 1.442695
      %v3049 = vpow.pop %v3048
      %v3050 = vmul.f32 %v3043, 1.442695
      %v3051 = vpow.pop %v3050
      %v3052 = vsel %vm792, %v3045, 0.0
      %v3053 = vsel %vm792, %v3047, 0.0
      %v3054 = vadd.f32 %v3052, %v3053
      %v3055 = vsel %vm792, %v3049, 0.0
      %v3056 = vadd.f32 %v3054, %v3055
      %v3057 = vsel %vm792, %v3051, 0.0
      %v3058 = vadd.f32 %v3056, %v3057
      %v3059 = vrcp.pop %v3058
      %v3062 = vcombine.high %v2999, %v2999
      %v3063 = vcombine.high %v3002, %v3002
      %v3066 = vmul.f32 %v3045, %v2999
      %v3067 = vmul.f32 %v3047, %v3062
      %v3068 = vmul.f32 %v3049, %v3002
      %v3069 = vmul.f32 %v3051, %v3063
      %v3070 = vsel %vm792, %v3066, 0.0
      %v3071 = vsel %vm792, %v3067, 0.0
      %v3072 = vadd.f32 %v3070, %v3071
      %v3073 = vsel %vm792, %v3068, 0.0
      %v3074 = vadd.f32 %v3072, %v3073
      %v3075 = vsel %vm792, %v3069, 0.0
      %v3076 = vadd.f32 %v3074, %v3075
      %v3077 = vmul.f32 %v3076, %v3059
      %v3080 = vcombine.high %v3007, %v3007
      %v3081 = vcombine.high %v3010, %v3010
      %v3084 = vmul.f32 %v3045, %v3007
      %v3085 = vmul.f32 %v3047, %v3080
      %v3086 = vmul.f32 %v3049, %v3010
      %v3087 = vmul.f32 %v3051, %v3081
      %v3088 = vsel %vm792, %v3084, 0.0
      %v3089 = vsel %vm792, %v3085, 0.0
      %v3090 = vadd.f32 %v3088, %v3089
      %v3091 = vsel %vm792, %v3086, 0.0
      %v3092 = vadd.f32 %v3090, %v3091
      %v3093 = vsel %vm792, %v3087, 0.0
      %v3094 = vadd.f32 %v3092, %v3093
      %v3095 = vmul.f32 %v3094, %v3059
      %v3096 = vsel %vm792, %v3014, %v2967
      %v3097 = vmul.f32 %v3096, %v2983
      %v3098 = vmul.f32 %v3096, %v2986
      %v3099 = vsel %vm792, %v3020, %v2975
      %v3100 = vmul.f32 %v3099, %v2991
      %v3101 = vmul.f32 %v3099, %v2994
      %v3102 = vadd.f32 %v3097, %v3100
      %v3103 = vadd.f32 %v3098, %v3101
      %v3106 = vcombine.high %v3102, %v3102
      %v3107 = vcombine.high %v3103, %v3103
      %v3110 = vsel %vm792, %v3102, -inf
      %v3111 = vsel %vm792, %v3106, -inf
      %v3112 = vsel %vm792, %v3103, -inf
      %v3113 = vsel %vm792, %v3107, -inf
      %v3114 = vmax.f32 %v3110, %v3111
      %v3115 = vmax.f32 %v3112, %v3113
      %v3116 = vmax.f32 %v3114, %v3115
      %v3117 = vsub.f32 %v3102, %v3116
      %v3118 = vsub.f32 %v3106, %v3116
      %v3119 = vsub.f32 %v3103, %v3116
      %v3120 = vsub.f32 %v3107, %v3116
      %v3121 = vmul.f32 %v3117, 1.442695
      %v3122 = vpow.pop %v3121
      %v3123 = vmul.f32 %v3118, 1.442695
      %v3124 = vpow.pop %v3123
      %v3125 = vmul.f32 %v3119, 1.442695
      %v3126 = vpow.pop %v3125
      %v3127 = vmul.f32 %v3120, 1.442695
      %v3128 = vpow.pop %v3127
      %v3129 = vsel %vm792, %v3122, 0.0
      %v3130 = vsel %vm792, %v3124, 0.0
      %v3131 = vadd.f32 %v3129, %v3130
      %v3132 = vsel %vm792, %v3126, 0.0
      %v3133 = vadd.f32 %v3131, %v3132
      %v3134 = vsel %vm792, %v3128, 0.0
      %v3135 = vadd.f32 %v3133, %v3134
      %v3136 = vrcp.pop %v3135
      %v3137 = vmul.f32 %v3122, %v2999
      %v3138 = vmul.f32 %v3124, %v3062
      %v3139 = vmul.f32 %v3126, %v3002
      %v3140 = vmul.f32 %v3128, %v3063
      %v3141 = vsel %vm792, %v3137, 0.0
      %v3142 = vsel %vm792, %v3138, 0.0
      %v3143 = vadd.f32 %v3141, %v3142
      %v3144 = vsel %vm792, %v3139, 0.0
      %v3145 = vadd.f32 %v3143, %v3144
      %v3146 = vsel %vm792, %v3140, 0.0
      %v3147 = vadd.f32 %v3145, %v3146
      %v3148 = vmul.f32 %v3147, %v3136
      %v3149 = vmul.f32 %v3122, %v3007
      %v3150 = vmul.f32 %v3124, %v3080
      %v3151 = vmul.f32 %v3126, %v3010
      %v3152 = vmul.f32 %v3128, %v3081
      %v3153 = vsel %vm792, %v3149, 0.0
      %v3154 = vsel %vm792, %v3150, 0.0
      %v3155 = vadd.f32 %v3153, %v3154
      %v3156 = vsel %vm792, %v3151, 0.0
      %v3157 = vadd.f32 %v3155, %v3156
      %v3158 = vsel %vm792, %v3152, 0.0
      %v3159 = vadd.f32 %v3157, %v3158
      %v3160 = vmul.f32 %v3159, %v3136
      %v3162 = vrot.slane %v2970, 4
      %v3164 = vsel %vm792, %v2970, %v3162
      %v3165 = vmul.f32 %v3164, %v2983
      %v3166 = vmul.f32 %v3164, %v2986
      %v3168 = vrot.slane %v2978, 4
      %v3170 = vsel %vm792, %v2978, %v3168
      %v3171 = vmul.f32 %v3170, %v2991
      %v3172 = vmul.f32 %v3170, %v2994
      %v3173 = vadd.f32 %v3165, %v3171
      %v3174 = vadd.f32 %v3166, %v3172
      %v3177 = vcombine.high %v3173, %v3173
      %v3178 = vcombine.high %v3174, %v3174
      %v3181 = vsel %vm792, %v3173, -inf
      %v3182 = vsel %vm792, %v3177, -inf
      %v3183 = vsel %vm792, %v3174, -inf
      %v3184 = vsel %vm792, %v3178, -inf
      %v3185 = vmax.f32 %v3181, %v3182
      %v3186 = vmax.f32 %v3183, %v3184
      %v3187 = vmax.f32 %v3185, %v3186
      %v3188 = vsub.f32 %v3173, %v3187
      %v3189 = vsub.f32 %v3177, %v3187
      %v3190 = vsub.f32 %v3174, %v3187
      %v3191 = vsub.f32 %v3178, %v3187
      %v3192 = vmul.f32 %v3188, 1.442695
      %v3193 = vpow.pop %v3192
      %v3194 = vmul.f32 %v3189, 1.442695
      %v3195 = vpow.pop %v3194
      %v3196 = vmul.f32 %v3190, 1.442695
      %v3197 = vpow.pop %v3196
      %v3198 = vmul.f32 %v3191, 1.442695
      %v3199 = vpow.pop %v3198
      %v3200 = vsel %vm792, %v3193, 0.0
      %v3201 = vsel %vm792, %v3195, 0.0
      %v3202 = vadd.f32 %v3200, %v3201
      %v3203 = vsel %vm792, %v3197, 0.0
      %v3204 = vadd.f32 %v3202, %v3203
      %v3205 = vsel %vm792, %v3199, 0.0
      %v3206 = vadd.f32 %v3204, %v3205
      %v3207 = vrcp.pop %v3206
      %v3208 = vmul.f32 %v3193, %v2999
      %v3209 = vmul.f32 %v3195, %v3062
      %v3210 = vmul.f32 %v3197, %v3002
      %v3211 = vmul.f32 %v3199, %v3063
      %v3212 = vsel %vm792, %v3208, 0.0
      %v3213 = vsel %vm792, %v3209, 0.0
      %v3214 = vadd.f32 %v3212, %v3213
      %v3215 = vsel %vm792, %v3210, 0.0
      %v3216 = vadd.f32 %v3214, %v3215
      %v3217 = vsel %vm792, %v3211, 0.0
      %v3218 = vadd.f32 %v3216, %v3217
      %v3219 = vmul.f32 %v3218, %v3207
      %v3220 = vmul.f32 %v3193, %v3007
      %v3221 = vmul.f32 %v3195, %v3080
      %v3222 = vmul.f32 %v3197, %v3010
      %v3223 = vmul.f32 %v3199, %v3081
      %v3224 = vsel %vm792, %v3220, 0.0
      %v3225 = vsel %vm792, %v3221, 0.0
      %v3226 = vadd.f32 %v3224, %v3225
      %v3227 = vsel %vm792, %v3222, 0.0
      %v3228 = vadd.f32 %v3226, %v3227
      %v3229 = vsel %vm792, %v3223, 0.0
      %v3230 = vadd.f32 %v3228, %v3229
      %v3231 = vmul.f32 %v3230, %v3207
      %v3232 = vsel %vm792, %v3162, %v2970
      %v3233 = vmul.f32 %v3232, %v2983
      %v3234 = vmul.f32 %v3232, %v2986
      %v3235 = vsel %vm792, %v3168, %v2978
      %v3236 = vmul.f32 %v3235, %v2991
      %v3237 = vmul.f32 %v3235, %v2994
      %v3238 = vadd.f32 %v3233, %v3236
      %v3239 = vadd.f32 %v3234, %v3237
      %v3242 = vcombine.high %v3238, %v3238
      %v3243 = vcombine.high %v3239, %v3239
      %v3246 = vsel %vm792, %v3238, -inf
      %v3247 = vsel %vm792, %v3242, -inf
      %v3248 = vsel %vm792, %v3239, -inf
      %v3249 = vsel %vm792, %v3243, -inf
      %v3250 = vmax.f32 %v3246, %v3247
      %v3251 = vmax.f32 %v3248, %v3249
      %v3252 = vmax.f32 %v3250, %v3251
      %v3253 = vsub.f32 %v3238, %v3252
      %v3254 = vsub.f32 %v3242, %v3252
      %v3255 = vsub.f32 %v3239, %v3252
      %v3256 = vsub.f32 %v3243, %v3252
      %v3257 = vmul.f32 %v3253, 1.442695
      %v3258 = vpow.pop %v3257
      %v3259 = vmul.f32 %v3254, 1.442695
      %v3260 = vpow.pop %v3259
      %v3261 = vmul.f32 %v3255, 1.442695
      %v3262 = vpow.pop %v3261
      %v3263 = vmul.f32 %v3256, 1.442695
      %v3264 = vpow.pop %v3263
      %v3265 = vsel %vm792, %v3258, 0.0
      %v3266 = vsel %vm792, %v3260, 0.0
      %v3267 = vadd.f32 %v3265, %v3266
      %v3268 = vsel %vm792, %v3262, 0.0
      %v3269 = vadd.f32 %v3267, %v3268
      %v3270 = vsel %vm792, %v3264, 0.0
      %v3271 = vadd.f32 %v3269, %v3270
      %v3272 = vrcp.pop %v3271
      %v3273 = vmul.f32 %v3258, %v2999
      %v3274 = vmul.f32 %v3260, %v3062
      %v3275 = vmul.f32 %v3262, %v3002
      %v3276 = vmul.f32 %v3264, %v3063
      %v3277 = vsel %vm792, %v3273, 0.0
      %v3278 = vsel %vm792, %v3274, 0.0
      %v3279 = vadd.f32 %v3277, %v3278
      %v3280 = vsel %vm792, %v3275, 0.0
      %v3281 = vadd.f32 %v3279, %v3280
      %v3282 = vsel %vm792, %v3276, 0.0
      %v3283 = vadd.f32 %v3281, %v3282
      %v3284 = vmul.f32 %v3283, %v3272
      %v3285 = vmul.f32 %v3258, %v3007
      %v3286 = vmul.f32 %v3260, %v3080
      %v3287 = vmul.f32 %v3262, %v3010
      %v3288 = vmul.f32 %v3264, %v3081
      %v3289 = vsel %vm792, %v3285, 0.0
      %v3290 = vsel %vm792, %v3286, 0.0
      %v3291 = vadd.f32 %v3289, %v3290
      %v3292 = vsel %vm792, %v3287, 0.0
      %v3293 = vadd.f32 %v3291, %v3292
      %v3294 = vsel %vm792, %v3288, 0.0
      %v3295 = vadd.f32 %v3293, %v3294
      %v3296 = vmul.f32 %v3295, %v3272
      %v3298 = vrot.slane %v3095, 4
      %v3301 = vrot.slane %v3160, 4
      %v3304 = vrot.slane %v3231, 4
      %v3307 = vrot.slane %v3296, 4
      %v3309 = vsel %vm792, %v3077, %v3298
      %v3310 = vsel %vm792, %v3148, %v3301
      %v3311 = vsel %vm792, %v3219, %v3304
      %v3312 = vsel %vm792, %v3284, %v3307
      %v3313 = vld [vmem:[%s8] sm:$0xf]
      %v3314 = vld [vmem:[%s8 + $0x4] sm:$0xf]
      %v3315 = vld [vmem:[%s8 + $0x8] sm:$0xf]
      %v3316 = vld [vmem:[%s8 + $0xc] sm:$0xf]
      %v3317 = vpack.c.bf16 %v3310, %v3309
      %v3318 = vpack.c.bf16 %v3312, %v3311
      %3320 = vset.pattern.permute.xlu0 0
      %3321 = vperm.xlu0 %3320, %v2741
      %v3322 = vpop.permute.xlu0 %3321
      %3325 = vset.pattern.permute.xlu0 0
      %3326 = vperm.xlu0 %3325, %v2742
      %v3327 = vpop.permute.xlu0 %3326
      %3330 = vset.pattern.permute.xlu0 0
      %3331 = vperm.xlu0 %3330, %v2743
      %v3332 = vpop.permute.xlu0 %3331
      %3335 = vset.pattern.permute.xlu0 0
      %3336 = vperm.xlu0 %3335, %v2744
      %v3337 = vpop.permute.xlu0 %3336
      %v3343 = vunpack.c.l.b16 %v3313
      %v3344 = vunpack.c.l.b16 %v3314
      %v3345 = vunpack.c.l.b16 %v3315
      %v3346 = vunpack.c.l.b16 %v3316
      %v3347 = vpack.c.b16 %v3344, %v3343
      %v3348 = vpack.c.b16 %v3346, %v3345
      %v3350 = vsel %vm605, %v3347, 0
      %v3353 = vsel %vm605, %v3348, 0
      %3355 = vmatprep.subr.bf16.mxu0 0
      %3356 = vmatpush1.bf16.msra.mxu0 0
      %3357 = vmatprep.subr.bf16.mxu0 0
      %3358 = vmatpush1.bf16.msra.mxu0 0
      %3359 = vmatprep.subr.bf16.mxu0 0
      %3360 = vmatpush1.bf16.msra.mxu0 0
      %3361 = vmatprep.subr.bf16.mxu0 0
      %3362 = vmatpush1.bf16.msra.mxu0 0
      %3363 = vmatprep.subr.bf16.mxu0 0
      %3364 = vmatpush1.bf16.msra.mxu0 0
      %3365 = vmatprep.subr.bf16.mxu0 0
      %3366 = vmatpush1.bf16.msra.mxu0 0
      %3367 = vmatprep.subr.bf16.mxu0 0
      %3368 = vmatpush1.bf16.msra.mxu0 %v3318
      %3369 = vmatprep.subr.bf16.mxu0 0
      %3370 = vmatpush1.bf16.msra.mxu0 %v3317
      %3371 = vmatprep.subr.bf16.mxu0 0
      %3372 = vmatpush2.bf16.msra.mxu0 0
      %3373 = vmatprep.subr.bf16.mxu0 0
      %3374 = vmatpush2.bf16.msra.mxu0 0
      %3375 = vmatprep.subr.bf16.mxu0 0
      %3376 = vmatpush2.bf16.msra.mxu0 0
      %3377 = vmatprep.subr.bf16.mxu0 0
      %3378 = vmatpush2.bf16.msra.mxu0 0
      %3379 = vmatprep.subr.bf16.mxu0 0
      %3380 = vmatpush2.bf16.msra.mxu0 0
      %3381 = vmatprep.subr.bf16.mxu0 0
      %3382 = vmatpush2.bf16.msra.mxu0 0
      %3383 = vmatprep.subr.bf16.mxu0 0
      %3384 = vmatpush2.bf16.msra.mxu0 0
      %3385 = vmatprep.subr.bf16.mxu0 0
      %3386 = vmatpush2.bf16.msra.mxu0 0
      %3387 = vmatprep.mubr.bf16.mxu0 0
      %3388 = vmatmul.mubr.bf16.gmra.mxu0 %v3350
      %v3389 = vpop.f32.mrf.mxu0
      %v3390 = vadd.f32 %v3322, %v3389
      %v3391 = vpop.f32.mrf.mxu0
      %v3392 = vpop.f32.mrf.mxu0
      %v3393 = vadd.f32 %v3327, %v3392
      %v3394 = vpop.f32.mrf.mxu0
      %3395 = vmatprep.mubr.bf16.mxu0 0
      %3396 = vmatmul.mubr.bf16.gmra.mxu0 %v3353
      %v3397 = vpop.f32.mrf.mxu0
      %v3398 = vadd.f32 %v3332, %v3397
      %v3399 = vpop.f32.mrf.mxu0
      %v3400 = vpop.f32.mrf.mxu0
      %v3401 = vadd.f32 %v3337, %v3400
      %v3402 = vpop.f32.mrf.mxu0
      %3403 = vdwg.mxu0
      %v3404 = vadd.f32 %v2713, %v3390
      %v3405 = vadd.f32 %v2714, %v3393
      %v3406 = vadd.f32 %v2715, %v3398
      %v3407 = vadd.f32 %v2716, %v3401
      %v3408 = vld [vmem:[%s10] sm:$0xf]
      %v3409 = vld [vmem:[%s10 + $0x4] sm:$0xf]
      %v3410 = vld [vmem:[%s10 + $0x8] sm:$0xf]
      %v3411 = vld [vmem:[%s10 + $0xc] sm:$0xf]
      %v3412 = vld [vmem:[%s10 + $0x10] sm:$0xf]
      %v3413 = vld [vmem:[%s10 + $0x14] sm:$0xf]
      %v3414 = vld [vmem:[%s10 + $0x18] sm:$0xf]
      %v3415 = vld [vmem:[%s10 + $0x1c] sm:$0xf]
      %v3416 = vld [vmem:[%s10 + $0x20] sm:$0xf]
      %v3417 = vld [vmem:[%s10 + $0x24] sm:$0xf]
      %v3418 = vld [vmem:[%s10 + $0x28] sm:$0xf]
      %v3419 = vld [vmem:[%s10 + $0x2c] sm:$0xf]
      %v3420 = vld [vmem:[%s10 + $0x30] sm:$0xf]
      %v3421 = vld [vmem:[%s10 + $0x34] sm:$0xf]
      %v3422 = vld [vmem:[%s10 + $0x38] sm:$0xf]
      %v3423 = vld [vmem:[%s10 + $0x3c] sm:$0xf]
      %v3424 = vld [vmem:[%s11] sm:$0xf]
      %v3425 = vld [vmem:[%s11 + $0x4] sm:$0xf]
      %v3426 = vld [vmem:[%s11 + $0x8] sm:$0xf]
      %v3427 = vld [vmem:[%s11 + $0xc] sm:$0xf]
      %v3428 = vld [vmem:[%s12] sm:$0xff]
      %v3429 = vld [vmem:[%s12 + $0x8] sm:$0xff]
      %v3430 = vld [vmem:[%s12 + $0x10] sm:$0xff]
      %v3431 = vld [vmem:[%s12 + $0x18] sm:$0xff]
      %v3432 = vld [vmem:[%s12 + $0x20] sm:$0xff]
      %v3433 = vld [vmem:[%s12 + $0x28] sm:$0xff]
      %v3434 = vld [vmem:[%s12 + $0x30] sm:$0xff]
      %v3435 = vld [vmem:[%s12 + $0x38] sm:$0xff]
      %v3436 = vld [vmem:[%s12 + $0x40] sm:$0xff]
      %v3437 = vld [vmem:[%s12 + $0x48] sm:$0xff]
      %v3438 = vld [vmem:[%s12 + $0x50] sm:$0xff]
      %v3439 = vld [vmem:[%s12 + $0x58] sm:$0xff]
      %v3440 = vld [vmem:[%s12 + $0x60] sm:$0xff]
      %v3441 = vld [vmem:[%s12 + $0x68] sm:$0xff]
      %v3442 = vld [vmem:[%s12 + $0x70] sm:$0xff]
      %v3443 = vld [vmem:[%s12 + $0x78] sm:$0xff]
      %v3444 = vld [vmem:[%s12 + $0x80] sm:$0xff]
      %v3445 = vld [vmem:[%s12 + $0x88] sm:$0xff]
      %v3446 = vld [vmem:[%s12 + $0x90] sm:$0xff]
      %v3447 = vld [vmem:[%s12 + $0x98] sm:$0xff]
      %v3448 = vadd.f32 %v3404, %v3405
      %v3449 = vadd.f32 %v3448, %v3406
      %v3450 = vadd.f32 %v3449, %v3407
      %v3451 = vrot.slane %v3450, 4
      %v3452 = vadd.f32 %v3450, %v3451
      %v3453 = vrot.slane %v3452, 2
      %v3454 = vadd.f32 %v3452, %v3453
      %v3455 = vrot.slane %v3454, 1
      %v3456 = vadd.f32 %v3454, %v3455
      %v3457 = vmul.f32 %v3456, %v487
      %v3458 = vsub.f32 %v3404, %v3457
      %v3459 = vsub.f32 %v3405, %v3457
      %v3460 = vsub.f32 %v3406, %v3457
      %v3461 = vsub.f32 %v3407, %v3457
      %v3462 = vmul.f32 %v3458, %v3458
      %v3463 = vmul.f32 %v3459, %v3459
      %v3464 = vmul.f32 %v3460, %v3460
      %v3465 = vmul.f32 %v3461, %v3461
      %v3466 = vadd.f32 %v3462, %v3463
      %v3467 = vadd.f32 %v3466, %v3464
      %v3468 = vadd.f32 %v3467, %v3465
      %v3469 = vrot.slane %v3468, 4
      %v3470 = vadd.f32 %v3468, %v3469
      %v3471 = vrot.slane %v3470, 2
      %v3472 = vadd.f32 %v3470, %v3471
      %v3473 = vrot.slane %v3472, 1
      %v3474 = vadd.f32 %v3472, %v3473
      %v3475 = vmul.f32 %v3474, %v487
      %v3476 = vadd.f32 %v3475, 1e-05
      %v3477 = vrsqrt.pop %v3476
      %v3478 = vmul.f32 %v3458, %v3477
      %v3479 = vmul.f32 %v3459, %v3477
      %v3480 = vmul.f32 %v3460, %v3477
      %v3481 = vmul.f32 %v3461, %v3477
      %v3482 = vpack.c.bf16 %v3479, %v3478
      %v3483 = vpack.c.bf16 %v3481, %v3480
      %3485 = vset.pattern.permute.xlu0 0
      %3486 = vperm.xlu0 %3485, %v3428
      %v3487 = vpop.permute.xlu0 %3486
      %3490 = vset.pattern.permute.xlu0 0
      %3491 = vperm.xlu0 %3490, %v3429
      %v3492 = vpop.permute.xlu0 %3491
      %3495 = vset.pattern.permute.xlu0 0
      %3496 = vperm.xlu0 %3495, %v3430
      %v3497 = vpop.permute.xlu0 %3496
      %3500 = vset.pattern.permute.xlu0 0
      %3501 = vperm.xlu0 %3500, %v3431
      %v3502 = vpop.permute.xlu0 %3501
      %3505 = vset.pattern.permute.xlu0 0
      %3506 = vperm.xlu0 %3505, %v3432
      %v3507 = vpop.permute.xlu0 %3506
      %3510 = vset.pattern.permute.xlu0 0
      %3511 = vperm.xlu0 %3510, %v3433
      %v3512 = vpop.permute.xlu0 %3511
      %3515 = vset.pattern.permute.xlu0 0
      %3516 = vperm.xlu0 %3515, %v3434
      %v3517 = vpop.permute.xlu0 %3516
      %3520 = vset.pattern.permute.xlu0 0
      %3521 = vperm.xlu0 %3520, %v3435
      %v3522 = vpop.permute.xlu0 %3521
      %3525 = vset.pattern.permute.xlu0 0
      %3526 = vperm.xlu0 %3525, %v3436
      %v3527 = vpop.permute.xlu0 %3526
      %3530 = vset.pattern.permute.xlu0 0
      %3531 = vperm.xlu0 %3530, %v3437
      %v3532 = vpop.permute.xlu0 %3531
      %3535 = vset.pattern.permute.xlu0 0
      %3536 = vperm.xlu0 %3535, %v3438
      %v3537 = vpop.permute.xlu0 %3536
      %3540 = vset.pattern.permute.xlu0 0
      %3541 = vperm.xlu0 %3540, %v3439
      %v3542 = vpop.permute.xlu0 %3541
      %3545 = vset.pattern.permute.xlu0 0
      %3546 = vperm.xlu0 %3545, %v3440
      %v3547 = vpop.permute.xlu0 %3546
      %3550 = vset.pattern.permute.xlu0 0
      %3551 = vperm.xlu0 %3550, %v3441
      %v3552 = vpop.permute.xlu0 %3551
      %3555 = vset.pattern.permute.xlu0 0
      %3556 = vperm.xlu0 %3555, %v3442
      %v3557 = vpop.permute.xlu0 %3556
      %3560 = vset.pattern.permute.xlu0 0
      %3561 = vperm.xlu0 %3560, %v3443
      %v3562 = vpop.permute.xlu0 %3561
      %v3580 = vunpack.c.l.b16 %v3408
      %v3581 = vunpack.c.l.b16 %v3409
      %v3582 = vunpack.c.l.b16 %v3410
      %v3583 = vunpack.c.l.b16 %v3411
      %v3584 = vunpack.c.l.b16 %v3412
      %v3585 = vunpack.c.l.b16 %v3413
      %v3586 = vunpack.c.l.b16 %v3414
      %v3587 = vunpack.c.l.b16 %v3415
      %v3588 = vunpack.c.l.b16 %v3416
      %v3589 = vunpack.c.l.b16 %v3417
      %v3590 = vunpack.c.l.b16 %v3418
      %v3591 = vunpack.c.l.b16 %v3419
      %v3592 = vunpack.c.l.b16 %v3420
      %v3593 = vunpack.c.l.b16 %v3421
      %v3594 = vunpack.c.l.b16 %v3422
      %v3595 = vunpack.c.l.b16 %v3423
      %v3596 = vpack.c.b16 %v3581, %v3580
      %v3597 = vpack.c.b16 %v3583, %v3582
      %v3598 = vpack.c.b16 %v3585, %v3584
      %v3599 = vpack.c.b16 %v3587, %v3586
      %v3600 = vpack.c.b16 %v3589, %v3588
      %v3601 = vpack.c.b16 %v3591, %v3590
      %v3602 = vpack.c.b16 %v3593, %v3592
      %v3603 = vpack.c.b16 %v3595, %v3594
      %v3605 = vsel %vm605, %v3596, 0
      %v3608 = vsel %vm605, %v3597, 0
      %v3611 = vsel %vm605, %v3598, 0
      %v3614 = vsel %vm605, %v3599, 0
      %v3617 = vsel %vm605, %v3600, 0
      %v3620 = vsel %vm605, %v3601, 0
      %v3623 = vsel %vm605, %v3602, 0
      %v3626 = vsel %vm605, %v3603, 0
      %3628 = vmatprep.subr.bf16.mxu0 0
      %3629 = vmatpush1.bf16.msra.mxu0 0
      %3630 = vmatprep.subr.bf16.mxu0 0
      %3631 = vmatpush1.bf16.msra.mxu0 0
      %3632 = vmatprep.subr.bf16.mxu0 0
      %3633 = vmatpush1.bf16.msra.mxu0 0
      %3634 = vmatprep.subr.bf16.mxu0 0
      %3635 = vmatpush1.bf16.msra.mxu0 0
      %3636 = vmatprep.subr.bf16.mxu0 0
      %3637 = vmatpush1.bf16.msra.mxu0 0
      %3638 = vmatprep.subr.bf16.mxu0 0
      %3639 = vmatpush1.bf16.msra.mxu0 0
      %3640 = vmatprep.subr.bf16.mxu0 0
      %3641 = vmatpush1.bf16.msra.mxu0 %v3483
      %3642 = vmatprep.subr.bf16.mxu0 0
      %3643 = vmatpush1.bf16.msra.mxu0 %v3482
      %3644 = vmatprep.subr.bf16.mxu0 0
      %3645 = vmatpush2.bf16.msra.mxu0 0
      %3646 = vmatprep.subr.bf16.mxu0 0
      %3647 = vmatpush2.bf16.msra.mxu0 0
      %3648 = vmatprep.subr.bf16.mxu0 0
      %3649 = vmatpush2.bf16.msra.mxu0 0
      %3650 = vmatprep.subr.bf16.mxu0 0
      %3651 = vmatpush2.bf16.msra.mxu0 0
      %3652 = vmatprep.subr.bf16.mxu0 0
      %3653 = vmatpush2.bf16.msra.mxu0 0
      %3654 = vmatprep.subr.bf16.mxu0 0
      %3655 = vmatpush2.bf16.msra.mxu0 0
      %3656 = vmatprep.subr.bf16.mxu0 0
      %3657 = vmatpush2.bf16.msra.mxu0 0
      %3658 = vmatprep.subr.bf16.mxu0 0
      %3659 = vmatpush2.bf16.msra.mxu0 0
      %3660 = vmatprep.mubr.bf16.mxu0 0
      %3661 = vmatmul.mubr.bf16.gmra.mxu0 %v3605
      %v3662 = vpop.f32.mrf.mxu0
      %v3663 = vadd.f32 %v3487, %v3662
      %v3664 = vpop.f32.mrf.mxu0
      %v3665 = vpop.f32.mrf.mxu0
      %v3666 = vadd.f32 %v3492, %v3665
      %v3667 = vpop.f32.mrf.mxu0
      %3668 = vmatprep.mubr.bf16.mxu0 0
      %3669 = vmatmul.mubr.bf16.gmra.mxu0 %v3608
      %v3670 = vpop.f32.mrf.mxu0
      %v3671 = vadd.f32 %v3497, %v3670
      %v3672 = vpop.f32.mrf.mxu0
      %v3673 = vpop.f32.mrf.mxu0
      %v3674 = vadd.f32 %v3502, %v3673
      %v3675 = vpop.f32.mrf.mxu0
      %3676 = vmatprep.mubr.bf16.mxu0 0
      %3677 = vmatmul.mubr.bf16.gmra.mxu0 %v3611
      %v3678 = vpop.f32.mrf.mxu0
      %v3679 = vadd.f32 %v3507, %v3678
      %v3680 = vpop.f32.mrf.mxu0
      %v3681 = vpop.f32.mrf.mxu0
      %v3682 = vadd.f32 %v3512, %v3681
      %v3683 = vpop.f32.mrf.mxu0
      %3684 = vmatprep.mubr.bf16.mxu0 0
      %3685 = vmatmul.mubr.bf16.gmra.mxu0 %v3614
      %v3686 = vpop.f32.mrf.mxu0
      %v3687 = vadd.f32 %v3517, %v3686
      %v3688 = vpop.f32.mrf.mxu0
      %v3689 = vpop.f32.mrf.mxu0
      %v3690 = vadd.f32 %v3522, %v3689
      %v3691 = vpop.f32.mrf.mxu0
      %3692 = vmatprep.mubr.bf16.mxu0 0
      %3693 = vmatmul.mubr.bf16.gmra.mxu0 %v3617
      %v3694 = vpop.f32.mrf.mxu0
      %v3695 = vadd.f32 %v3527, %v3694
      %v3696 = vpop.f32.mrf.mxu0
      %v3697 = vpop.f32.mrf.mxu0
      %v3698 = vadd.f32 %v3532, %v3697
      %v3699 = vpop.f32.mrf.mxu0
      %3700 = vmatprep.mubr.bf16.mxu0 0
      %3701 = vmatmul.mubr.bf16.gmra.mxu0 %v3620
      %v3702 = vpop.f32.mrf.mxu0
      %v3703 = vadd.f32 %v3537, %v3702
      %v3704 = vpop.f32.mrf.mxu0
      %v3705 = vpop.f32.mrf.mxu0
      %v3706 = vadd.f32 %v3542, %v3705
      %v3707 = vpop.f32.mrf.mxu0
      %3708 = vmatprep.mubr.bf16.mxu0 0
      %3709 = vmatmul.mubr.bf16.gmra.mxu0 %v3623
      %v3710 = vpop.f32.mrf.mxu0
      %v3711 = vadd.f32 %v3547, %v3710
      %v3712 = vpop.f32.mrf.mxu0
      %v3713 = vpop.f32.mrf.mxu0
      %v3714 = vadd.f32 %v3552, %v3713
      %v3715 = vpop.f32.mrf.mxu0
      %3716 = vmatprep.mubr.bf16.mxu0 0
      %3717 = vmatmul.mubr.bf16.gmra.mxu0 %v3626
      %v3718 = vpop.f32.mrf.mxu0
      %v3719 = vadd.f32 %v3557, %v3718
      %v3720 = vpop.f32.mrf.mxu0
      %v3721 = vpop.f32.mrf.mxu0
      %v3722 = vadd.f32 %v3562, %v3721
      %v3723 = vpop.f32.mrf.mxu0
      %3724 = vdwg.mxu0
      %v3725 = vmul.f32 %v3663, 0.5
      %v3726 = vmul.f32 %v3666, 0.5
      %v3727 = vmul.f32 %v3671, 0.5
      %v3728 = vmul.f32 %v3674, 0.5
      %v3729 = vmul.f32 %v3679, 0.5
      %v3730 = vmul.f32 %v3682, 0.5
      %v3731 = vmul.f32 %v3687, 0.5
      %v3732 = vmul.f32 %v3690, 0.5
      %v3733 = vmul.f32 %v3695, 0.5
      %v3734 = vmul.f32 %v3698, 0.5
      %v3735 = vmul.f32 %v3703, 0.5
      %v3736 = vmul.f32 %v3706, 0.5
      %v3737 = vmul.f32 %v3711, 0.5
      %v3738 = vmul.f32 %v3714, 0.5
      %v3739 = vmul.f32 %v3719, 0.5
      %v3740 = vmul.f32 %v3722, 0.5
      %v3741 = vmul.f32 %v3663, 0.044715
      %v3742 = vmul.f32 %v3666, 0.044715
      %v3743 = vmul.f32 %v3671, 0.044715
      %v3744 = vmul.f32 %v3674, 0.044715
      %v3745 = vmul.f32 %v3679, 0.044715
      %v3746 = vmul.f32 %v3682, 0.044715
      %v3747 = vmul.f32 %v3687, 0.044715
      %v3748 = vmul.f32 %v3690, 0.044715
      %v3749 = vmul.f32 %v3695, 0.044715
      %v3750 = vmul.f32 %v3698, 0.044715
      %v3751 = vmul.f32 %v3703, 0.044715
      %v3752 = vmul.f32 %v3706, 0.044715
      %v3753 = vmul.f32 %v3711, 0.044715
      %v3754 = vmul.f32 %v3714, 0.044715
      %v3755 = vmul.f32 %v3719, 0.044715
      %v3756 = vmul.f32 %v3722, 0.044715
      %v3757 = vmul.f32 %v3741, %v3663
      %v3758 = vmul.f32 %v3742, %v3666
      %v3759 = vmul.f32 %v3743, %v3671
      %v3760 = vmul.f32 %v3744, %v3674
      %v3761 = vmul.f32 %v3745, %v3679
      %v3762 = vmul.f32 %v3746, %v3682
      %v3763 = vmul.f32 %v3747, %v3687
      %v3764 = vmul.f32 %v3748, %v3690
      %v3765 = vmul.f32 %v3749, %v3695
      %v3766 = vmul.f32 %v3750, %v3698
      %v3767 = vmul.f32 %v3751, %v3703
      %v3768 = vmul.f32 %v3752, %v3706
      %v3769 = vmul.f32 %v3753, %v3711
      %v3770 = vmul.f32 %v3754, %v3714
      %v3771 = vmul.f32 %v3755, %v3719
      %v3772 = vmul.f32 %v3756, %v3722
      %v3773 = vmul.f32 %v3757, %v3663
      %v3774 = vmul.f32 %v3758, %v3666
      %v3775 = vmul.f32 %v3759, %v3671
      %v3776 = vmul.f32 %v3760, %v3674
      %v3777 = vmul.f32 %v3761, %v3679
      %v3778 = vmul.f32 %v3762, %v3682
      %v3779 = vmul.f32 %v3763, %v3687
      %v3780 = vmul.f32 %v3764, %v3690
      %v3781 = vmul.f32 %v3765, %v3695
      %v3782 = vmul.f32 %v3766, %v3698
      %v3783 = vmul.f32 %v3767, %v3703
      %v3784 = vmul.f32 %v3768, %v3706
      %v3785 = vmul.f32 %v3769, %v3711
      %v3786 = vmul.f32 %v3770, %v3714
      %v3787 = vmul.f32 %v3771, %v3719
      %v3788 = vmul.f32 %v3772, %v3722
      %v3789 = vadd.f32 %v3663, %v3773
      %v3790 = vadd.f32 %v3666, %v3774
      %v3791 = vadd.f32 %v3671, %v3775
      %v3792 = vadd.f32 %v3674, %v3776
      %v3793 = vadd.f32 %v3679, %v3777
      %v3794 = vadd.f32 %v3682, %v3778
      %v3795 = vadd.f32 %v3687, %v3779
      %v3796 = vadd.f32 %v3690, %v3780
      %v3797 = vadd.f32 %v3695, %v3781
      %v3798 = vadd.f32 %v3698, %v3782
      %v3799 = vadd.f32 %v3703, %v3783
      %v3800 = vadd.f32 %v3706, %v3784
      %v3801 = vadd.f32 %v3711, %v3785
      %v3802 = vadd.f32 %v3714, %v3786
      %v3803 = vadd.f32 %v3719, %v3787
      %v3804 = vadd.f32 %v3722, %v3788
      %v3805 = vmul.f32 %v3789, 0.7978846
      %v3806 = vmul.f32 %v3790, 0.7978846
      %v3807 = vmul.f32 %v3791, 0.7978846
      %v3808 = vmul.f32 %v3792, 0.7978846
      %v3809 = vmul.f32 %v3793, 0.7978846
      %v3810 = vmul.f32 %v3794, 0.7978846
      %v3811 = vmul.f32 %v3795, 0.7978846
      %v3812 = vmul.f32 %v3796, 0.7978846
      %v3813 = vmul.f32 %v3797, 0.7978846
      %v3814 = vmul.f32 %v3798, 0.7978846
      %v3815 = vmul.f32 %v3799, 0.7978846
      %v3816 = vmul.f32 %v3800, 0.7978846
      %v3817 = vmul.f32 %v3801, 0.7978846
      %v3818 = vmul.f32 %v3802, 0.7978846
      %v3819 = vmul.f32 %v3803, 0.7978846
      %v3820 = vmul.f32 %v3804, 0.7978846
      %v3821 = vtanh.pop %v3805
      %v3822 = vtanh.pop %v3806
      %v3823 = vtanh.pop %v3807
      %v3824 = vtanh.pop %v3808
      %v3825 = vtanh.pop %v3809
      %v3826 = vtanh.pop %v3810
      %v3827 = vtanh.pop %v3811
      %v3828 = vtanh.pop %v3812
      %v3829 = vtanh.pop %v3813
      %v3830 = vtanh.pop %v3814
      %v3831 = vtanh.pop %v3815
      %v3832 = vtanh.pop %v3816
      %v3833 = vtanh.pop %v3817
      %v3834 = vtanh.pop %v3818
      %v3835 = vtanh.pop %v3819
      %v3836 = vtanh.pop %v3820
      %v3837 = vadd.f32 %v3821, 1.0
      %v3838 = vadd.f32 %v3822, 1.0
      %v3839 = vadd.f32 %v3823, 1.0
      %v3840 = vadd.f32 %v3824, 1.0
      %v3841 = vadd.f32 %v3825, 1.0
      %v3842 = vadd.f32 %v3826, 1.0
      %v3843 = vadd.f32 %v3827, 1.0
      %v3844 = vadd.f32 %v3828, 1.0
      %v3845 = vadd.f32 %v3829, 1.0
      %v3846 = vadd.f32 %v3830, 1.0
      %v3847 = vadd.f32 %v3831, 1.0
      %v3848 = vadd.f32 %v3832, 1.0
      %v3849 = vadd.f32 %v3833, 1.0
      %v3850 = vadd.f32 %v3834, 1.0
      %v3851 = vadd.f32 %v3835, 1.0
      %v3852 = vadd.f32 %v3836, 1.0
      %v3853 = vmul.f32 %v3725, %v3837
      %v3854 = vmul.f32 %v3726, %v3838
      %v3855 = vmul.f32 %v3727, %v3839
      %v3856 = vmul.f32 %v3728, %v3840
      %v3857 = vmul.f32 %v3729, %v3841
      %v3858 = vmul.f32 %v3730, %v3842
      %v3859 = vmul.f32 %v3731, %v3843
      %v3860 = vmul.f32 %v3732, %v3844
      %v3861 = vmul.f32 %v3733, %v3845
      %v3862 = vmul.f32 %v3734, %v3846
      %v3863 = vmul.f32 %v3735, %v3847
      %v3864 = vmul.f32 %v3736, %v3848
      %v3865 = vmul.f32 %v3737, %v3849
      %v3866 = vmul.f32 %v3738, %v3850
      %v3867 = vmul.f32 %v3739, %v3851
      %v3868 = vmul.f32 %v3740, %v3852
      %v3869 = vpack.c.bf16 %v3854, %v3853
      %v3870 = vpack.c.bf16 %v3856, %v3855
      %v3871 = vpack.c.bf16 %v3858, %v3857
      %v3872 = vpack.c.bf16 %v3860, %v3859
      %v3873 = vpack.c.bf16 %v3862, %v3861
      %v3874 = vpack.c.bf16 %v3864, %v3863
      %v3875 = vpack.c.bf16 %v3866, %v3865
      %v3876 = vpack.c.bf16 %v3868, %v3867
      %3878 = vset.pattern.permute.xlu0 0
      %3879 = vperm.xlu0 %3878, %v3444
      %v3880 = vpop.permute.xlu0 %3879
      %3883 = vset.pattern.permute.xlu0 0
      %3884 = vperm.xlu0 %3883, %v3445
      %v3885 = vpop.permute.xlu0 %3884
      %3888 = vset.pattern.permute.xlu0 0
      %3889 = vperm.xlu0 %3888, %v3446
      %v3890 = vpop.permute.xlu0 %3889
      %3893 = vset.pattern.permute.xlu0 0
      %3894 = vperm.xlu0 %3893, %v3447
      %v3895 = vpop.permute.xlu0 %3894
      %v3901 = vunpack.c.l.b16 %v3424
      %v3902 = vunpack.c.l.b16 %v3425
      %v3903 = vunpack.c.l.b16 %v3426
      %v3904 = vunpack.c.l.b16 %v3427
      %v3905 = vpack.c.b16 %v3902, %v3901
      %v3906 = vpack.c.b16 %v3904, %v3903
      %3909 = vmatprep.subr.bf16.mxu0 0
      %3910 = vmatpush1.bf16.msra.mxu0 %v3876
      %3911 = vmatprep.subr.bf16.mxu0 0
      %3912 = vmatpush1.bf16.msra.mxu0 %v3875
      %3913 = vmatprep.subr.bf16.mxu0 0
      %3914 = vmatpush1.bf16.msra.mxu0 %v3874
      %3915 = vmatprep.subr.bf16.mxu0 0
      %3916 = vmatpush1.bf16.msra.mxu0 %v3873
      %3917 = vmatprep.subr.bf16.mxu0 0
      %3918 = vmatpush1.bf16.msra.mxu0 %v3872
      %3919 = vmatprep.subr.bf16.mxu0 0
      %3920 = vmatpush1.bf16.msra.mxu0 %v3871
      %3921 = vmatprep.subr.bf16.mxu0 0
      %3922 = vmatpush1.bf16.msra.mxu0 %v3870
      %3923 = vmatprep.subr.bf16.mxu0 0
      %3924 = vmatpush1.bf16.msra.mxu0 %v3869
      %3925 = vmatprep.subr.bf16.mxu0 0
      %3926 = vmatpush2.bf16.msra.mxu0 0
      %3927 = vmatprep.subr.bf16.mxu0 0
      %3928 = vmatpush2.bf16.msra.mxu0 0
      %3929 = vmatprep.subr.bf16.mxu0 0
      %3930 = vmatpush2.bf16.msra.mxu0 0
      %3931 = vmatprep.subr.bf16.mxu0 0
      %3932 = vmatpush2.bf16.msra.mxu0 0
      %3933 = vmatprep.subr.bf16.mxu0 0
      %3934 = vmatpush2.bf16.msra.mxu0 0
      %3935 = vmatprep.subr.bf16.mxu0 0
      %3936 = vmatpush2.bf16.msra.mxu0 0
      %3937 = vmatprep.subr.bf16.mxu0 0
      %3938 = vmatpush2.bf16.msra.mxu0 0
      %3939 = vmatprep.subr.bf16.mxu0 0
      %3940 = vmatpush2.bf16.msra.mxu0 0
      %3941 = vmatprep.mubr.bf16.mxu0 0
      %3942 = vmatmul.mubr.bf16.gmra.mxu0 %v3905
      %v3943 = vpop.f32.mrf.mxu0
      %v3944 = vadd.f32 %v3880, %v3943
      %v3945 = vpop.f32.mrf.mxu0
      %v3946 = vpop.f32.mrf.mxu0
      %v3947 = vadd.f32 %v3885, %v3946
      %v3948 = vpop.f32.mrf.mxu0
      %3949 = vmatprep.mubr.bf16.mxu0 0
      %3950 = vmatmul.mubr.bf16.gmra.mxu0 %v3906
      %v3951 = vpop.f32.mrf.mxu0
      %v3952 = vadd.f32 %v3890, %v3951
      %v3953 = vpop.f32.mrf.mxu0
      %v3954 = vpop.f32.mrf.mxu0
      %v3955 = vadd.f32 %v3895, %v3954
      %v3956 = vpop.f32.mrf.mxu0
      %3957 = vdwg.mxu0
      %v3958 = vadd.f32 %v3404, %v3944
      %v3959 = vadd.f32 %v3405, %v3947
      %v3960 = vadd.f32 %v3406, %v3952
      %v3961 = vadd.f32 %v3407, %v3955
      %v3962 = vadd.f32 %v3958, %v442
      %v3963 = vadd.f32 %v3959, %v443
      %v3964 = vadd.f32 %v3960, %v444
      %v3965 = vadd.f32 %v3961, %v445
      %3966 = vst [vmem:[%s440] sm:$0xff] %v3962
      %3967 = vst [vmem:[%s440 + $0x8] sm:$0xff] %v3963
      %3968 = vst [vmem:[%s440 + $0x10] sm:$0xff] %v3964
      %3969 = vst [vmem:[%s440 + $0x18] sm:$0xff] %v3965
      %p3970 = scmp.lt.s32.totalorder %s24, 1
      %s3971 = scalar_select %p3970, %s24, 1
      %s3972 = smul.addr %s3971, 4
      %s3973 = smul.addr %s3972, 8
      %s3974 = scalar_lea.vmem %s13, %s3973
      // Predicated region
      $region73: #{pallas_forward.1} parent=71 // pred_check
        %p3975 = pneg %p320
      $region74: #{pallas_forward.1} parent=71 // pred_check_branch
        %3977 = sbr.rel (%p3975) target = $region76
      $region75: #{pallas_forward.1} parent=71 // pred_region
        _
      $region76: #{pallas_forward.1} parent=71 // pred_fallthru
        _
    $region72: #{pallas_forward.1} parent=5 // pred_fallthru
      _
    %p3978 = scmp.le.s32.totalorder 2, %s19
    // Predicated region
    $region77: #{pallas_forward.1} parent=5 // pred_check
      %p3979 = pneg %p3978
    $region78: #{pallas_forward.1} parent=5 // pred_check_branch
      %3981 = sbr.rel (%p3979) target = $region80
    $region79: #{pallas_forward.1} parent=5 // pred_region
      %s3982 = ssub.s32 %s19, 2
      // Predicated region
      $region81: #{pallas_forward.1} parent=79 // pred_check
        %p3983 = pneg %p326
      $region82: #{pallas_forward.1} parent=79 // pred_check_branch
        %3985 = sbr.rel (%p3983) target = $region84
      $region83: #{pallas_forward.1} parent=79 // pred_region
        %p3986 = scmp.lt.s32.totalorder %s25, 1
        %s3987 = scalar_select %p3986, %s25, 1
        %s3988 = smul.addr %s3987, 4
        %s3989 = smul.addr %s3988, 8
        %s3990 = scalar_lea.vmem %s13, %s3989
      $region84: #{pallas_forward.1} parent=79 // pred_fallthru
        _
    $region80: #{pallas_forward.1} parent=5 // pred_fallthru
      _
  $region6: #{pallas_forward.1} parent=0 // loop_footer
    %s23 = sadd.s32 1, %s19
  $region7: #{pallas_forward.1} parent=0 // loop_footer_branch
    %18 = sbr.rel target = $region3
  $region8: #{pallas_forward.1} parent=0 // loop_exit
    _

</llo_original>
